<compile_context>
chip_gen: v6e
topology: v6e:2x2x1
jax: 0.10.0
libtpu: 0.0.40
codegen_flags: <defaults>
</compile_context>

<pallas_src>
import numpy as np
import jax
import jax.numpy as jnp
from jax.experimental import pallas as pl
from jax.experimental.pallas import tpu as pltpu

# ----------------------------- hyper-params -----------------------------
PATCH = 4
D0, D1 = 32, 64            # embed dims for stage 1 / stage 2
HEADS1, HEADS2 = 4, 4
MLP1, MLP2 = 64, 128
IMAGENET_LOGITS = 1000     # SwinForImageClassification output size
NUM_CLASSES = 5            # config.num_classes

IMAGENET_MEAN = np.array([0.485, 0.456, 0.406], np.float32)
IMAGENET_STD = np.array([0.229, 0.224, 0.225], np.float32)

# Flat parameter order fed to the fused kernel (after prepare_params()).
PARAM_ORDER = (
    'patch_w', 'patch_b', 'pe_ln_g', 'pe_ln_b',
    'b1_ln1_g', 'b1_ln1_b', 'b1_qkv_w', 'b1_qkv_b', 'b1_bias',
    'b1_proj_w', 'b1_proj_b', 'b1_ln2_g', 'b1_ln2_b',
    'b1_fc1_w', 'b1_fc1_b', 'b1_fc2_w', 'b1_fc2_b',
    'merge_sel', 'merge_ln_g', 'merge_ln_b', 'merge_w', 'merge_b',
    'b2_ln1_g', 'b2_ln1_b', 'b2_qkv_w', 'b2_qkv_b', 'b2_bias',
    'b2_proj_w', 'b2_proj_b', 'b2_ln2_g', 'b2_ln2_b',
    'b2_fc1_w', 'b2_fc1_b', 'b2_fc2_w', 'b2_fc2_b',
    'final_ln_g', 'final_ln_b', 'head_w', 'head_b',
)

# These stay as Refs inside the kernel (indexed along their leading axis).
_REF_ONLY = ('b1_bias', 'b2_bias', 'merge_sel')


# --------------------------- in-kernel helpers ---------------------------
def _layernorm(x, g, b, eps=1e-5):
    mu = jnp.mean(x, axis=-1, keepdims=True)
    var = jnp.mean(jnp.square(x - mu), axis=-1, keepdims=True)
    return (x - mu) * jax.lax.rsqrt(var + eps) * g + b


def _swin_block(tok, p, prefix, bias_ref):
    """Pre-LN Swin block (window == whole grid at this resolution, so W-MSA
    is global MSA and the SW-MSA cyclic shift is a no-op)."""
    T, D = tok.shape
    heads = bias_ref.shape[0]
    Dh = D // heads
    scale = 1.0 / float(np.sqrt(Dh))

    def g(name):
        return p[prefix + name]

    h = _layernorm(tok, g('ln1_g'), g('ln1_b'))
    qkv = jnp.dot(h, g('qkv_w'), preferred_element_type=jnp.float32) + g('qkv_b')
    proj_w = g('proj_w')

    attn = None
    for hh in range(heads):
        q = qkv[:, hh * Dh:(hh + 1) * Dh] * scale
        k = qkv[:, D + hh * Dh:D + (hh + 1) * Dh]
        v = qkv[:, 2 * D + hh * Dh:2 * D + (hh + 1) * Dh]
        # scores: contract the Dh dim of q and k (no explicit transpose).
        s = jax.lax.dot_general(q, k, (((1,), (1,)), ((), ())),
                                preferred_element_type=jnp.float32)
        s = s + bias_ref[hh]                       # relative-position bias
        s = s - jnp.max(s, axis=-1, keepdims=True)
        e = jnp.exp(s)
        prob = e * pl.reciprocal(jnp.sum(e, axis=-1, keepdims=True), approx=True)
        o_h = jnp.dot(prob, v, preferred_element_type=jnp.float32)        # (T, Dh)
        # Fold the per-head output projection in directly (avoids lane concat).
        contrib = jnp.dot(o_h, proj_w[hh * Dh:(hh + 1) * Dh, :],
                          preferred_element_type=jnp.float32)
        attn = contrib if attn is None else attn + contrib

    tok = tok + attn + g('proj_b')

    h2 = _layernorm(tok, g('ln2_g'), g('ln2_b'))
    h2 = jnp.dot(h2, g('fc1_w'), preferred_element_type=jnp.float32) + g('fc1_b')
    # TODO(synk): HF Swin uses exact (erf) GELU; tanh approximation used here.
    h2 = jax.nn.gelu(h2, approximate=True)
    h2 = jnp.dot(h2, g('fc2_w'), preferred_element_type=jnp.float32) + g('fc2_b')
    return tok + h2


# --------------------------- fused forward kernel -------------------------
def _swin_fused_kernel(xp_ref, *refs):
    o_ref = refs[-1]
    param_refs = dict(zip(PARAM_ORDER, refs[:-1]))
    p = {n: (r if n in _REF_ONLY else r[...]) for n, r in param_refs.items()}

    # --- patch embedding (ImageNet mean/std already folded into weights) ---
    xp = xp_ref[0]                                                  # (T1, C*P*P)
    tok = jnp.dot(xp, p['patch_w'], preferred_element_type=jnp.float32) + p['patch_b']
    tok = _layernorm(tok, p['pe_ln_g'], p['pe_ln_b'])

    # --- stage 1 Swin block ---
    tok = _swin_block(tok, p, 'b1_', p['b1_bias'])

    # --- patch merging: 2x2 neighbour concat -> LN -> Linear(4*D0 -> D1) ---
    sel_ref = p['merge_sel']                                        # (4, T2, T1)
    pieces = [jnp.dot(sel_ref[kk], tok, preferred_element_type=jnp.float32)
              for kk in range(4)]
    xm = jnp.concatenate(pieces, axis=-1)                           # (T2, 4*D0)
    xm = _layernorm(xm, p['merge_ln_g'], p['merge_ln_b'])
    tok = jnp.dot(xm, p['merge_w'], preferred_element_type=jnp.float32) + p['merge_b']

    # --- stage 2 Swin block ---
    tok = _swin_block(tok, p, 'b2_', p['b2_bias'])

    # --- final LN -> global mean pool -> folded (ImageNet head @ classifier) ---
    tok = _layernorm(tok, p['final_ln_g'], p['final_ln_b'])
    pooled = jnp.mean(tok, axis=0, keepdims=True)                   # (1, D1)
    logits = jnp.dot(pooled, p['head_w'],
                     preferred_element_type=jnp.float32) + p['head_b']
    o_ref[0] = logits.astype(o_ref.dtype)


# ----------------------------- host-side glue -----------------------------
def relative_position_bias(table, ws):
    """table: ((2*ws-1)^2, heads) -> (heads, ws*ws, ws*ws)."""
    coords = np.stack(np.meshgrid(np.arange(ws), np.arange(ws), indexing='ij'),
                      axis=0).reshape(2, -1)
    rel = coords[:, :, None] - coords[:, None, :] + (ws - 1)
    idx = (rel[0] * (2 * ws - 1) + rel[1]).reshape(-1)
    T = ws * ws
    bias = table[idx].reshape(T, T, -1)
    return jnp.transpose(bias, (2, 0, 1))


def _merge_selection(gh, gw):
    """Constant one-hot matrices implementing the 2x2 patch-merge gather."""
    gh2, gw2 = gh // 2, gw // 2
    T1, T2 = gh * gw, gh2 * gw2
    sel = np.zeros((4, T2, T1), np.float32)
    for kk, (di, dj) in enumerate(((0, 0), (1, 0), (0, 1), (1, 1))):
        for i in range(gh2):
            for j in range(gw2):
                sel[kk, i * gw2 + j, (2 * i + di) * gw + (2 * j + dj)] = 1.0
    return jnp.asarray(sel)


def prepare_params(params):
    """Fold linear pre/post ops into weights and precompute attention biases."""
    P = PATCH
    s_col = jnp.repeat(jnp.asarray(IMAGENET_STD), P * P)   # per-column std
    m_col = jnp.repeat(jnp.asarray(IMAGENET_MEAN), P * P)  # per-column mean
    patch_w = params['patch_w'] / s_col[:, None]
    patch_b = params['patch_b'] - (m_col / s_col) @ params['patch_w']

    head_w = params['head_w'] @ params['cls_w']             # (D1, num_classes)
    head_b = params['head_b'] @ params['cls_w'] + params['cls_b']

    def row(v):  # 1-D -> (1, N) for lane broadcast inside the kernel
        return v.reshape(1, -1)

    b1, b2 = params['block1'], params['block2']
    # TODO(synk): window sizes (4, 2) hard-code the 16x16 input resolution,
    #             matching the fixed rel_table sizes chosen at init.
    prep = {
        'patch_w': patch_w, 'patch_b': row(patch_b),
        'pe_ln_g': row(params['pe_ln_g']), 'pe_ln_b': row(params['pe_ln_b']),
        'merge_ln_g': row(params['merge_ln_g']),
        'merge_ln_b': row(params['merge_ln_b']),
        'merge_w': params['merge_w'], 'merge_b': row(params['merge_b']),
        'final_ln_g': row(params['final_ln_g']),
        'final_ln_b': row(params['final_ln_b']),
        'head_w': head_w, 'head_b': row(head_b),
        'b1_bias': relative_position_bias(b1['rel_table'], 4),
        'b2_bias': relative_position_bias(b2['rel_table'], 2),
    }
    for pre, blk in (('b1_', b1), ('b2_', b2)):
        prep[pre + 'ln1_g'] = row(blk['ln1_g'])
        prep[pre + 'ln1_b'] = row(blk['ln1_b'])
        prep[pre + 'qkv_w'] = blk['qkv_w']
        prep[pre + 'qkv_b'] = row(blk['qkv_b'])
        prep[pre + 'proj_w'] = blk['proj_w']
        prep[pre + 'proj_b'] = row(blk['proj_b'])
        prep[pre + 'ln2_g'] = row(blk['ln2_g'])
        prep[pre + 'ln2_b'] = row(blk['ln2_b'])
        prep[pre + 'fc1_w'] = blk['fc1_w']
        prep[pre + 'fc1_b'] = row(blk['fc1_b'])
        prep[pre + 'fc2_w'] = blk['fc2_w']
        prep[pre + 'fc2_b'] = row(blk['fc2_b'])
    return prep


def swin_vit_forward(prep, x):
    B, C, H, W = x.shape
    P = PATCH
    gh, gw = H // P, W // P
    T1 = gh * gw
    cpp = C * P * P

    # feature_extract(): mean/std normalization is folded into patch_w/patch_b.
    # TODO(synk): the HF feature extractor's bilinear resize to 224x224 is
    #             omitted (synthetic small spatial size kept as-is).
    # Patchify (pure layout, one XLA op) feeding the single fused kernel.
    xp = x.reshape(B, C, gh, P, gw, P).transpose(0, 2, 4, 1, 3, 5)
    xp = xp.reshape(B, T1, cpp)

    full = dict(prep)
    full['merge_sel'] = _merge_selection(gh, gw)
    flat = [full[n] for n in PARAM_ORDER]

    def const_spec(a):
        nd = a.ndim
        return pl.BlockSpec(a.shape, lambda *_: (0,) * nd)

    in_specs = [pl.BlockSpec((1, T1, cpp), lambda i: (i, 0, 0))]
    in_specs += [const_spec(a) for a in flat]

    out = pl.pallas_call(
        _swin_fused_kernel,
        out_shape=jax.ShapeDtypeStruct((B, 1, NUM_CLASSES), jnp.float32),
        grid=(B,),
        in_specs=in_specs,
        out_specs=pl.BlockSpec((1, 1, NUM_CLASSES), lambda i: (i, 0, 0)),
        compiler_params=pltpu.CompilerParams(
            dimension_semantics=("parallel",)),
    )(xp, *flat)

    # Wrapper classifier nn.Linear(1000, num_classes) is folded into head_w/b.
    # (nn.Dropout(0.1) is defined in __init__ but never applied in forward.)
    return out.reshape(B, NUM_CLASSES)


# ----------------------------- parameter init -----------------------------
def init_params(key):
    keys = jax.random.split(key, 40)
    ki = iter(keys)

    def dense(shape, fan_in):
        return jax.random.normal(next(ki), shape, jnp.float32) * (1.0 / np.sqrt(fan_in))

    def block(D, heads, mlp, ws):
        return dict(
            ln1_g=jnp.ones((D,), jnp.float32), ln1_b=jnp.zeros((D,), jnp.float32),
            qkv_w=dense((D, 3 * D), D), qkv_b=jnp.zeros((3 * D,), jnp.float32),
            rel_table=0.02 * jax.random.normal(next(ki), ((2 * ws - 1) ** 2, heads),
                                               jnp.float32),
            proj_w=dense((D, D), D), proj_b=jnp.zeros((D,), jnp.float32),
            ln2_g=jnp.ones((D,), jnp.float32), ln2_b=jnp.zeros((D,), jnp.float32),
            fc1_w=dense((D, mlp), D), fc1_b=jnp.zeros((mlp,), jnp.float32),
            fc2_w=dense((mlp, D), mlp), fc2_b=jnp.zeros((D,), jnp.float32),
        )

    return dict(
        patch_w=dense((3 * PATCH * PATCH, D0), 3 * PATCH * PATCH),
        patch_b=jnp.zeros((D0,), jnp.float32),
        pe_ln_g=jnp.ones((D0,), jnp.float32), pe_ln_b=jnp.zeros((D0,), jnp.float32),
        block1=block(D0, HEADS1, MLP1, 4),
        merge_ln_g=jnp.ones((4 * D0,), jnp.float32),
        merge_ln_b=jnp.zeros((4 * D0,), jnp.float32),
        merge_w=dense((4 * D0, D1), 4 * D0), merge_b=jnp.zeros((D1,), jnp.float32),
        block2=block(D1, HEADS2, MLP2, 2),
        final_ln_g=jnp.ones((D1,), jnp.float32), final_ln_b=jnp.zeros((D1,), jnp.float32),
        head_w=dense((D1, IMAGENET_LOGITS), D1),
        head_b=jnp.zeros((IMAGENET_LOGITS,), jnp.float32),
        cls_w=dense((IMAGENET_LOGITS, NUM_CLASSES), IMAGENET_LOGITS),
        cls_b=jnp.zeros((NUM_CLASSES,), jnp.float32),
    )


if __name__ == "__main__":
    key = jax.random.PRNGKey(0)
    pkey, xkey = jax.random.split(key)
    params = init_params(pkey)
    prep = prepare_params(params)     # offline folds (done once, outside jit)

    # small NCHW image batch: B=2, C=3 (RGB), H=W=16, pixel values in [0,1)
    x = jax.random.uniform(xkey, (2, 3, 16, 16), jnp.float32)

    logits = jax.jit(swin_vit_forward)(prep, x)
    jax.block_until_ready(logits)
    assert logits.shape == (2, NUM_CLASSES), logits.shape
    assert bool(jnp.all(jnp.isfinite(logits)))
    print("KERNEL_OK")
</pallas_src>

<mosaic_0001>
module attributes {stable_mosaic.version = 11 : i64} {
  func.func @_swin_fused_kernel(%arg0: i32, %arg1: memref<1x16x48xf32, #tpu.memory_space<vmem>>, %arg2: memref<48x32xf32, #tpu.memory_space<vmem>>, %arg3: memref<1x32xf32, #tpu.memory_space<vmem>>, %arg4: memref<1x32xf32, #tpu.memory_space<vmem>>, %arg5: memref<1x32xf32, #tpu.memory_space<vmem>>, %arg6: memref<1x32xf32, #tpu.memory_space<vmem>>, %arg7: memref<1x32xf32, #tpu.memory_space<vmem>>, %arg8: memref<32x96xf32, #tpu.memory_space<vmem>>, %arg9: memref<1x96xf32, #tpu.memory_space<vmem>>, %arg10: memref<4x16x16xf32, #tpu.memory_space<vmem>>, %arg11: memref<32x32xf32, #tpu.memory_space<vmem>>, %arg12: memref<1x32xf32, #tpu.memory_space<vmem>>, %arg13: memref<1x32xf32, #tpu.memory_space<vmem>>, %arg14: memref<1x32xf32, #tpu.memory_space<vmem>>, %arg15: memref<32x64xf32, #tpu.memory_space<vmem>>, %arg16: memref<1x64xf32, #tpu.memory_space<vmem>>, %arg17: memref<64x32xf32, #tpu.memory_space<vmem>>, %arg18: memref<1x32xf32, #tpu.memory_space<vmem>>, %arg19: memref<4x4x16xf32, #tpu.memory_space<vmem>>, %arg20: memref<1x128xf32, #tpu.memory_space<vmem>>, %arg21: memref<1x128xf32, #tpu.memory_space<vmem>>, %arg22: memref<128x64xf32, #tpu.memory_space<vmem>>, %arg23: memref<1x64xf32, #tpu.memory_space<vmem>>, %arg24: memref<1x64xf32, #tpu.memory_space<vmem>>, %arg25: memref<1x64xf32, #tpu.memory_space<vmem>>, %arg26: memref<64x192xf32, #tpu.memory_space<vmem>>, %arg27: memref<1x192xf32, #tpu.memory_space<vmem>>, %arg28: memref<4x4x4xf32, #tpu.memory_space<vmem>>, %arg29: memref<64x64xf32, #tpu.memory_space<vmem>>, %arg30: memref<1x64xf32, #tpu.memory_space<vmem>>, %arg31: memref<1x64xf32, #tpu.memory_space<vmem>>, %arg32: memref<1x64xf32, #tpu.memory_space<vmem>>, %arg33: memref<64x128xf32, #tpu.memory_space<vmem>>, %arg34: memref<1x128xf32, #tpu.memory_space<vmem>>, %arg35: memref<128x64xf32, #tpu.memory_space<vmem>>, %arg36: memref<1x64xf32, #tpu.memory_space<vmem>>, %arg37: memref<1x64xf32, #tpu.memory_space<vmem>>, %arg38: memref<1x64xf32, #tpu.memory_space<vmem>>, %arg39: memref<64x5xf32, #tpu.memory_space<vmem>>, %arg40: memref<1x5xf32, #tpu.memory_space<vmem>>, %arg41: memref<1x1x5xf32, #tpu.memory_space<vmem>>) attributes {dimension_semantics = [#tpu.dimension_semantics<parallel>], iteration_bounds = array<i64: 2>, scalar_prefetch = 0 : i64, scratch_operands = 0 : i64, tpu.core_type = #tpu.core_type<tc>, window_params = [{transform_indices = @transform_0, window_bounds = array<i64: 1, 16, 48>}, {pipeline_mode = #tpu.pipeline_mode<synchronous>, transform_indices = @transform_1, window_bounds = array<i64: 48, 32>}, {pipeline_mode = #tpu.pipeline_mode<synchronous>, transform_indices = @transform_2, window_bounds = array<i64: 1, 32>}, {pipeline_mode = #tpu.pipeline_mode<synchronous>, transform_indices = @transform_3, window_bounds = array<i64: 1, 32>}, {pipeline_mode = #tpu.pipeline_mode<synchronous>, transform_indices = @transform_4, window_bounds = array<i64: 1, 32>}, {pipeline_mode = #tpu.pipeline_mode<synchronous>, transform_indices = @transform_5, window_bounds = array<i64: 1, 32>}, {pipeline_mode = #tpu.pipeline_mode<synchronous>, transform_indices = @transform_6, window_bounds = array<i64: 1, 32>}, {pipeline_mode = #tpu.pipeline_mode<synchronous>, transform_indices = @transform_7, window_bounds = array<i64: 32, 96>}, {pipeline_mode = #tpu.pipeline_mode<synchronous>, transform_indices = @transform_8, window_bounds = array<i64: 1, 96>}, {pipeline_mode = #tpu.pipeline_mode<synchronous>, transform_indices = @transform_9, window_bounds = array<i64: 4, 16, 16>}, {pipeline_mode = #tpu.pipeline_mode<synchronous>, transform_indices = @transform_10, window_bounds = array<i64: 32, 32>}, {pipeline_mode = #tpu.pipeline_mode<synchronous>, transform_indices = @transform_11, window_bounds = array<i64: 1, 32>}, {pipeline_mode = #tpu.pipeline_mode<synchronous>, transform_indices = @transform_12, window_bounds = array<i64: 1, 32>}, {pipeline_mode = #tpu.pipeline_mode<synchronous>, transform_indices = @transform_13, window_bounds = array<i64: 1, 32>}, {pipeline_mode = #tpu.pipeline_mode<synchronous>, transform_indices = @transform_14, window_bounds = array<i64: 32, 64>}, {pipeline_mode = #tpu.pipeline_mode<synchronous>, transform_indices = @transform_15, window_bounds = array<i64: 1, 64>}, {pipeline_mode = #tpu.pipeline_mode<synchronous>, transform_indices = @transform_16, window_bounds = array<i64: 64, 32>}, {pipeline_mode = #tpu.pipeline_mode<synchronous>, transform_indices = @transform_17, window_bounds = array<i64: 1, 32>}, {pipeline_mode = #tpu.pipeline_mode<synchronous>, transform_indices = @transform_18, window_bounds = array<i64: 4, 4, 16>}, {pipeline_mode = #tpu.pipeline_mode<synchronous>, transform_indices = @transform_19, window_bounds = array<i64: 1, 128>}, {pipeline_mode = #tpu.pipeline_mode<synchronous>, transform_indices = @transform_20, window_bounds = array<i64: 1, 128>}, {pipeline_mode = #tpu.pipeline_mode<synchronous>, transform_indices = @transform_21, window_bounds = array<i64: 128, 64>}, {pipeline_mode = #tpu.pipeline_mode<synchronous>, transform_indices = @transform_22, window_bounds = array<i64: 1, 64>}, {pipeline_mode = #tpu.pipeline_mode<synchronous>, transform_indices = @transform_23, window_bounds = array<i64: 1, 64>}, {pipeline_mode = #tpu.pipeline_mode<synchronous>, transform_indices = @transform_24, window_bounds = array<i64: 1, 64>}, {pipeline_mode = #tpu.pipeline_mode<synchronous>, transform_indices = @transform_25, window_bounds = array<i64: 64, 192>}, {pipeline_mode = #tpu.pipeline_mode<synchronous>, transform_indices = @transform_26, window_bounds = array<i64: 1, 192>}, {pipeline_mode = #tpu.pipeline_mode<synchronous>, transform_indices = @transform_27, window_bounds = array<i64: 4, 4, 4>}, {pipeline_mode = #tpu.pipeline_mode<synchronous>, transform_indices = @transform_28, window_bounds = array<i64: 64, 64>}, {pipeline_mode = #tpu.pipeline_mode<synchronous>, transform_indices = @transform_29, window_bounds = array<i64: 1, 64>}, {pipeline_mode = #tpu.pipeline_mode<synchronous>, transform_indices = @transform_30, window_bounds = array<i64: 1, 64>}, {pipeline_mode = #tpu.pipeline_mode<synchronous>, transform_indices = @transform_31, window_bounds = array<i64: 1, 64>}, {pipeline_mode = #tpu.pipeline_mode<synchronous>, transform_indices = @transform_32, window_bounds = array<i64: 64, 128>}, {pipeline_mode = #tpu.pipeline_mode<synchronous>, transform_indices = @transform_33, window_bounds = array<i64: 1, 128>}, {pipeline_mode = #tpu.pipeline_mode<synchronous>, transform_indices = @transform_34, window_bounds = array<i64: 128, 64>}, {pipeline_mode = #tpu.pipeline_mode<synchronous>, transform_indices = @transform_35, window_bounds = array<i64: 1, 64>}, {pipeline_mode = #tpu.pipeline_mode<synchronous>, transform_indices = @transform_36, window_bounds = array<i64: 1, 64>}, {pipeline_mode = #tpu.pipeline_mode<synchronous>, transform_indices = @transform_37, window_bounds = array<i64: 1, 64>}, {pipeline_mode = #tpu.pipeline_mode<synchronous>, transform_indices = @transform_38, window_bounds = array<i64: 64, 5>}, {pipeline_mode = #tpu.pipeline_mode<synchronous>, transform_indices = @transform_39, window_bounds = array<i64: 1, 5>}, {transform_indices = @transform_40, window_bounds = array<i64: 1, 1, 5>}]} {
    %c0 = arith.constant 0 : index
    %c0_0 = arith.constant 0 : index
    %0 = vector.load %arg2[%c0, %c0_0] : memref<48x32xf32, #tpu.memory_space<vmem>>, vector<48x32xf32>
    %c0_1 = arith.constant 0 : index
    %c0_2 = arith.constant 0 : index
    %1 = vector.load %arg3[%c0_1, %c0_2] : memref<1x32xf32, #tpu.memory_space<vmem>>, vector<1x32xf32>
    %c0_3 = arith.constant 0 : index
    %c0_4 = arith.constant 0 : index
    %2 = vector.load %arg4[%c0_3, %c0_4] : memref<1x32xf32, #tpu.memory_space<vmem>>, vector<1x32xf32>
    %c0_5 = arith.constant 0 : index
    %c0_6 = arith.constant 0 : index
    %3 = vector.load %arg5[%c0_5, %c0_6] : memref<1x32xf32, #tpu.memory_space<vmem>>, vector<1x32xf32>
    %c0_7 = arith.constant 0 : index
    %c0_8 = arith.constant 0 : index
    %4 = vector.load %arg6[%c0_7, %c0_8] : memref<1x32xf32, #tpu.memory_space<vmem>>, vector<1x32xf32>
    %c0_9 = arith.constant 0 : index
    %c0_10 = arith.constant 0 : index
    %5 = vector.load %arg7[%c0_9, %c0_10] : memref<1x32xf32, #tpu.memory_space<vmem>>, vector<1x32xf32>
    %c0_11 = arith.constant 0 : index
    %c0_12 = arith.constant 0 : index
    %6 = vector.load %arg8[%c0_11, %c0_12] : memref<32x96xf32, #tpu.memory_space<vmem>>, vector<32x96xf32>
    %c0_13 = arith.constant 0 : index
    %c0_14 = arith.constant 0 : index
    %7 = vector.load %arg9[%c0_13, %c0_14] : memref<1x96xf32, #tpu.memory_space<vmem>>, vector<1x96xf32>
    %c0_15 = arith.constant 0 : index
    %c0_16 = arith.constant 0 : index
    %8 = vector.load %arg11[%c0_15, %c0_16] : memref<32x32xf32, #tpu.memory_space<vmem>>, vector<32x32xf32>
    %c0_17 = arith.constant 0 : index
    %c0_18 = arith.constant 0 : index
    %9 = vector.load %arg12[%c0_17, %c0_18] : memref<1x32xf32, #tpu.memory_space<vmem>>, vector<1x32xf32>
    %c0_19 = arith.constant 0 : index
    %c0_20 = arith.constant 0 : index
    %10 = vector.load %arg13[%c0_19, %c0_20] : memref<1x32xf32, #tpu.memory_space<vmem>>, vector<1x32xf32>
    %c0_21 = arith.constant 0 : index
    %c0_22 = arith.constant 0 : index
    %11 = vector.load %arg14[%c0_21, %c0_22] : memref<1x32xf32, #tpu.memory_space<vmem>>, vector<1x32xf32>
    %c0_23 = arith.constant 0 : index
    %c0_24 = arith.constant 0 : index
    %12 = vector.load %arg15[%c0_23, %c0_24] : memref<32x64xf32, #tpu.memory_space<vmem>>, vector<32x64xf32>
    %c0_25 = arith.constant 0 : index
    %c0_26 = arith.constant 0 : index
    %13 = vector.load %arg16[%c0_25, %c0_26] : memref<1x64xf32, #tpu.memory_space<vmem>>, vector<1x64xf32>
    %c0_27 = arith.constant 0 : index
    %c0_28 = arith.constant 0 : index
    %14 = vector.load %arg17[%c0_27, %c0_28] : memref<64x32xf32, #tpu.memory_space<vmem>>, vector<64x32xf32>
    %c0_29 = arith.constant 0 : index
    %c0_30 = arith.constant 0 : index
    %15 = vector.load %arg18[%c0_29, %c0_30] : memref<1x32xf32, #tpu.memory_space<vmem>>, vector<1x32xf32>
    %c0_31 = arith.constant 0 : index
    %c0_32 = arith.constant 0 : index
    %16 = vector.load %arg20[%c0_31, %c0_32] : memref<1x128xf32, #tpu.memory_space<vmem>>, vector<1x128xf32>
    %c0_33 = arith.constant 0 : index
    %c0_34 = arith.constant 0 : index
    %17 = vector.load %arg21[%c0_33, %c0_34] : memref<1x128xf32, #tpu.memory_space<vmem>>, vector<1x128xf32>
    %c0_35 = arith.constant 0 : index
    %c0_36 = arith.constant 0 : index
    %18 = vector.load %arg22[%c0_35, %c0_36] : memref<128x64xf32, #tpu.memory_space<vmem>>, vector<128x64xf32>
    %c0_37 = arith.constant 0 : index
    %c0_38 = arith.constant 0 : index
    %19 = vector.load %arg23[%c0_37, %c0_38] : memref<1x64xf32, #tpu.memory_space<vmem>>, vector<1x64xf32>
    %c0_39 = arith.constant 0 : index
    %c0_40 = arith.constant 0 : index
    %20 = vector.load %arg24[%c0_39, %c0_40] : memref<1x64xf32, #tpu.memory_space<vmem>>, vector<1x64xf32>
    %c0_41 = arith.constant 0 : index
    %c0_42 = arith.constant 0 : index
    %21 = vector.load %arg25[%c0_41, %c0_42] : memref<1x64xf32, #tpu.memory_space<vmem>>, vector<1x64xf32>
    %c0_43 = arith.constant 0 : index
    %c0_44 = arith.constant 0 : index
    %22 = vector.load %arg26[%c0_43, %c0_44] : memref<64x192xf32, #tpu.memory_space<vmem>>, vector<64x192xf32>
    %c0_45 = arith.constant 0 : index
    %c0_46 = arith.constant 0 : index
    %23 = vector.load %arg27[%c0_45, %c0_46] : memref<1x192xf32, #tpu.memory_space<vmem>>, vector<1x192xf32>
    %c0_47 = arith.constant 0 : index
    %c0_48 = arith.constant 0 : index
    %24 = vector.load %arg29[%c0_47, %c0_48] : memref<64x64xf32, #tpu.memory_space<vmem>>, vector<64x64xf32>
    %c0_49 = arith.constant 0 : index
    %c0_50 = arith.constant 0 : index
    %25 = vector.load %arg30[%c0_49, %c0_50] : memref<1x64xf32, #tpu.memory_space<vmem>>, vector<1x64xf32>
    %c0_51 = arith.constant 0 : index
    %c0_52 = arith.constant 0 : index
    %26 = vector.load %arg31[%c0_51, %c0_52] : memref<1x64xf32, #tpu.memory_space<vmem>>, vector<1x64xf32>
    %c0_53 = arith.constant 0 : index
    %c0_54 = arith.constant 0 : index
    %27 = vector.load %arg32[%c0_53, %c0_54] : memref<1x64xf32, #tpu.memory_space<vmem>>, vector<1x64xf32>
    %c0_55 = arith.constant 0 : index
    %c0_56 = arith.constant 0 : index
    %28 = vector.load %arg33[%c0_55, %c0_56] : memref<64x128xf32, #tpu.memory_space<vmem>>, vector<64x128xf32>
    %c0_57 = arith.constant 0 : index
    %c0_58 = arith.constant 0 : index
    %29 = vector.load %arg34[%c0_57, %c0_58] : memref<1x128xf32, #tpu.memory_space<vmem>>, vector<1x128xf32>
    %c0_59 = arith.constant 0 : index
    %c0_60 = arith.constant 0 : index
    %30 = vector.load %arg35[%c0_59, %c0_60] : memref<128x64xf32, #tpu.memory_space<vmem>>, vector<128x64xf32>
    %c0_61 = arith.constant 0 : index
    %c0_62 = arith.constant 0 : index
    %31 = vector.load %arg36[%c0_61, %c0_62] : memref<1x64xf32, #tpu.memory_space<vmem>>, vector<1x64xf32>
    %c0_63 = arith.constant 0 : index
    %c0_64 = arith.constant 0 : index
    %32 = vector.load %arg37[%c0_63, %c0_64] : memref<1x64xf32, #tpu.memory_space<vmem>>, vector<1x64xf32>
    %c0_65 = arith.constant 0 : index
    %c0_66 = arith.constant 0 : index
    %33 = vector.load %arg38[%c0_65, %c0_66] : memref<1x64xf32, #tpu.memory_space<vmem>>, vector<1x64xf32>
    %c0_67 = arith.constant 0 : index
    %c0_68 = arith.constant 0 : index
    %34 = vector.load %arg39[%c0_67, %c0_68] : memref<64x5xf32, #tpu.memory_space<vmem>>, vector<64x5xf32>
    %c0_69 = arith.constant 0 : index
    %c0_70 = arith.constant 0 : index
    %35 = vector.load %arg40[%c0_69, %c0_70] : memref<1x5xf32, #tpu.memory_space<vmem>>, vector<1x5xf32>
    %c0_71 = arith.constant 0 : index
    %c0_72 = arith.constant 0 : index
    %c0_73 = arith.constant 0 : index
    %36 = vector.load %arg1[%c0_71, %c0_72, %c0_73] : memref<1x16x48xf32, #tpu.memory_space<vmem>>, vector<1x16x48xf32>
    %37 = vector.shape_cast %36 : vector<1x16x48xf32> to vector<16x48xf32>
    %cst = arith.constant dense<0.000000e+00> : vector<16x32xf32>
    %38 = tpu.matmul %37, %0, %cst {dimension_numbers = #tpu.dot_dimension_numbers<[1], [0], [0], [1], [0, 0, 1, 1], [], []>} : vector<16x48xf32>, vector<48x32xf32>, vector<16x32xf32> -> vector<16x32xf32>
    %39 = vector.broadcast %1 : vector<1x32xf32> to vector<16x32xf32>
    %40 = arith.addf %38, %39 : vector<16x32xf32>
    %cst_74 = arith.constant dense<0.000000e+00> : vector<16xf32>
    %41 = vector.multi_reduction <add>, %40, %cst_74 [1] : vector<16x32xf32> to vector<16xf32>
    %42 = vector.shape_cast %41 : vector<16xf32> to vector<16x1xf32>
    %cst_75 = arith.constant 3.200000e+01 : f32
    %43 = vector.broadcast %cst_75 : f32 to vector<16x1xf32>
    %44 = arith.divf %42, %43 : vector<16x1xf32>
    %45 = vector.broadcast %44 : vector<16x1xf32> to vector<16x32xf32>
    %46 = arith.subf %40, %45 : vector<16x32xf32>
    %47 = arith.mulf %46, %46 : vector<16x32xf32>
    %cst_76 = arith.constant dense<0.000000e+00> : vector<16xf32>
    %48 = vector.multi_reduction <add>, %47, %cst_76 [1] : vector<16x32xf32> to vector<16xf32>
    %49 = vector.shape_cast %48 : vector<16xf32> to vector<16x1xf32>
    %cst_77 = arith.constant 3.200000e+01 : f32
    %50 = vector.broadcast %cst_77 : f32 to vector<16x1xf32>
    %51 = arith.divf %49, %50 : vector<16x1xf32>
    %52 = vector.broadcast %44 : vector<16x1xf32> to vector<16x32xf32>
    %53 = arith.subf %40, %52 : vector<16x32xf32>
    %cst_78 = arith.constant 9.99999974E-6 : f32
    %54 = vector.broadcast %cst_78 : f32 to vector<16x1xf32>
    %55 = arith.addf %51, %54 : vector<16x1xf32>
    %56 = math.rsqrt %55 : vector<16x1xf32>
    %57 = vector.broadcast %56 : vector<16x1xf32> to vector<16x32xf32>
    %58 = arith.mulf %53, %57 : vector<16x32xf32>
    %59 = vector.broadcast %2 : vector<1x32xf32> to vector<16x32xf32>
    %60 = arith.mulf %58, %59 : vector<16x32xf32>
    %61 = vector.broadcast %3 : vector<1x32xf32> to vector<16x32xf32>
    %62 = arith.addf %60, %61 : vector<16x32xf32>
    %cst_79 = arith.constant dense<0.000000e+00> : vector<16xf32>
    %63 = vector.multi_reduction <add>, %62, %cst_79 [1] : vector<16x32xf32> to vector<16xf32>
    %64 = vector.shape_cast %63 : vector<16xf32> to vector<16x1xf32>
    %cst_80 = arith.constant 3.200000e+01 : f32
    %65 = vector.broadcast %cst_80 : f32 to vector<16x1xf32>
    %66 = arith.divf %64, %65 : vector<16x1xf32>
    %67 = vector.broadcast %66 : vector<16x1xf32> to vector<16x32xf32>
    %68 = arith.subf %62, %67 : vector<16x32xf32>
    %69 = arith.mulf %68, %68 : vector<16x32xf32>
    %cst_81 = arith.constant dense<0.000000e+00> : vector<16xf32>
    %70 = vector.multi_reduction <add>, %69, %cst_81 [1] : vector<16x32xf32> to vector<16xf32>
    %71 = vector.shape_cast %70 : vector<16xf32> to vector<16x1xf32>
    %cst_82 = arith.constant 3.200000e+01 : f32
    %72 = vector.broadcast %cst_82 : f32 to vector<16x1xf32>
    %73 = arith.divf %71, %72 : vector<16x1xf32>
    %74 = vector.broadcast %66 : vector<16x1xf32> to vector<16x32xf32>
    %75 = arith.subf %62, %74 : vector<16x32xf32>
    %cst_83 = arith.constant 9.99999974E-6 : f32
    %76 = vector.broadcast %cst_83 : f32 to vector<16x1xf32>
    %77 = arith.addf %73, %76 : vector<16x1xf32>
    %78 = math.rsqrt %77 : vector<16x1xf32>
    %79 = vector.broadcast %78 : vector<16x1xf32> to vector<16x32xf32>
    %80 = arith.mulf %75, %79 : vector<16x32xf32>
    %81 = vector.broadcast %4 : vector<1x32xf32> to vector<16x32xf32>
    %82 = arith.mulf %80, %81 : vector<16x32xf32>
    %83 = vector.broadcast %5 : vector<1x32xf32> to vector<16x32xf32>
    %84 = arith.addf %82, %83 : vector<16x32xf32>
    %cst_84 = arith.constant dense<0.000000e+00> : vector<16x96xf32>
    %85 = tpu.matmul %84, %6, %cst_84 {dimension_numbers = #tpu.dot_dimension_numbers<[1], [0], [0], [1], [0, 0, 1, 1], [], []>} : vector<16x32xf32>, vector<32x96xf32>, vector<16x96xf32> -> vector<16x96xf32>
    %86 = vector.broadcast %7 : vector<1x96xf32> to vector<16x96xf32>
    %87 = arith.addf %85, %86 : vector<16x96xf32>
    %88 = vector.extract_strided_slice %87 {offsets = [0, 0], sizes = [16, 8], strides = [1, 1]} : vector<16x96xf32> to vector<16x8xf32>
    %cst_85 = arith.constant 0.353553385 : f32
    %89 = vector.broadcast %cst_85 : f32 to vector<16x8xf32>
    %90 = arith.mulf %88, %89 : vector<16x8xf32>
    %91 = vector.extract_strided_slice %87 {offsets = [0, 32], sizes = [16, 8], strides = [1, 1]} : vector<16x96xf32> to vector<16x8xf32>
    %92 = vector.extract_strided_slice %87 {offsets = [0, 64], sizes = [16, 8], strides = [1, 1]} : vector<16x96xf32> to vector<16x8xf32>
    %cst_86 = arith.constant dense<0.000000e+00> : vector<16x16xf32>
    %93 = tpu.matmul %90, %91, %cst_86 {dimension_numbers = #tpu.dot_dimension_numbers<[1], [1], [0], [0], [0, 0, 1, 0], [], []>} : vector<16x8xf32>, vector<16x8xf32>, vector<16x16xf32> -> vector<16x16xf32>
    %c0_87 = arith.constant 0 : index
    %c0_88 = arith.constant 0 : index
    %c0_89 = arith.constant 0 : index
    %94 = vector.load %arg10[%c0_87, %c0_88, %c0_89] : memref<4x16x16xf32, #tpu.memory_space<vmem>>, vector<1x16x16xf32>
    %95 = vector.shape_cast %94 : vector<1x16x16xf32> to vector<16x16xf32>
    %96 = arith.addf %93, %95 : vector<16x16xf32>
    %cst_90 = arith.constant dense<0xFF800000> : vector<16xf32>
    %97 = vector.multi_reduction <maximumf>, %96, %cst_90 [1] : vector<16x16xf32> to vector<16xf32>
    %98 = vector.shape_cast %97 : vector<16xf32> to vector<16x1xf32>
    %99 = vector.broadcast %98 : vector<16x1xf32> to vector<16x16xf32>
    %100 = arith.subf %96, %99 : vector<16x16xf32>
    %101 = math.exp %100 : vector<16x16xf32>
    %cst_91 = arith.constant dense<0.000000e+00> : vector<16xf32>
    %102 = vector.multi_reduction <add>, %101, %cst_91 [1] : vector<16x16xf32> to vector<16xf32>
    %103 = vector.shape_cast %102 : vector<16xf32> to vector<16x1xf32>
    %104 = tpu.reciprocal %103 {approx = true} : vector<16x1xf32> -> vector<16x1xf32>
    %105 = vector.broadcast %104 : vector<16x1xf32> to vector<16x16xf32>
    %106 = arith.mulf %101, %105 : vector<16x16xf32>
    %cst_92 = arith.constant dense<0.000000e+00> : vector<16x8xf32>
    %107 = tpu.matmul %106, %92, %cst_92 {dimension_numbers = #tpu.dot_dimension_numbers<[1], [0], [0], [1], [0, 0, 1, 1], [], []>} : vector<16x16xf32>, vector<16x8xf32>, vector<16x8xf32> -> vector<16x8xf32>
    %108 = vector.extract_strided_slice %8 {offsets = [0, 0], sizes = [8, 32], strides = [1, 1]} : vector<32x32xf32> to vector<8x32xf32>
    %cst_93 = arith.constant dense<0.000000e+00> : vector<16x32xf32>
    %109 = tpu.matmul %107, %108, %cst_93 {dimension_numbers = #tpu.dot_dimension_numbers<[1], [0], [0], [1], [0, 0, 1, 1], [], []>} : vector<16x8xf32>, vector<8x32xf32>, vector<16x32xf32> -> vector<16x32xf32>
    %110 = vector.extract_strided_slice %87 {offsets = [0, 8], sizes = [16, 8], strides = [1, 1]} : vector<16x96xf32> to vector<16x8xf32>
    %cst_94 = arith.constant 0.353553385 : f32
    %111 = vector.broadcast %cst_94 : f32 to vector<16x8xf32>
    %112 = arith.mulf %110, %111 : vector<16x8xf32>
    %113 = vector.extract_strided_slice %87 {offsets = [0, 40], sizes = [16, 8], strides = [1, 1]} : vector<16x96xf32> to vector<16x8xf32>
    %114 = vector.extract_strided_slice %87 {offsets = [0, 72], sizes = [16, 8], strides = [1, 1]} : vector<16x96xf32> to vector<16x8xf32>
    %cst_95 = arith.constant dense<0.000000e+00> : vector<16x16xf32>
    %115 = tpu.matmul %112, %113, %cst_95 {dimension_numbers = #tpu.dot_dimension_numbers<[1], [1], [0], [0], [0, 0, 1, 0], [], []>} : vector<16x8xf32>, vector<16x8xf32>, vector<16x16xf32> -> vector<16x16xf32>
    %c1 = arith.constant 1 : index
    %c0_96 = arith.constant 0 : index
    %c0_97 = arith.constant 0 : index
    %116 = vector.load %arg10[%c1, %c0_96, %c0_97] : memref<4x16x16xf32, #tpu.memory_space<vmem>>, vector<1x16x16xf32>
    %117 = vector.shape_cast %116 : vector<1x16x16xf32> to vector<16x16xf32>
    %118 = arith.addf %115, %117 : vector<16x16xf32>
    %cst_98 = arith.constant dense<0xFF800000> : vector<16xf32>
    %119 = vector.multi_reduction <maximumf>, %118, %cst_98 [1] : vector<16x16xf32> to vector<16xf32>
    %120 = vector.shape_cast %119 : vector<16xf32> to vector<16x1xf32>
    %121 = vector.broadcast %120 : vector<16x1xf32> to vector<16x16xf32>
    %122 = arith.subf %118, %121 : vector<16x16xf32>
    %123 = math.exp %122 : vector<16x16xf32>
    %cst_99 = arith.constant dense<0.000000e+00> : vector<16xf32>
    %124 = vector.multi_reduction <add>, %123, %cst_99 [1] : vector<16x16xf32> to vector<16xf32>
    %125 = vector.shape_cast %124 : vector<16xf32> to vector<16x1xf32>
    %126 = tpu.reciprocal %125 {approx = true} : vector<16x1xf32> -> vector<16x1xf32>
    %127 = vector.broadcast %126 : vector<16x1xf32> to vector<16x16xf32>
    %128 = arith.mulf %123, %127 : vector<16x16xf32>
    %cst_100 = arith.constant dense<0.000000e+00> : vector<16x8xf32>
    %129 = tpu.matmul %128, %114, %cst_100 {dimension_numbers = #tpu.dot_dimension_numbers<[1], [0], [0], [1], [0, 0, 1, 1], [], []>} : vector<16x16xf32>, vector<16x8xf32>, vector<16x8xf32> -> vector<16x8xf32>
    %130 = vector.extract_strided_slice %8 {offsets = [8, 0], sizes = [8, 32], strides = [1, 1]} : vector<32x32xf32> to vector<8x32xf32>
    %cst_101 = arith.constant dense<0.000000e+00> : vector<16x32xf32>
    %131 = tpu.matmul %129, %130, %cst_101 {dimension_numbers = #tpu.dot_dimension_numbers<[1], [0], [0], [1], [0, 0, 1, 1], [], []>} : vector<16x8xf32>, vector<8x32xf32>, vector<16x32xf32> -> vector<16x32xf32>
    %132 = arith.addf %109, %131 : vector<16x32xf32>
    %133 = vector.extract_strided_slice %87 {offsets = [0, 16], sizes = [16, 8], strides = [1, 1]} : vector<16x96xf32> to vector<16x8xf32>
    %cst_102 = arith.constant 0.353553385 : f32
    %134 = vector.broadcast %cst_102 : f32 to vector<16x8xf32>
    %135 = arith.mulf %133, %134 : vector<16x8xf32>
    %136 = vector.extract_strided_slice %87 {offsets = [0, 48], sizes = [16, 8], strides = [1, 1]} : vector<16x96xf32> to vector<16x8xf32>
    %137 = vector.extract_strided_slice %87 {offsets = [0, 80], sizes = [16, 8], strides = [1, 1]} : vector<16x96xf32> to vector<16x8xf32>
    %cst_103 = arith.constant dense<0.000000e+00> : vector<16x16xf32>
    %138 = tpu.matmul %135, %136, %cst_103 {dimension_numbers = #tpu.dot_dimension_numbers<[1], [1], [0], [0], [0, 0, 1, 0], [], []>} : vector<16x8xf32>, vector<16x8xf32>, vector<16x16xf32> -> vector<16x16xf32>
    %c2 = arith.constant 2 : index
    %c0_104 = arith.constant 0 : index
    %c0_105 = arith.constant 0 : index
    %139 = vector.load %arg10[%c2, %c0_104, %c0_105] : memref<4x16x16xf32, #tpu.memory_space<vmem>>, vector<1x16x16xf32>
    %140 = vector.shape_cast %139 : vector<1x16x16xf32> to vector<16x16xf32>
    %141 = arith.addf %138, %140 : vector<16x16xf32>
    %cst_106 = arith.constant dense<0xFF800000> : vector<16xf32>
    %142 = vector.multi_reduction <maximumf>, %141, %cst_106 [1] : vector<16x16xf32> to vector<16xf32>
    %143 = vector.shape_cast %142 : vector<16xf32> to vector<16x1xf32>
    %144 = vector.broadcast %143 : vector<16x1xf32> to vector<16x16xf32>
    %145 = arith.subf %141, %144 : vector<16x16xf32>
    %146 = math.exp %145 : vector<16x16xf32>
    %cst_107 = arith.constant dense<0.000000e+00> : vector<16xf32>
    %147 = vector.multi_reduction <add>, %146, %cst_107 [1] : vector<16x16xf32> to vector<16xf32>
    %148 = vector.shape_cast %147 : vector<16xf32> to vector<16x1xf32>
    %149 = tpu.reciprocal %148 {approx = true} : vector<16x1xf32> -> vector<16x1xf32>
    %150 = vector.broadcast %149 : vector<16x1xf32> to vector<16x16xf32>
    %151 = arith.mulf %146, %150 : vector<16x16xf32>
    %cst_108 = arith.constant dense<0.000000e+00> : vector<16x8xf32>
    %152 = tpu.matmul %151, %137, %cst_108 {dimension_numbers = #tpu.dot_dimension_numbers<[1], [0], [0], [1], [0, 0, 1, 1], [], []>} : vector<16x16xf32>, vector<16x8xf32>, vector<16x8xf32> -> vector<16x8xf32>
    %153 = vector.extract_strided_slice %8 {offsets = [16, 0], sizes = [8, 32], strides = [1, 1]} : vector<32x32xf32> to vector<8x32xf32>
    %cst_109 = arith.constant dense<0.000000e+00> : vector<16x32xf32>
    %154 = tpu.matmul %152, %153, %cst_109 {dimension_numbers = #tpu.dot_dimension_numbers<[1], [0], [0], [1], [0, 0, 1, 1], [], []>} : vector<16x8xf32>, vector<8x32xf32>, vector<16x32xf32> -> vector<16x32xf32>
    %155 = arith.addf %132, %154 : vector<16x32xf32>
    %156 = vector.extract_strided_slice %87 {offsets = [0, 24], sizes = [16, 8], strides = [1, 1]} : vector<16x96xf32> to vector<16x8xf32>
    %cst_110 = arith.constant 0.353553385 : f32
    %157 = vector.broadcast %cst_110 : f32 to vector<16x8xf32>
    %158 = arith.mulf %156, %157 : vector<16x8xf32>
    %159 = vector.extract_strided_slice %87 {offsets = [0, 56], sizes = [16, 8], strides = [1, 1]} : vector<16x96xf32> to vector<16x8xf32>
    %160 = vector.extract_strided_slice %87 {offsets = [0, 88], sizes = [16, 8], strides = [1, 1]} : vector<16x96xf32> to vector<16x8xf32>
    %cst_111 = arith.constant dense<0.000000e+00> : vector<16x16xf32>
    %161 = tpu.matmul %158, %159, %cst_111 {dimension_numbers = #tpu.dot_dimension_numbers<[1], [1], [0], [0], [0, 0, 1, 0], [], []>} : vector<16x8xf32>, vector<16x8xf32>, vector<16x16xf32> -> vector<16x16xf32>
    %c3 = arith.constant 3 : index
    %c0_112 = arith.constant 0 : index
    %c0_113 = arith.constant 0 : index
    %162 = vector.load %arg10[%c3, %c0_112, %c0_113] : memref<4x16x16xf32, #tpu.memory_space<vmem>>, vector<1x16x16xf32>
    %163 = vector.shape_cast %162 : vector<1x16x16xf32> to vector<16x16xf32>
    %164 = arith.addf %161, %163 : vector<16x16xf32>
    %cst_114 = arith.constant dense<0xFF800000> : vector<16xf32>
    %165 = vector.multi_reduction <maximumf>, %164, %cst_114 [1] : vector<16x16xf32> to vector<16xf32>
    %166 = vector.shape_cast %165 : vector<16xf32> to vector<16x1xf32>
    %167 = vector.broadcast %166 : vector<16x1xf32> to vector<16x16xf32>
    %168 = arith.subf %164, %167 : vector<16x16xf32>
    %169 = math.exp %168 : vector<16x16xf32>
    %cst_115 = arith.constant dense<0.000000e+00> : vector<16xf32>
    %170 = vector.multi_reduction <add>, %169, %cst_115 [1] : vector<16x16xf32> to vector<16xf32>
    %171 = vector.shape_cast %170 : vector<16xf32> to vector<16x1xf32>
    %172 = tpu.reciprocal %171 {approx = true} : vector<16x1xf32> -> vector<16x1xf32>
    %173 = vector.broadcast %172 : vector<16x1xf32> to vector<16x16xf32>
    %174 = arith.mulf %169, %173 : vector<16x16xf32>
    %cst_116 = arith.constant dense<0.000000e+00> : vector<16x8xf32>
    %175 = tpu.matmul %174, %160, %cst_116 {dimension_numbers = #tpu.dot_dimension_numbers<[1], [0], [0], [1], [0, 0, 1, 1], [], []>} : vector<16x16xf32>, vector<16x8xf32>, vector<16x8xf32> -> vector<16x8xf32>
    %176 = vector.extract_strided_slice %8 {offsets = [24, 0], sizes = [8, 32], strides = [1, 1]} : vector<32x32xf32> to vector<8x32xf32>
    %cst_117 = arith.constant dense<0.000000e+00> : vector<16x32xf32>
    %177 = tpu.matmul %175, %176, %cst_117 {dimension_numbers = #tpu.dot_dimension_numbers<[1], [0], [0], [1], [0, 0, 1, 1], [], []>} : vector<16x8xf32>, vector<8x32xf32>, vector<16x32xf32> -> vector<16x32xf32>
    %178 = arith.addf %155, %177 : vector<16x32xf32>
    %179 = arith.addf %62, %178 : vector<16x32xf32>
    %180 = vector.broadcast %9 : vector<1x32xf32> to vector<16x32xf32>
    %181 = arith.addf %179, %180 : vector<16x32xf32>
    %cst_118 = arith.constant dense<0.000000e+00> : vector<16xf32>
    %182 = vector.multi_reduction <add>, %181, %cst_118 [1] : vector<16x32xf32> to vector<16xf32>
    %183 = vector.shape_cast %182 : vector<16xf32> to vector<16x1xf32>
    %cst_119 = arith.constant 3.200000e+01 : f32
    %184 = vector.broadcast %cst_119 : f32 to vector<16x1xf32>
    %185 = arith.divf %183, %184 : vector<16x1xf32>
    %186 = vector.broadcast %185 : vector<16x1xf32> to vector<16x32xf32>
    %187 = arith.subf %181, %186 : vector<16x32xf32>
    %188 = arith.mulf %187, %187 : vector<16x32xf32>
    %cst_120 = arith.constant dense<0.000000e+00> : vector<16xf32>
    %189 = vector.multi_reduction <add>, %188, %cst_120 [1] : vector<16x32xf32> to vector<16xf32>
    %190 = vector.shape_cast %189 : vector<16xf32> to vector<16x1xf32>
    %cst_121 = arith.constant 3.200000e+01 : f32
    %191 = vector.broadcast %cst_121 : f32 to vector<16x1xf32>
    %192 = arith.divf %190, %191 : vector<16x1xf32>
    %193 = vector.broadcast %185 : vector<16x1xf32> to vector<16x32xf32>
    %194 = arith.subf %181, %193 : vector<16x32xf32>
    %cst_122 = arith.constant 9.99999974E-6 : f32
    %195 = vector.broadcast %cst_122 : f32 to vector<16x1xf32>
    %196 = arith.addf %192, %195 : vector<16x1xf32>
    %197 = math.rsqrt %196 : vector<16x1xf32>
    %198 = vector.broadcast %197 : vector<16x1xf32> to vector<16x32xf32>
    %199 = arith.mulf %194, %198 : vector<16x32xf32>
    %200 = vector.broadcast %10 : vector<1x32xf32> to vector<16x32xf32>
    %201 = arith.mulf %199, %200 : vector<16x32xf32>
    %202 = vector.broadcast %11 : vector<1x32xf32> to vector<16x32xf32>
    %203 = arith.addf %201, %202 : vector<16x32xf32>
    %cst_123 = arith.constant dense<0.000000e+00> : vector<16x64xf32>
    %204 = tpu.matmul %203, %12, %cst_123 {dimension_numbers = #tpu.dot_dimension_numbers<[1], [0], [0], [1], [0, 0, 1, 1], [], []>} : vector<16x32xf32>, vector<32x64xf32>, vector<16x64xf32> -> vector<16x64xf32>
    %205 = vector.broadcast %13 : vector<1x64xf32> to vector<16x64xf32>
    %206 = arith.addf %204, %205 : vector<16x64xf32>
    %207 = arith.mulf %206, %206 : vector<16x64xf32>
    %208 = arith.mulf %206, %207 : vector<16x64xf32>
    %cst_124 = arith.constant 4.471500e-02 : f32
    %209 = vector.broadcast %cst_124 : f32 to vector<16x64xf32>
    %210 = arith.mulf %209, %208 : vector<16x64xf32>
    %211 = arith.addf %206, %210 : vector<16x64xf32>
    %cst_125 = arith.constant 0.797884583 : f32
    %212 = vector.broadcast %cst_125 : f32 to vector<16x64xf32>
    %213 = arith.mulf %212, %211 : vector<16x64xf32>
    %214 = math.tanh %213 : vector<16x64xf32>
    %cst_126 = arith.constant 1.000000e+00 : f32
    %215 = vector.broadcast %cst_126 : f32 to vector<16x64xf32>
    %216 = arith.addf %215, %214 : vector<16x64xf32>
    %cst_127 = arith.constant 5.000000e-01 : f32
    %217 = vector.broadcast %cst_127 : f32 to vector<16x64xf32>
    %218 = arith.mulf %217, %216 : vector<16x64xf32>
    %219 = arith.mulf %206, %218 : vector<16x64xf32>
    %cst_128 = arith.constant dense<0.000000e+00> : vector<16x32xf32>
    %220 = tpu.matmul %219, %14, %cst_128 {dimension_numbers = #tpu.dot_dimension_numbers<[1], [0], [0], [1], [0, 0, 1, 1], [], []>} : vector<16x64xf32>, vector<64x32xf32>, vector<16x32xf32> -> vector<16x32xf32>
    %221 = vector.broadcast %15 : vector<1x32xf32> to vector<16x32xf32>
    %222 = arith.addf %220, %221 : vector<16x32xf32>
    %223 = arith.addf %181, %222 : vector<16x32xf32>
    %c0_129 = arith.constant 0 : index
    %c0_130 = arith.constant 0 : index
    %c0_131 = arith.constant 0 : index
    %224 = vector.load %arg19[%c0_129, %c0_130, %c0_131] : memref<4x4x16xf32, #tpu.memory_space<vmem>>, vector<1x4x16xf32>
    %225 = vector.shape_cast %224 : vector<1x4x16xf32> to vector<4x16xf32>
    %cst_132 = arith.constant dense<0.000000e+00> : vector<4x32xf32>
    %226 = tpu.matmul %225, %223, %cst_132 {dimension_numbers = #tpu.dot_dimension_numbers<[1], [0], [0], [1], [0, 0, 1, 1], [], []>} : vector<4x16xf32>, vector<16x32xf32>, vector<4x32xf32> -> vector<4x32xf32>
    %c1_133 = arith.constant 1 : index
    %c0_134 = arith.constant 0 : index
    %c0_135 = arith.constant 0 : index
    %227 = vector.load %arg19[%c1_133, %c0_134, %c0_135] : memref<4x4x16xf32, #tpu.memory_space<vmem>>, vector<1x4x16xf32>
    %228 = vector.shape_cast %227 : vector<1x4x16xf32> to vector<4x16xf32>
    %cst_136 = arith.constant dense<0.000000e+00> : vector<4x32xf32>
    %229 = tpu.matmul %228, %223, %cst_136 {dimension_numbers = #tpu.dot_dimension_numbers<[1], [0], [0], [1], [0, 0, 1, 1], [], []>} : vector<4x16xf32>, vector<16x32xf32>, vector<4x32xf32> -> vector<4x32xf32>
    %c2_137 = arith.constant 2 : index
    %c0_138 = arith.constant 0 : index
    %c0_139 = arith.constant 0 : index
    %230 = vector.load %arg19[%c2_137, %c0_138, %c0_139] : memref<4x4x16xf32, #tpu.memory_space<vmem>>, vector<1x4x16xf32>
    %231 = vector.shape_cast %230 : vector<1x4x16xf32> to vector<4x16xf32>
    %cst_140 = arith.constant dense<0.000000e+00> : vector<4x32xf32>
    %232 = tpu.matmul %231, %223, %cst_140 {dimension_numbers = #tpu.dot_dimension_numbers<[1], [0], [0], [1], [0, 0, 1, 1], [], []>} : vector<4x16xf32>, vector<16x32xf32>, vector<4x32xf32> -> vector<4x32xf32>
    %c3_141 = arith.constant 3 : index
    %c0_142 = arith.constant 0 : index
    %c0_143 = arith.constant 0 : index
    %233 = vector.load %arg19[%c3_141, %c0_142, %c0_143] : memref<4x4x16xf32, #tpu.memory_space<vmem>>, vector<1x4x16xf32>
    %234 = vector.shape_cast %233 : vector<1x4x16xf32> to vector<4x16xf32>
    %cst_144 = arith.constant dense<0.000000e+00> : vector<4x32xf32>
    %235 = tpu.matmul %234, %223, %cst_144 {dimension_numbers = #tpu.dot_dimension_numbers<[1], [0], [0], [1], [0, 0, 1, 1], [], []>} : vector<4x16xf32>, vector<16x32xf32>, vector<4x32xf32> -> vector<4x32xf32>
    %236 = tpu.concatenate %226, %229, %232, %235 in 1 : vector<4x32xf32>, vector<4x32xf32>, vector<4x32xf32>, vector<4x32xf32> -> vector<4x128xf32>
    %cst_145 = arith.constant dense<0.000000e+00> : vector<4xf32>
    %237 = vector.multi_reduction <add>, %236, %cst_145 [1] : vector<4x128xf32> to vector<4xf32>
    %238 = vector.shape_cast %237 : vector<4xf32> to vector<4x1xf32>
    %cst_146 = arith.constant 1.280000e+02 : f32
    %239 = vector.broadcast %cst_146 : f32 to vector<4x1xf32>
    %240 = arith.divf %238, %239 : vector<4x1xf32>
    %241 = vector.broadcast %240 : vector<4x1xf32> to vector<4x128xf32>
    %242 = arith.subf %236, %241 : vector<4x128xf32>
    %243 = arith.mulf %242, %242 : vector<4x128xf32>
    %cst_147 = arith.constant dense<0.000000e+00> : vector<4xf32>
    %244 = vector.multi_reduction <add>, %243, %cst_147 [1] : vector<4x128xf32> to vector<4xf32>
    %245 = vector.shape_cast %244 : vector<4xf32> to vector<4x1xf32>
    %cst_148 = arith.constant 1.280000e+02 : f32
    %246 = vector.broadcast %cst_148 : f32 to vector<4x1xf32>
    %247 = arith.divf %245, %246 : vector<4x1xf32>
    %248 = vector.broadcast %240 : vector<4x1xf32> to vector<4x128xf32>
    %249 = arith.subf %236, %248 : vector<4x128xf32>
    %cst_149 = arith.constant 9.99999974E-6 : f32
    %250 = vector.broadcast %cst_149 : f32 to vector<4x1xf32>
    %251 = arith.addf %247, %250 : vector<4x1xf32>
    %252 = math.rsqrt %251 : vector<4x1xf32>
    %253 = vector.broadcast %252 : vector<4x1xf32> to vector<4x128xf32>
    %254 = arith.mulf %249, %253 : vector<4x128xf32>
    %255 = vector.broadcast %16 : vector<1x128xf32> to vector<4x128xf32>
    %256 = arith.mulf %254, %255 : vector<4x128xf32>
    %257 = vector.broadcast %17 : vector<1x128xf32> to vector<4x128xf32>
    %258 = arith.addf %256, %257 : vector<4x128xf32>
    %cst_150 = arith.constant dense<0.000000e+00> : vector<4x64xf32>
    %259 = tpu.matmul %258, %18, %cst_150 {dimension_numbers = #tpu.dot_dimension_numbers<[1], [0], [0], [1], [0, 0, 1, 1], [], []>} : vector<4x128xf32>, vector<128x64xf32>, vector<4x64xf32> -> vector<4x64xf32>
    %260 = vector.broadcast %19 : vector<1x64xf32> to vector<4x64xf32>
    %261 = arith.addf %259, %260 : vector<4x64xf32>
    %cst_151 = arith.constant dense<0.000000e+00> : vector<4xf32>
    %262 = vector.multi_reduction <add>, %261, %cst_151 [1] : vector<4x64xf32> to vector<4xf32>
    %263 = vector.shape_cast %262 : vector<4xf32> to vector<4x1xf32>
    %cst_152 = arith.constant 6.400000e+01 : f32
    %264 = vector.broadcast %cst_152 : f32 to vector<4x1xf32>
    %265 = arith.divf %263, %264 : vector<4x1xf32>
    %266 = vector.broadcast %265 : vector<4x1xf32> to vector<4x64xf32>
    %267 = arith.subf %261, %266 : vector<4x64xf32>
    %268 = arith.mulf %267, %267 : vector<4x64xf32>
    %cst_153 = arith.constant dense<0.000000e+00> : vector<4xf32>
    %269 = vector.multi_reduction <add>, %268, %cst_153 [1] : vector<4x64xf32> to vector<4xf32>
    %270 = vector.shape_cast %269 : vector<4xf32> to vector<4x1xf32>
    %cst_154 = arith.constant 6.400000e+01 : f32
    %271 = vector.broadcast %cst_154 : f32 to vector<4x1xf32>
    %272 = arith.divf %270, %271 : vector<4x1xf32>
    %273 = vector.broadcast %265 : vector<4x1xf32> to vector<4x64xf32>
    %274 = arith.subf %261, %273 : vector<4x64xf32>
    %cst_155 = arith.constant 9.99999974E-6 : f32
    %275 = vector.broadcast %cst_155 : f32 to vector<4x1xf32>
    %276 = arith.addf %272, %275 : vector<4x1xf32>
    %277 = math.rsqrt %276 : vector<4x1xf32>
    %278 = vector.broadcast %277 : vector<4x1xf32> to vector<4x64xf32>
    %279 = arith.mulf %274, %278 : vector<4x64xf32>
    %280 = vector.broadcast %20 : vector<1x64xf32> to vector<4x64xf32>
    %281 = arith.mulf %279, %280 : vector<4x64xf32>
    %282 = vector.broadcast %21 : vector<1x64xf32> to vector<4x64xf32>
    %283 = arith.addf %281, %282 : vector<4x64xf32>
    %cst_156 = arith.constant dense<0.000000e+00> : vector<4x192xf32>
    %284 = tpu.matmul %283, %22, %cst_156 {dimension_numbers = #tpu.dot_dimension_numbers<[1], [0], [0], [1], [0, 0, 1, 1], [], []>} : vector<4x64xf32>, vector<64x192xf32>, vector<4x192xf32> -> vector<4x192xf32>
    %285 = vector.broadcast %23 : vector<1x192xf32> to vector<4x192xf32>
    %286 = arith.addf %284, %285 : vector<4x192xf32>
    %287 = vector.extract_strided_slice %286 {offsets = [0, 0], sizes = [4, 16], strides = [1, 1]} : vector<4x192xf32> to vector<4x16xf32>
    %cst_157 = arith.constant 2.500000e-01 : f32
    %288 = vector.broadcast %cst_157 : f32 to vector<4x16xf32>
    %289 = arith.mulf %287, %288 : vector<4x16xf32>
    %290 = vector.extract_strided_slice %286 {offsets = [0, 64], sizes = [4, 16], strides = [1, 1]} : vector<4x192xf32> to vector<4x16xf32>
    %291 = vector.extract_strided_slice %286 {offsets = [0, 128], sizes = [4, 16], strides = [1, 1]} : vector<4x192xf32> to vector<4x16xf32>
    %cst_158 = arith.constant dense<0.000000e+00> : vector<4x4xf32>
    %292 = tpu.matmul %289, %290, %cst_158 {dimension_numbers = #tpu.dot_dimension_numbers<[1], [1], [0], [0], [0, 0, 1, 0], [], []>} : vector<4x16xf32>, vector<4x16xf32>, vector<4x4xf32> -> vector<4x4xf32>
    %c0_159 = arith.constant 0 : index
    %c0_160 = arith.constant 0 : index
    %c0_161 = arith.constant 0 : index
    %293 = vector.load %arg28[%c0_159, %c0_160, %c0_161] : memref<4x4x4xf32, #tpu.memory_space<vmem>>, vector<1x4x4xf32>
    %294 = vector.shape_cast %293 : vector<1x4x4xf32> to vector<4x4xf32>
    %295 = arith.addf %292, %294 : vector<4x4xf32>
    %cst_162 = arith.constant dense<0xFF800000> : vector<4xf32>
    %296 = vector.multi_reduction <maximumf>, %295, %cst_162 [1] : vector<4x4xf32> to vector<4xf32>
    %297 = vector.shape_cast %296 : vector<4xf32> to vector<4x1xf32>
    %298 = vector.broadcast %297 : vector<4x1xf32> to vector<4x4xf32>
    %299 = arith.subf %295, %298 : vector<4x4xf32>
    %300 = math.exp %299 : vector<4x4xf32>
    %cst_163 = arith.constant dense<0.000000e+00> : vector<4xf32>
    %301 = vector.multi_reduction <add>, %300, %cst_163 [1] : vector<4x4xf32> to vector<4xf32>
    %302 = vector.shape_cast %301 : vector<4xf32> to vector<4x1xf32>
    %303 = tpu.reciprocal %302 {approx = true} : vector<4x1xf32> -> vector<4x1xf32>
    %304 = vector.broadcast %303 : vector<4x1xf32> to vector<4x4xf32>
    %305 = arith.mulf %300, %304 : vector<4x4xf32>
    %cst_164 = arith.constant dense<0.000000e+00> : vector<4x16xf32>
    %306 = tpu.matmul %305, %291, %cst_164 {dimension_numbers = #tpu.dot_dimension_numbers<[1], [0], [0], [1], [0, 0, 1, 1], [], []>} : vector<4x4xf32>, vector<4x16xf32>, vector<4x16xf32> -> vector<4x16xf32>
    %307 = vector.extract_strided_slice %24 {offsets = [0, 0], sizes = [16, 64], strides = [1, 1]} : vector<64x64xf32> to vector<16x64xf32>
    %cst_165 = arith.constant dense<0.000000e+00> : vector<4x64xf32>
    %308 = tpu.matmul %306, %307, %cst_165 {dimension_numbers = #tpu.dot_dimension_numbers<[1], [0], [0], [1], [0, 0, 1, 1], [], []>} : vector<4x16xf32>, vector<16x64xf32>, vector<4x64xf32> -> vector<4x64xf32>
    %309 = vector.extract_strided_slice %286 {offsets = [0, 16], sizes = [4, 16], strides = [1, 1]} : vector<4x192xf32> to vector<4x16xf32>
    %cst_166 = arith.constant 2.500000e-01 : f32
    %310 = vector.broadcast %cst_166 : f32 to vector<4x16xf32>
    %311 = arith.mulf %309, %310 : vector<4x16xf32>
    %312 = vector.extract_strided_slice %286 {offsets = [0, 80], sizes = [4, 16], strides = [1, 1]} : vector<4x192xf32> to vector<4x16xf32>
    %313 = vector.extract_strided_slice %286 {offsets = [0, 144], sizes = [4, 16], strides = [1, 1]} : vector<4x192xf32> to vector<4x16xf32>
    %cst_167 = arith.constant dense<0.000000e+00> : vector<4x4xf32>
    %314 = tpu.matmul %311, %312, %cst_167 {dimension_numbers = #tpu.dot_dimension_numbers<[1], [1], [0], [0], [0, 0, 1, 0], [], []>} : vector<4x16xf32>, vector<4x16xf32>, vector<4x4xf32> -> vector<4x4xf32>
    %c1_168 = arith.constant 1 : index
    %c0_169 = arith.constant 0 : index
    %c0_170 = arith.constant 0 : index
    %315 = vector.load %arg28[%c1_168, %c0_169, %c0_170] : memref<4x4x4xf32, #tpu.memory_space<vmem>>, vector<1x4x4xf32>
    %316 = vector.shape_cast %315 : vector<1x4x4xf32> to vector<4x4xf32>
    %317 = arith.addf %314, %316 : vector<4x4xf32>
    %cst_171 = arith.constant dense<0xFF800000> : vector<4xf32>
    %318 = vector.multi_reduction <maximumf>, %317, %cst_171 [1] : vector<4x4xf32> to vector<4xf32>
    %319 = vector.shape_cast %318 : vector<4xf32> to vector<4x1xf32>
    %320 = vector.broadcast %319 : vector<4x1xf32> to vector<4x4xf32>
    %321 = arith.subf %317, %320 : vector<4x4xf32>
    %322 = math.exp %321 : vector<4x4xf32>
    %cst_172 = arith.constant dense<0.000000e+00> : vector<4xf32>
    %323 = vector.multi_reduction <add>, %322, %cst_172 [1] : vector<4x4xf32> to vector<4xf32>
    %324 = vector.shape_cast %323 : vector<4xf32> to vector<4x1xf32>
    %325 = tpu.reciprocal %324 {approx = true} : vector<4x1xf32> -> vector<4x1xf32>
    %326 = vector.broadcast %325 : vector<4x1xf32> to vector<4x4xf32>
    %327 = arith.mulf %322, %326 : vector<4x4xf32>
    %cst_173 = arith.constant dense<0.000000e+00> : vector<4x16xf32>
    %328 = tpu.matmul %327, %313, %cst_173 {dimension_numbers = #tpu.dot_dimension_numbers<[1], [0], [0], [1], [0, 0, 1, 1], [], []>} : vector<4x4xf32>, vector<4x16xf32>, vector<4x16xf32> -> vector<4x16xf32>
    %329 = vector.extract_strided_slice %24 {offsets = [16, 0], sizes = [16, 64], strides = [1, 1]} : vector<64x64xf32> to vector<16x64xf32>
    %cst_174 = arith.constant dense<0.000000e+00> : vector<4x64xf32>
    %330 = tpu.matmul %328, %329, %cst_174 {dimension_numbers = #tpu.dot_dimension_numbers<[1], [0], [0], [1], [0, 0, 1, 1], [], []>} : vector<4x16xf32>, vector<16x64xf32>, vector<4x64xf32> -> vector<4x64xf32>
    %331 = arith.addf %308, %330 : vector<4x64xf32>
    %332 = vector.extract_strided_slice %286 {offsets = [0, 32], sizes = [4, 16], strides = [1, 1]} : vector<4x192xf32> to vector<4x16xf32>
    %cst_175 = arith.constant 2.500000e-01 : f32
    %333 = vector.broadcast %cst_175 : f32 to vector<4x16xf32>
    %334 = arith.mulf %332, %333 : vector<4x16xf32>
    %335 = vector.extract_strided_slice %286 {offsets = [0, 96], sizes = [4, 16], strides = [1, 1]} : vector<4x192xf32> to vector<4x16xf32>
    %336 = vector.extract_strided_slice %286 {offsets = [0, 160], sizes = [4, 16], strides = [1, 1]} : vector<4x192xf32> to vector<4x16xf32>
    %cst_176 = arith.constant dense<0.000000e+00> : vector<4x4xf32>
    %337 = tpu.matmul %334, %335, %cst_176 {dimension_numbers = #tpu.dot_dimension_numbers<[1], [1], [0], [0], [0, 0, 1, 0], [], []>} : vector<4x16xf32>, vector<4x16xf32>, vector<4x4xf32> -> vector<4x4xf32>
    %c2_177 = arith.constant 2 : index
    %c0_178 = arith.constant 0 : index
    %c0_179 = arith.constant 0 : index
    %338 = vector.load %arg28[%c2_177, %c0_178, %c0_179] : memref<4x4x4xf32, #tpu.memory_space<vmem>>, vector<1x4x4xf32>
    %339 = vector.shape_cast %338 : vector<1x4x4xf32> to vector<4x4xf32>
    %340 = arith.addf %337, %339 : vector<4x4xf32>
    %cst_180 = arith.constant dense<0xFF800000> : vector<4xf32>
    %341 = vector.multi_reduction <maximumf>, %340, %cst_180 [1] : vector<4x4xf32> to vector<4xf32>
    %342 = vector.shape_cast %341 : vector<4xf32> to vector<4x1xf32>
    %343 = vector.broadcast %342 : vector<4x1xf32> to vector<4x4xf32>
    %344 = arith.subf %340, %343 : vector<4x4xf32>
    %345 = math.exp %344 : vector<4x4xf32>
    %cst_181 = arith.constant dense<0.000000e+00> : vector<4xf32>
    %346 = vector.multi_reduction <add>, %345, %cst_181 [1] : vector<4x4xf32> to vector<4xf32>
    %347 = vector.shape_cast %346 : vector<4xf32> to vector<4x1xf32>
    %348 = tpu.reciprocal %347 {approx = true} : vector<4x1xf32> -> vector<4x1xf32>
    %349 = vector.broadcast %348 : vector<4x1xf32> to vector<4x4xf32>
    %350 = arith.mulf %345, %349 : vector<4x4xf32>
    %cst_182 = arith.constant dense<0.000000e+00> : vector<4x16xf32>
    %351 = tpu.matmul %350, %336, %cst_182 {dimension_numbers = #tpu.dot_dimension_numbers<[1], [0], [0], [1], [0, 0, 1, 1], [], []>} : vector<4x4xf32>, vector<4x16xf32>, vector<4x16xf32> -> vector<4x16xf32>
    %352 = vector.extract_strided_slice %24 {offsets = [32, 0], sizes = [16, 64], strides = [1, 1]} : vector<64x64xf32> to vector<16x64xf32>
    %cst_183 = arith.constant dense<0.000000e+00> : vector<4x64xf32>
    %353 = tpu.matmul %351, %352, %cst_183 {dimension_numbers = #tpu.dot_dimension_numbers<[1], [0], [0], [1], [0, 0, 1, 1], [], []>} : vector<4x16xf32>, vector<16x64xf32>, vector<4x64xf32> -> vector<4x64xf32>
    %354 = arith.addf %331, %353 : vector<4x64xf32>
    %355 = vector.extract_strided_slice %286 {offsets = [0, 48], sizes = [4, 16], strides = [1, 1]} : vector<4x192xf32> to vector<4x16xf32>
    %cst_184 = arith.constant 2.500000e-01 : f32
    %356 = vector.broadcast %cst_184 : f32 to vector<4x16xf32>
    %357 = arith.mulf %355, %356 : vector<4x16xf32>
    %358 = vector.extract_strided_slice %286 {offsets = [0, 112], sizes = [4, 16], strides = [1, 1]} : vector<4x192xf32> to vector<4x16xf32>
    %359 = vector.extract_strided_slice %286 {offsets = [0, 176], sizes = [4, 16], strides = [1, 1]} : vector<4x192xf32> to vector<4x16xf32>
    %cst_185 = arith.constant dense<0.000000e+00> : vector<4x4xf32>
    %360 = tpu.matmul %357, %358, %cst_185 {dimension_numbers = #tpu.dot_dimension_numbers<[1], [1], [0], [0], [0, 0, 1, 0], [], []>} : vector<4x16xf32>, vector<4x16xf32>, vector<4x4xf32> -> vector<4x4xf32>
    %c3_186 = arith.constant 3 : index
    %c0_187 = arith.constant 0 : index
    %c0_188 = arith.constant 0 : index
    %361 = vector.load %arg28[%c3_186, %c0_187, %c0_188] : memref<4x4x4xf32, #tpu.memory_space<vmem>>, vector<1x4x4xf32>
    %362 = vector.shape_cast %361 : vector<1x4x4xf32> to vector<4x4xf32>
    %363 = arith.addf %360, %362 : vector<4x4xf32>
    %cst_189 = arith.constant dense<0xFF800000> : vector<4xf32>
    %364 = vector.multi_reduction <maximumf>, %363, %cst_189 [1] : vector<4x4xf32> to vector<4xf32>
    %365 = vector.shape_cast %364 : vector<4xf32> to vector<4x1xf32>
    %366 = vector.broadcast %365 : vector<4x1xf32> to vector<4x4xf32>
    %367 = arith.subf %363, %366 : vector<4x4xf32>
    %368 = math.exp %367 : vector<4x4xf32>
    %cst_190 = arith.constant dense<0.000000e+00> : vector<4xf32>
    %369 = vector.multi_reduction <add>, %368, %cst_190 [1] : vector<4x4xf32> to vector<4xf32>
    %370 = vector.shape_cast %369 : vector<4xf32> to vector<4x1xf32>
    %371 = tpu.reciprocal %370 {approx = true} : vector<4x1xf32> -> vector<4x1xf32>
    %372 = vector.broadcast %371 : vector<4x1xf32> to vector<4x4xf32>
    %373 = arith.mulf %368, %372 : vector<4x4xf32>
    %cst_191 = arith.constant dense<0.000000e+00> : vector<4x16xf32>
    %374 = tpu.matmul %373, %359, %cst_191 {dimension_numbers = #tpu.dot_dimension_numbers<[1], [0], [0], [1], [0, 0, 1, 1], [], []>} : vector<4x4xf32>, vector<4x16xf32>, vector<4x16xf32> -> vector<4x16xf32>
    %375 = vector.extract_strided_slice %24 {offsets = [48, 0], sizes = [16, 64], strides = [1, 1]} : vector<64x64xf32> to vector<16x64xf32>
    %cst_192 = arith.constant dense<0.000000e+00> : vector<4x64xf32>
    %376 = tpu.matmul %374, %375, %cst_192 {dimension_numbers = #tpu.dot_dimension_numbers<[1], [0], [0], [1], [0, 0, 1, 1], [], []>} : vector<4x16xf32>, vector<16x64xf32>, vector<4x64xf32> -> vector<4x64xf32>
    %377 = arith.addf %354, %376 : vector<4x64xf32>
    %378 = arith.addf %261, %377 : vector<4x64xf32>
    %379 = vector.broadcast %25 : vector<1x64xf32> to vector<4x64xf32>
    %380 = arith.addf %378, %379 : vector<4x64xf32>
    %cst_193 = arith.constant dense<0.000000e+00> : vector<4xf32>
    %381 = vector.multi_reduction <add>, %380, %cst_193 [1] : vector<4x64xf32> to vector<4xf32>
    %382 = vector.shape_cast %381 : vector<4xf32> to vector<4x1xf32>
    %cst_194 = arith.constant 6.400000e+01 : f32
    %383 = vector.broadcast %cst_194 : f32 to vector<4x1xf32>
    %384 = arith.divf %382, %383 : vector<4x1xf32>
    %385 = vector.broadcast %384 : vector<4x1xf32> to vector<4x64xf32>
    %386 = arith.subf %380, %385 : vector<4x64xf32>
    %387 = arith.mulf %386, %386 : vector<4x64xf32>
    %cst_195 = arith.constant dense<0.000000e+00> : vector<4xf32>
    %388 = vector.multi_reduction <add>, %387, %cst_195 [1] : vector<4x64xf32> to vector<4xf32>
    %389 = vector.shape_cast %388 : vector<4xf32> to vector<4x1xf32>
    %cst_196 = arith.constant 6.400000e+01 : f32
    %390 = vector.broadcast %cst_196 : f32 to vector<4x1xf32>
    %391 = arith.divf %389, %390 : vector<4x1xf32>
    %392 = vector.broadcast %384 : vector<4x1xf32> to vector<4x64xf32>
    %393 = arith.subf %380, %392 : vector<4x64xf32>
    %cst_197 = arith.constant 9.99999974E-6 : f32
    %394 = vector.broadcast %cst_197 : f32 to vector<4x1xf32>
    %395 = arith.addf %391, %394 : vector<4x1xf32>
    %396 = math.rsqrt %395 : vector<4x1xf32>
    %397 = vector.broadcast %396 : vector<4x1xf32> to vector<4x64xf32>
    %398 = arith.mulf %393, %397 : vector<4x64xf32>
    %399 = vector.broadcast %26 : vector<1x64xf32> to vector<4x64xf32>
    %400 = arith.mulf %398, %399 : vector<4x64xf32>
    %401 = vector.broadcast %27 : vector<1x64xf32> to vector<4x64xf32>
    %402 = arith.addf %400, %401 : vector<4x64xf32>
    %cst_198 = arith.constant dense<0.000000e+00> : vector<4x128xf32>
    %403 = tpu.matmul %402, %28, %cst_198 {dimension_numbers = #tpu.dot_dimension_numbers<[1], [0], [0], [1], [0, 0, 1, 1], [], []>} : vector<4x64xf32>, vector<64x128xf32>, vector<4x128xf32> -> vector<4x128xf32>
    %404 = vector.broadcast %29 : vector<1x128xf32> to vector<4x128xf32>
    %405 = arith.addf %403, %404 : vector<4x128xf32>
    %406 = arith.mulf %405, %405 : vector<4x128xf32>
    %407 = arith.mulf %405, %406 : vector<4x128xf32>
    %cst_199 = arith.constant 4.471500e-02 : f32
    %408 = vector.broadcast %cst_199 : f32 to vector<4x128xf32>
    %409 = arith.mulf %408, %407 : vector<4x128xf32>
    %410 = arith.addf %405, %409 : vector<4x128xf32>
    %cst_200 = arith.constant 0.797884583 : f32
    %411 = vector.broadcast %cst_200 : f32 to vector<4x128xf32>
    %412 = arith.mulf %411, %410 : vector<4x128xf32>
    %413 = math.tanh %412 : vector<4x128xf32>
    %cst_201 = arith.constant 1.000000e+00 : f32
    %414 = vector.broadcast %cst_201 : f32 to vector<4x128xf32>
    %415 = arith.addf %414, %413 : vector<4x128xf32>
    %cst_202 = arith.constant 5.000000e-01 : f32
    %416 = vector.broadcast %cst_202 : f32 to vector<4x128xf32>
    %417 = arith.mulf %416, %415 : vector<4x128xf32>
    %418 = arith.mulf %405, %417 : vector<4x128xf32>
    %cst_203 = arith.constant dense<0.000000e+00> : vector<4x64xf32>
    %419 = tpu.matmul %418, %30, %cst_203 {dimension_numbers = #tpu.dot_dimension_numbers<[1], [0], [0], [1], [0, 0, 1, 1], [], []>} : vector<4x128xf32>, vector<128x64xf32>, vector<4x64xf32> -> vector<4x64xf32>
    %420 = vector.broadcast %31 : vector<1x64xf32> to vector<4x64xf32>
    %421 = arith.addf %419, %420 : vector<4x64xf32>
    %422 = arith.addf %380, %421 : vector<4x64xf32>
    %cst_204 = arith.constant dense<0.000000e+00> : vector<4xf32>
    %423 = vector.multi_reduction <add>, %422, %cst_204 [1] : vector<4x64xf32> to vector<4xf32>
    %424 = vector.shape_cast %423 : vector<4xf32> to vector<4x1xf32>
    %cst_205 = arith.constant 6.400000e+01 : f32
    %425 = vector.broadcast %cst_205 : f32 to vector<4x1xf32>
    %426 = arith.divf %424, %425 : vector<4x1xf32>
    %427 = vector.broadcast %426 : vector<4x1xf32> to vector<4x64xf32>
    %428 = arith.subf %422, %427 : vector<4x64xf32>
    %429 = arith.mulf %428, %428 : vector<4x64xf32>
    %cst_206 = arith.constant dense<0.000000e+00> : vector<4xf32>
    %430 = vector.multi_reduction <add>, %429, %cst_206 [1] : vector<4x64xf32> to vector<4xf32>
    %431 = vector.shape_cast %430 : vector<4xf32> to vector<4x1xf32>
    %cst_207 = arith.constant 6.400000e+01 : f32
    %432 = vector.broadcast %cst_207 : f32 to vector<4x1xf32>
    %433 = arith.divf %431, %432 : vector<4x1xf32>
    %434 = vector.broadcast %426 : vector<4x1xf32> to vector<4x64xf32>
    %435 = arith.subf %422, %434 : vector<4x64xf32>
    %cst_208 = arith.constant 9.99999974E-6 : f32
    %436 = vector.broadcast %cst_208 : f32 to vector<4x1xf32>
    %437 = arith.addf %433, %436 : vector<4x1xf32>
    %438 = math.rsqrt %437 : vector<4x1xf32>
    %439 = vector.broadcast %438 : vector<4x1xf32> to vector<4x64xf32>
    %440 = arith.mulf %435, %439 : vector<4x64xf32>
    %441 = vector.broadcast %32 : vector<1x64xf32> to vector<4x64xf32>
    %442 = arith.mulf %440, %441 : vector<4x64xf32>
    %443 = vector.broadcast %33 : vector<1x64xf32> to vector<4x64xf32>
    %444 = arith.addf %442, %443 : vector<4x64xf32>
    %cst_209 = arith.constant dense<0.000000e+00> : vector<64xf32>
    %445 = vector.multi_reduction <add>, %444, %cst_209 [0] : vector<4x64xf32> to vector<64xf32>
    %446 = vector.shape_cast %445 : vector<64xf32> to vector<1x64xf32>
    %cst_210 = arith.constant 4.000000e+00 : f32
    %447 = vector.broadcast %cst_210 : f32 to vector<1x64xf32>
    %448 = arith.divf %446, %447 : vector<1x64xf32>
    %cst_211 = arith.constant dense<0.000000e+00> : vector<1x5xf32>
    %449 = tpu.matmul %448, %34, %cst_211 {dimension_numbers = #tpu.dot_dimension_numbers<[1], [0], [0], [1], [0, 0, 1, 1], [], []>} : vector<1x64xf32>, vector<64x5xf32>, vector<1x5xf32> -> vector<1x5xf32>
    %450 = arith.addf %449, %35 : vector<1x5xf32>
    %c0_212 = arith.constant 0 : index
    %c0_213 = arith.constant 0 : index
    %c0_214 = arith.constant 0 : index
    %451 = vector.load %arg41[%c0_212, %c0_213, %c0_214] : memref<1x1x5xf32, #tpu.memory_space<vmem>>, vector<1x1x5xf32>
    %452 = vector.shape_cast %451 : vector<1x1x5xf32> to vector<1x5xf32>
    %453 = vector.shape_cast %450 : vector<1x5xf32> to vector<1x1x5xf32>
    tpu.vector_store %arg41[%c0_212, %c0_213, %c0_214], %453 {strides = array<i32>} : memref<1x1x5xf32, #tpu.memory_space<vmem>>, vector<1x1x5xf32>,
    return
  }
  func.func @transform_0(%arg0: i32) -> (i32, i32, i32) {
    %c0_i32 = arith.constant 0 : i32
    %c0_i32_0 = arith.constant 0 : i32
    %c0_i32_1 = arith.constant 0 : i32
    return %arg0, %c0_i32, %c0_i32_0 : i32, i32, i32
  }
  func.func @transform_1(%arg0: i32) -> (i32, i32) {
    %c0_i32 = arith.constant 0 : i32
    %c0_i32_0 = arith.constant 0 : i32
    %c0_i32_1 = arith.constant 0 : i32
    return %c0_i32, %c0_i32_0 : i32, i32
  }
  func.func @transform_2(%arg0: i32) -> (i32, i32) {
    %c0_i32 = arith.constant 0 : i32
    %c0_i32_0 = arith.constant 0 : i32
    %c0_i32_1 = arith.constant 0 : i32
    return %c0_i32, %c0_i32_0 : i32, i32
  }
  func.func @transform_3(%arg0: i32) -> (i32, i32) {
    %c0_i32 = arith.constant 0 : i32
    %c0_i32_0 = arith.constant 0 : i32
    %c0_i32_1 = arith.constant 0 : i32
    return %c0_i32, %c0_i32_0 : i32, i32
  }
  func.func @transform_4(%arg0: i32) -> (i32, i32) {
    %c0_i32 = arith.constant 0 : i32
    %c0_i32_0 = arith.constant 0 : i32
    %c0_i32_1 = arith.constant 0 : i32
    return %c0_i32, %c0_i32_0 : i32, i32
  }
  func.func @transform_5(%arg0: i32) -> (i32, i32) {
    %c0_i32 = arith.constant 0 : i32
    %c0_i32_0 = arith.constant 0 : i32
    %c0_i32_1 = arith.constant 0 : i32
    return %c0_i32, %c0_i32_0 : i32, i32
  }
  func.func @transform_6(%arg0: i32) -> (i32, i32) {
    %c0_i32 = arith.constant 0 : i32
    %c0_i32_0 = arith.constant 0 : i32
    %c0_i32_1 = arith.constant 0 : i32
    return %c0_i32, %c0_i32_0 : i32, i32
  }
  func.func @transform_7(%arg0: i32) -> (i32, i32) {
    %c0_i32 = arith.constant 0 : i32
    %c0_i32_0 = arith.constant 0 : i32
    %c0_i32_1 = arith.constant 0 : i32
    return %c0_i32, %c0_i32_0 : i32, i32
  }
  func.func @transform_8(%arg0: i32) -> (i32, i32) {
    %c0_i32 = arith.constant 0 : i32
    %c0_i32_0 = arith.constant 0 : i32
    %c0_i32_1 = arith.constant 0 : i32
    return %c0_i32, %c0_i32_0 : i32, i32
  }
  func.func @transform_9(%arg0: i32) -> (i32, i32, i32) {
    %c0_i32 = arith.constant 0 : i32
    %c0_i32_0 = arith.constant 0 : i32
    %c0_i32_1 = arith.constant 0 : i32
    %c0_i32_2 = arith.constant 0 : i32
    return %c0_i32, %c0_i32_0, %c0_i32_1 : i32, i32, i32
  }
  func.func @transform_10(%arg0: i32) -> (i32, i32) {
    %c0_i32 = arith.constant 0 : i32
    %c0_i32_0 = arith.constant 0 : i32
    %c0_i32_1 = arith.constant 0 : i32
    return %c0_i32, %c0_i32_0 : i32, i32
  }
  func.func @transform_11(%arg0: i32) -> (i32, i32) {
    %c0_i32 = arith.constant 0 : i32
    %c0_i32_0 = arith.constant 0 : i32
    %c0_i32_1 = arith.constant 0 : i32
    return %c0_i32, %c0_i32_0 : i32, i32
  }
  func.func @transform_12(%arg0: i32) -> (i32, i32) {
    %c0_i32 = arith.constant 0 : i32
    %c0_i32_0 = arith.constant 0 : i32
    %c0_i32_1 = arith.constant 0 : i32
    return %c0_i32, %c0_i32_0 : i32, i32
  }
  func.func @transform_13(%arg0: i32) -> (i32, i32) {
    %c0_i32 = arith.constant 0 : i32
    %c0_i32_0 = arith.constant 0 : i32
    %c0_i32_1 = arith.constant 0 : i32
    return %c0_i32, %c0_i32_0 : i32, i32
  }
  func.func @transform_14(%arg0: i32) -> (i32, i32) {
    %c0_i32 = arith.constant 0 : i32
    %c0_i32_0 = arith.constant 0 : i32
    %c0_i32_1 = arith.constant 0 : i32
    return %c0_i32, %c0_i32_0 : i32, i32
  }
  func.func @transform_15(%arg0: i32) -> (i32, i32) {
    %c0_i32 = arith.constant 0 : i32
    %c0_i32_0 = arith.constant 0 : i32
    %c0_i32_1 = arith.constant 0 : i32
    return %c0_i32, %c0_i32_0 : i32, i32
  }
  func.func @transform_16(%arg0: i32) -> (i32, i32) {
    %c0_i32 = arith.constant 0 : i32
    %c0_i32_0 = arith.constant 0 : i32
    %c0_i32_1 = arith.constant 0 : i32
    return %c0_i32, %c0_i32_0 : i32, i32
  }
  func.func @transform_17(%arg0: i32) -> (i32, i32) {
    %c0_i32 = arith.constant 0 : i32
    %c0_i32_0 = arith.constant 0 : i32
    %c0_i32_1 = arith.constant 0 : i32
    return %c0_i32, %c0_i32_0 : i32, i32
  }
  func.func @transform_18(%arg0: i32) -> (i32, i32, i32) {
    %c0_i32 = arith.constant 0 : i32
    %c0_i32_0 = arith.constant 0 : i32
    %c0_i32_1 = arith.constant 0 : i32
    %c0_i32_2 = arith.constant 0 : i32
    return %c0_i32, %c0_i32_0, %c0_i32_1 : i32, i32, i32
  }
  func.func @transform_19(%arg0: i32) -> (i32, i32) {
    %c0_i32 = arith.constant 0 : i32
    %c0_i32_0 = arith.constant 0 : i32
    %c0_i32_1 = arith.constant 0 : i32
    return %c0_i32, %c0_i32_0 : i32, i32
  }
  func.func @transform_20(%arg0: i32) -> (i32, i32) {
    %c0_i32 = arith.constant 0 : i32
    %c0_i32_0 = arith.constant 0 : i32
    %c0_i32_1 = arith.constant 0 : i32
    return %c0_i32, %c0_i32_0 : i32, i32
  }
  func.func @transform_21(%arg0: i32) -> (i32, i32) {
    %c0_i32 = arith.constant 0 : i32
    %c0_i32_0 = arith.constant 0 : i32
    %c0_i32_1 = arith.constant 0 : i32
    return %c0_i32, %c0_i32_0 : i32, i32
  }
  func.func @transform_22(%arg0: i32) -> (i32, i32) {
    %c0_i32 = arith.constant 0 : i32
    %c0_i32_0 = arith.constant 0 : i32
    %c0_i32_1 = arith.constant 0 : i32
    return %c0_i32, %c0_i32_0 : i32, i32
  }
  func.func @transform_23(%arg0: i32) -> (i32, i32) {
    %c0_i32 = arith.constant 0 : i32
    %c0_i32_0 = arith.constant 0 : i32
    %c0_i32_1 = arith.constant 0 : i32
    return %c0_i32, %c0_i32_0 : i32, i32
  }
  func.func @transform_24(%arg0: i32) -> (i32, i32) {
    %c0_i32 = arith.constant 0 : i32
    %c0_i32_0 = arith.constant 0 : i32
    %c0_i32_1 = arith.constant 0 : i32
    return %c0_i32, %c0_i32_0 : i32, i32
  }
  func.func @transform_25(%arg0: i32) -> (i32, i32) {
    %c0_i32 = arith.constant 0 : i32
    %c0_i32_0 = arith.constant 0 : i32
    %c0_i32_1 = arith.constant 0 : i32
    return %c0_i32, %c0_i32_0 : i32, i32
  }
  func.func @transform_26(%arg0: i32) -> (i32, i32) {
    %c0_i32 = arith.constant 0 : i32
    %c0_i32_0 = arith.constant 0 : i32
    %c0_i32_1 = arith.constant 0 : i32
    return %c0_i32, %c0_i32_0 : i32, i32
  }
  func.func @transform_27(%arg0: i32) -> (i32, i32, i32) {
    %c0_i32 = arith.constant 0 : i32
    %c0_i32_0 = arith.constant 0 : i32
    %c0_i32_1 = arith.constant 0 : i32
    %c0_i32_2 = arith.constant 0 : i32
    return %c0_i32, %c0_i32_0, %c0_i32_1 : i32, i32, i32
  }
  func.func @transform_28(%arg0: i32) -> (i32, i32) {
    %c0_i32 = arith.constant 0 : i32
    %c0_i32_0 = arith.constant 0 : i32
    %c0_i32_1 = arith.constant 0 : i32
    return %c0_i32, %c0_i32_0 : i32, i32
  }
  func.func @transform_29(%arg0: i32) -> (i32, i32) {
    %c0_i32 = arith.constant 0 : i32
    %c0_i32_0 = arith.constant 0 : i32
    %c0_i32_1 = arith.constant 0 : i32
    return %c0_i32, %c0_i32_0 : i32, i32
  }
  func.func @transform_30(%arg0: i32) -> (i32, i32) {
    %c0_i32 = arith.constant 0 : i32
    %c0_i32_0 = arith.constant 0 : i32
    %c0_i32_1 = arith.constant 0 : i32
    return %c0_i32, %c0_i32_0 : i32, i32
  }
  func.func @transform_31(%arg0: i32) -> (i32, i32) {
    %c0_i32 = arith.constant 0 : i32
    %c0_i32_0 = arith.constant 0 : i32
    %c0_i32_1 = arith.constant 0 : i32
    return %c0_i32, %c0_i32_0 : i32, i32
  }
  func.func @transform_32(%arg0: i32) -> (i32, i32) {
    %c0_i32 = arith.constant 0 : i32
    %c0_i32_0 = arith.constant 0 : i32
    %c0_i32_1 = arith.constant 0 : i32
    return %c0_i32, %c0_i32_0 : i32, i32
  }
  func.func @transform_33(%arg0: i32) -> (i32, i32) {
    %c0_i32 = arith.constant 0 : i32
    %c0_i32_0 = arith.constant 0 : i32
    %c0_i32_1 = arith.constant 0 : i32
    return %c0_i32, %c0_i32_0 : i32, i32
  }
  func.func @transform_34(%arg0: i32) -> (i32, i32) {
    %c0_i32 = arith.constant 0 : i32
    %c0_i32_0 = arith.constant 0 : i32
    %c0_i32_1 = arith.constant 0 : i32
    return %c0_i32, %c0_i32_0 : i32, i32
  }
  func.func @transform_35(%arg0: i32) -> (i32, i32) {
    %c0_i32 = arith.constant 0 : i32
    %c0_i32_0 = arith.constant 0 : i32
    %c0_i32_1 = arith.constant 0 : i32
    return %c0_i32, %c0_i32_0 : i32, i32
  }
  func.func @transform_36(%arg0: i32) -> (i32, i32) {
    %c0_i32 = arith.constant 0 : i32
    %c0_i32_0 = arith.constant 0 : i32
    %c0_i32_1 = arith.constant 0 : i32
    return %c0_i32, %c0_i32_0 : i32, i32
  }
  func.func @transform_37(%arg0: i32) -> (i32, i32) {
    %c0_i32 = arith.constant 0 : i32
    %c0_i32_0 = arith.constant 0 : i32
    %c0_i32_1 = arith.constant 0 : i32
    return %c0_i32, %c0_i32_0 : i32, i32
  }
  func.func @transform_38(%arg0: i32) -> (i32, i32) {
    %c0_i32 = arith.constant 0 : i32
    %c0_i32_0 = arith.constant 0 : i32
    %c0_i32_1 = arith.constant 0 : i32
    return %c0_i32, %c0_i32_0 : i32, i32
  }
  func.func @transform_39(%arg0: i32) -> (i32, i32) {
    %c0_i32 = arith.constant 0 : i32
    %c0_i32_0 = arith.constant 0 : i32
    %c0_i32_1 = arith.constant 0 : i32
    return %c0_i32, %c0_i32_0 : i32, i32
  }
  func.func @transform_40(%arg0: i32) -> (i32, i32, i32) {
    %c0_i32 = arith.constant 0 : i32
    %c0_i32_0 = arith.constant 0 : i32
    %c0_i32_1 = arith.constant 0 : i32
    return %arg0, %c0_i32, %c0_i32_0 : i32, i32, i32
  }
}

</mosaic_0001>

<llo_original>
// kernel: swin_vit_forward.1
$region0: #{swin_vit_forward.1}
  #allocation0 [shape = 'u32[]', space=smem, size = 0x4, offset = 0x4, fixed_abs, tag = 'smem constant byte address 0x4 - core index']
  #allocation1 [shape = 'u32[144,128]{1,0:T(1,128)}', space=vmem, size = 0x12000, scoped, tag = 'internal scratch']
  %s0 = inlined_call_operand.smem [shape: u32[41], index: -1, kind: input, shape index: {}]
  %s1 = sld [smem:[%s0]]
  %s2 = scalar_lea.smem %s0, 1
  %s3 = sld [smem:[%s2]]
  %s4 = scalar_lea.smem %s0, 2
  %s5 = sld [smem:[%s4]]
  %s6 = scalar_lea.smem %s0, 3
  %s7 = sld [smem:[%s6]]
  %s8 = scalar_lea.smem %s0, 4
  %s9 = sld [smem:[%s8]]
  %s10 = scalar_lea.smem %s0, 5
  %s11 = sld [smem:[%s10]]
  %s12 = scalar_lea.smem %s0, 6
  %s13 = sld [smem:[%s12]]
  %s14 = scalar_lea.smem %s0, 7
  %s15 = sld [smem:[%s14]]
  %s16 = scalar_lea.smem %s0, 8
  %s17 = sld [smem:[%s16]]
  %s18 = scalar_lea.smem %s0, 9
  %s19 = sld [smem:[%s18]]
  %s20 = scalar_lea.smem %s0, 10
  %s21 = sld [smem:[%s20]]
  %s22 = scalar_lea.smem %s0, 11
  %s23 = sld [smem:[%s22]]
  %s24 = scalar_lea.smem %s0, 12
  %s25 = sld [smem:[%s24]]
  %s26 = scalar_lea.smem %s0, 13
  %s27 = sld [smem:[%s26]]
  %s28 = scalar_lea.smem %s0, 14
  %s29 = sld [smem:[%s28]]
  %s30 = scalar_lea.smem %s0, 15
  %s31 = sld [smem:[%s30]]
  %s32 = scalar_lea.smem %s0, 16
  %s33 = sld [smem:[%s32]]
  %s34 = scalar_lea.smem %s0, 17
  %s35 = sld [smem:[%s34]]
  %s36 = scalar_lea.smem %s0, 18
  %s37 = sld [smem:[%s36]]
  %s38 = scalar_lea.smem %s0, 19
  %s39 = sld [smem:[%s38]]
  %s40 = scalar_lea.smem %s0, 20
  %s41 = sld [smem:[%s40]]
  %s42 = scalar_lea.smem %s0, 21
  %s43 = sld [smem:[%s42]]
  %s44 = scalar_lea.smem %s0, 22
  %s45 = sld [smem:[%s44]]
  %s46 = scalar_lea.smem %s0, 23
  %s47 = sld [smem:[%s46]]
  %s48 = scalar_lea.smem %s0, 24
  %s49 = sld [smem:[%s48]]
  %s50 = scalar_lea.smem %s0, 25
  %s51 = sld [smem:[%s50]]
  %s52 = scalar_lea.smem %s0, 26
  %s53 = sld [smem:[%s52]]
  %s54 = scalar_lea.smem %s0, 27
  %s55 = sld [smem:[%s54]]
  %s56 = scalar_lea.smem %s0, 28
  %s57 = sld [smem:[%s56]]
  %s58 = scalar_lea.smem %s0, 29
  %s59 = sld [smem:[%s58]]
  %s60 = scalar_lea.smem %s0, 30
  %s61 = sld [smem:[%s60]]
  %s62 = scalar_lea.smem %s0, 31
  %s63 = sld [smem:[%s62]]
  %s64 = scalar_lea.smem %s0, 32
  %s65 = sld [smem:[%s64]]
  %s66 = scalar_lea.smem %s0, 33
  %s67 = sld [smem:[%s66]]
  %s68 = scalar_lea.smem %s0, 34
  %s69 = sld [smem:[%s68]]
  %s70 = scalar_lea.smem %s0, 35
  %s71 = sld [smem:[%s70]]
  %s72 = scalar_lea.smem %s0, 36
  %s73 = sld [smem:[%s72]]
  %s74 = scalar_lea.smem %s0, 37
  %s75 = sld [smem:[%s74]]
  %s76 = scalar_lea.smem %s0, 38
  %s77 = sld [smem:[%s76]]
  %s78 = scalar_lea.smem %s0, 39
  %s79 = sld [smem:[%s78]]
  %s80 = scalar_lea.smem %s0, 40
  %s81 = sld [smem:[%s80]]
  %s82 = sld [smem:[#allocation0]]
  $region193: #{swin_vit_forward.1} parent=0
    _
  %s84 = ssub.s32 1, %s82
  %s85 = scalar_select 0, %s84, %s82
  $region1: #{swin_vit_forward.1} parent=0
    #allocation2 [shape = 'u8[1024]{0}', space=vmem, size = 0x400, scoped, tag = 'output window, operand 0']
    #allocation3 [shape = 's32[2]{0}', space=sflag, size = 0x8, scoped, tag = 'scoped memory for swin_vit_forward.1']
    %86 = vsyncpa [#allocation3], 0
    %s87 = scalar_lea.sflag [#allocation3], 1
    %88 = vsyncpa %s87, 0
    loop: start=0, step=1, limit=4
    $region2: #{swin_vit_forward.1} parent=1 // loop_pre_header
      _
    $region3: #{swin_vit_forward.1} parent=1 // loop_header
      %s90 = sphi 0, %s94
      %p91 = scmp.ge.s32.totalorder %s90, 4
      %s100 = sphi 0, %s102
      %s103 = sphi 0, %s100
      %s104 = sphi 0, %s103
      %s120 = sphi 0, %s104
      %s124 = sphi 0, %s124
      %s126 = sphi 0, %s124
      %s127 = sphi 0, %s126
      %s141 = sphi 0, %s127
      %s145 = sphi 0, %s145
      %s147 = sphi 0, %s145
      %s148 = sphi 0, %s147
      %s162 = sphi 0, %s148
      %s166 = sphi 0, %s166
      %s168 = sphi 0, %s166
      %s169 = sphi 0, %s168
      %s183 = sphi 0, %s169
      %s187 = sphi 0, %s187
      %s189 = sphi 0, %s187
      %s190 = sphi 0, %s189
      %s204 = sphi 0, %s190
      %s208 = sphi 0, %s208
      %s210 = sphi 0, %s208
      %s211 = sphi 0, %s210
      %s225 = sphi 0, %s211
      %s229 = sphi 0, %s229
      %s231 = sphi 0, %s229
      %s232 = sphi 0, %s231
      %s246 = sphi 0, %s232
      %s250 = sphi 0, %s250
      %s252 = sphi 0, %s250
      %s253 = sphi 0, %s252
      %s267 = sphi 0, %s253
      %s271 = sphi 0, %s271
      %s273 = sphi 0, %s271
      %s274 = sphi 0, %s273
      %s288 = sphi 0, %s274
      %s292 = sphi 0, %s292
      %s294 = sphi 0, %s292
      %s295 = sphi 0, %s294
      %s309 = sphi 0, %s295
      %s313 = sphi 0, %s313
      %s315 = sphi 0, %s313
      %s316 = sphi 0, %s315
      %s330 = sphi 0, %s316
      %s334 = sphi 0, %s334
      %s336 = sphi 0, %s334
      %s337 = sphi 0, %s336
      %s351 = sphi 0, %s337
      %s355 = sphi 0, %s355
      %s357 = sphi 0, %s355
      %s358 = sphi 0, %s357
      %s372 = sphi 0, %s358
      %s376 = sphi 0, %s376
      %s378 = sphi 0, %s376
      %s379 = sphi 0, %s378
      %s393 = sphi 0, %s379
      %s397 = sphi 0, %s397
      %s399 = sphi 0, %s397
      %s400 = sphi 0, %s399
      %s414 = sphi 0, %s400
      %s418 = sphi 0, %s418
      %s420 = sphi 0, %s418
      %s421 = sphi 0, %s420
      %s435 = sphi 0, %s421
      %s439 = sphi 0, %s439
      %s441 = sphi 0, %s439
      %s442 = sphi 0, %s441
      %s456 = sphi 0, %s442
      %s460 = sphi 0, %s460
      %s462 = sphi 0, %s460
      %s463 = sphi 0, %s462
      %s477 = sphi 0, %s463
      %s481 = sphi 0, %s481
      %s483 = sphi 0, %s481
      %s484 = sphi 0, %s483
      %s498 = sphi 0, %s484
      %s502 = sphi 0, %s502
      %s504 = sphi 0, %s502
      %s505 = sphi 0, %s504
      %s519 = sphi 0, %s505
      %s523 = sphi 0, %s523
      %s525 = sphi 0, %s523
      %s526 = sphi 0, %s525
      %s540 = sphi 0, %s526
      %s544 = sphi 0, %s544
      %s546 = sphi 0, %s544
      %s547 = sphi 0, %s546
      %s561 = sphi 0, %s547
      %s565 = sphi 0, %s565
      %s567 = sphi 0, %s565
      %s568 = sphi 0, %s567
      %s582 = sphi 0, %s568
      %s586 = sphi 0, %s586
      %s588 = sphi 0, %s586
      %s589 = sphi 0, %s588
      %s603 = sphi 0, %s589
      %s607 = sphi 0, %s607
      %s609 = sphi 0, %s607
      %s610 = sphi 0, %s609
      %s624 = sphi 0, %s610
      %s628 = sphi 0, %s628
      %s630 = sphi 0, %s628
      %s631 = sphi 0, %s630
      %s645 = sphi 0, %s631
      %s649 = sphi 0, %s649
      %s651 = sphi 0, %s649
      %s652 = sphi 0, %s651
      %s666 = sphi 0, %s652
      %s670 = sphi 0, %s670
      %s672 = sphi 0, %s670
      %s673 = sphi 0, %s672
      %s687 = sphi 0, %s673
      %s691 = sphi 0, %s691
      %s693 = sphi 0, %s691
      %s694 = sphi 0, %s693
      %s708 = sphi 0, %s694
      %s712 = sphi 0, %s712
      %s714 = sphi 0, %s712
      %s715 = sphi 0, %s714
      %s729 = sphi 0, %s715
      %s733 = sphi 0, %s733
      %s735 = sphi 0, %s733
      %s736 = sphi 0, %s735
      %s750 = sphi 0, %s736
      %s754 = sphi 0, %s754
      %s756 = sphi 0, %s754
      %s757 = sphi 0, %s756
      %s771 = sphi 0, %s757
      %s775 = sphi 0, %s775
      %s777 = sphi 0, %s775
      %s778 = sphi 0, %s777
      %s792 = sphi 0, %s778
      %s796 = sphi 0, %s796
      %s798 = sphi 0, %s796
      %s799 = sphi 0, %s798
      %s813 = sphi 0, %s799
      %s817 = sphi 0, %s817
      %s819 = sphi 0, %s817
      %s820 = sphi 0, %s819
      %s834 = sphi 0, %s820
      %s838 = sphi 0, %s838
      %s840 = sphi 0, %s838
      %s841 = sphi 0, %s840
      %s855 = sphi 0, %s841
      %s859 = sphi 0, %s859
      %s861 = sphi 0, %s859
      %s862 = sphi 0, %s861
      %s876 = sphi 0, %s862
      %s880 = sphi 0, %s880
      %s882 = sphi 0, %s880
      %s883 = sphi 0, %s882
      %s897 = sphi 0, %s883
      %s901 = sphi 0, %s901
      %s903 = sphi 0, %s901
      %s904 = sphi 0, %s903
      %s918 = sphi 0, %s904
      %s922 = sphi 0, %s922
      %s924 = sphi 0, %s922
      %s925 = sphi 0, %s924
      %s939 = sphi 0, %s925
      %s945 = sphi 0, %s947
      %s948 = sphi 0, %s945
      %s949 = sphi 0, %s948
      %s965 = sphi 0, %s949
    $region4: #{swin_vit_forward.1} parent=1 // loop_header_branch
      %93 = sbr.rel (%p91) target = $region8
    $region5: #{swin_vit_forward.1} parent=1 // loop_body
      %s95 = ssub.s32 %s90, 1
      %s96 = ssub.s32 %s90, 2
      %s97 = sadd.s32 %s90, 1
      %s98 = ssub.s32 %s90, %s97
      %p99 = scmp.eq.s32.totalorder %s98, 0
      %s101 = sadd.s32 %s100, 1
      %s102 = scalar_select %p99, %s100, %s101
      %p105 = pneg %p99
      %p106 = scmp.eq.s32.totalorder %s90, 1
      %p107 = por %p105, %p106
      %p108 = scmp.ne.s32.totalorder %s100, %s103
      %p109 = scmp.eq.s32.totalorder %s90, 0
      %p110 = por %p108, %p109
      %p111 = scmp.ne.s32.totalorder %s100, %s103
      %p112 = scmp.eq.s32.totalorder %s95, 1
      %p113 = por %p111, %p112
      %p114 = scmp.ne.s32.totalorder %s103, %s104
      %p115 = scmp.eq.s32.totalorder %s95, 0
      %p116 = por %p114, %p115
      %p117 = scmp.ne.s32.totalorder %s103, %s104
      %p118 = scmp.eq.s32.totalorder %s96, 1
      %p119 = por %p117, %p118
      %p121 = scmp.ne.s32.totalorder %s104, %s120
      %p122 = scmp.eq.s32.totalorder %s96, 0
      %p123 = por %p121, %p122
      %s125 = sadd.s32 %s124, 1
      %p128 = scmp.eq.s32.totalorder %s90, 1
      %p129 = scmp.ne.s32.totalorder %s124, %s126
      %p130 = scmp.eq.s32.totalorder %s90, 0
      %p131 = por %p129, %p130
      %p132 = scmp.ne.s32.totalorder %s124, %s126
      %p133 = scmp.eq.s32.totalorder %s95, 1
      %p134 = por %p132, %p133
      %p135 = scmp.ne.s32.totalorder %s126, %s127
      %p136 = scmp.eq.s32.totalorder %s95, 0
      %p137 = por %p135, %p136
      %p138 = scmp.ne.s32.totalorder %s126, %s127
      %p139 = scmp.eq.s32.totalorder %s96, 1
      %p140 = por %p138, %p139
      %p142 = scmp.ne.s32.totalorder %s127, %s141
      %p143 = scmp.eq.s32.totalorder %s96, 0
      %p144 = por %p142, %p143
      %s146 = sadd.s32 %s145, 1
      %p149 = scmp.eq.s32.totalorder %s90, 1
      %p150 = scmp.ne.s32.totalorder %s145, %s147
      %p151 = scmp.eq.s32.totalorder %s90, 0
      %p152 = por %p150, %p151
      %p153 = scmp.ne.s32.totalorder %s145, %s147
      %p154 = scmp.eq.s32.totalorder %s95, 1
      %p155 = por %p153, %p154
      %p156 = scmp.ne.s32.totalorder %s147, %s148
      %p157 = scmp.eq.s32.totalorder %s95, 0
      %p158 = por %p156, %p157
      %p159 = scmp.ne.s32.totalorder %s147, %s148
      %p160 = scmp.eq.s32.totalorder %s96, 1
      %p161 = por %p159, %p160
      %p163 = scmp.ne.s32.totalorder %s148, %s162
      %p164 = scmp.eq.s32.totalorder %s96, 0
      %p165 = por %p163, %p164
      %s167 = sadd.s32 %s166, 1
      %p170 = scmp.eq.s32.totalorder %s90, 1
      %p171 = scmp.ne.s32.totalorder %s166, %s168
      %p172 = scmp.eq.s32.totalorder %s90, 0
      %p173 = por %p171, %p172
      %p174 = scmp.ne.s32.totalorder %s166, %s168
      %p175 = scmp.eq.s32.totalorder %s95, 1
      %p176 = por %p174, %p175
      %p177 = scmp.ne.s32.totalorder %s168, %s169
      %p178 = scmp.eq.s32.totalorder %s95, 0
      %p179 = por %p177, %p178
      %p180 = scmp.ne.s32.totalorder %s168, %s169
      %p181 = scmp.eq.s32.totalorder %s96, 1
      %p182 = por %p180, %p181
      %p184 = scmp.ne.s32.totalorder %s169, %s183
      %p185 = scmp.eq.s32.totalorder %s96, 0
      %p186 = por %p184, %p185
      %s188 = sadd.s32 %s187, 1
      %p191 = scmp.eq.s32.totalorder %s90, 1
      %p192 = scmp.ne.s32.totalorder %s187, %s189
      %p193 = scmp.eq.s32.totalorder %s90, 0
      %p194 = por %p192, %p193
      %p195 = scmp.ne.s32.totalorder %s187, %s189
      %p196 = scmp.eq.s32.totalorder %s95, 1
      %p197 = por %p195, %p196
      %p198 = scmp.ne.s32.totalorder %s189, %s190
      %p199 = scmp.eq.s32.totalorder %s95, 0
      %p200 = por %p198, %p199
      %p201 = scmp.ne.s32.totalorder %s189, %s190
      %p202 = scmp.eq.s32.totalorder %s96, 1
      %p203 = por %p201, %p202
      %p205 = scmp.ne.s32.totalorder %s190, %s204
      %p206 = scmp.eq.s32.totalorder %s96, 0
      %p207 = por %p205, %p206
      %s209 = sadd.s32 %s208, 1
      %p212 = scmp.eq.s32.totalorder %s90, 1
      %p213 = scmp.ne.s32.totalorder %s208, %s210
      %p214 = scmp.eq.s32.totalorder %s90, 0
      %p215 = por %p213, %p214
      %p216 = scmp.ne.s32.totalorder %s208, %s210
      %p217 = scmp.eq.s32.totalorder %s95, 1
      %p218 = por %p216, %p217
      %p219 = scmp.ne.s32.totalorder %s210, %s211
      %p220 = scmp.eq.s32.totalorder %s95, 0
      %p221 = por %p219, %p220
      %p222 = scmp.ne.s32.totalorder %s210, %s211
      %p223 = scmp.eq.s32.totalorder %s96, 1
      %p224 = por %p222, %p223
      %p226 = scmp.ne.s32.totalorder %s211, %s225
      %p227 = scmp.eq.s32.totalorder %s96, 0
      %p228 = por %p226, %p227
      %s230 = sadd.s32 %s229, 1
      %p233 = scmp.eq.s32.totalorder %s90, 1
      %p234 = scmp.ne.s32.totalorder %s229, %s231
      %p235 = scmp.eq.s32.totalorder %s90, 0
      %p236 = por %p234, %p235
      %p237 = scmp.ne.s32.totalorder %s229, %s231
      %p238 = scmp.eq.s32.totalorder %s95, 1
      %p239 = por %p237, %p238
      %p240 = scmp.ne.s32.totalorder %s231, %s232
      %p241 = scmp.eq.s32.totalorder %s95, 0
      %p242 = por %p240, %p241
      %p243 = scmp.ne.s32.totalorder %s231, %s232
      %p244 = scmp.eq.s32.totalorder %s96, 1
      %p245 = por %p243, %p244
      %p247 = scmp.ne.s32.totalorder %s232, %s246
      %p248 = scmp.eq.s32.totalorder %s96, 0
      %p249 = por %p247, %p248
      %s251 = sadd.s32 %s250, 1
      %p254 = scmp.eq.s32.totalorder %s90, 1
      %p255 = scmp.ne.s32.totalorder %s250, %s252
      %p256 = scmp.eq.s32.totalorder %s90, 0
      %p257 = por %p255, %p256
      %p258 = scmp.ne.s32.totalorder %s250, %s252
      %p259 = scmp.eq.s32.totalorder %s95, 1
      %p260 = por %p258, %p259
      %p261 = scmp.ne.s32.totalorder %s252, %s253
      %p262 = scmp.eq.s32.totalorder %s95, 0
      %p263 = por %p261, %p262
      %p264 = scmp.ne.s32.totalorder %s252, %s253
      %p265 = scmp.eq.s32.totalorder %s96, 1
      %p266 = por %p264, %p265
      %p268 = scmp.ne.s32.totalorder %s253, %s267
      %p269 = scmp.eq.s32.totalorder %s96, 0
      %p270 = por %p268, %p269
      %s272 = sadd.s32 %s271, 1
      %p275 = scmp.eq.s32.totalorder %s90, 1
      %p276 = scmp.ne.s32.totalorder %s271, %s273
      %p277 = scmp.eq.s32.totalorder %s90, 0
      %p278 = por %p276, %p277
      %p279 = scmp.ne.s32.totalorder %s271, %s273
      %p280 = scmp.eq.s32.totalorder %s95, 1
      %p281 = por %p279, %p280
      %p282 = scmp.ne.s32.totalorder %s273, %s274
      %p283 = scmp.eq.s32.totalorder %s95, 0
      %p284 = por %p282, %p283
      %p285 = scmp.ne.s32.totalorder %s273, %s274
      %p286 = scmp.eq.s32.totalorder %s96, 1
      %p287 = por %p285, %p286
      %p289 = scmp.ne.s32.totalorder %s274, %s288
      %p290 = scmp.eq.s32.totalorder %s96, 0
      %p291 = por %p289, %p290
      %s293 = sadd.s32 %s292, 1
      %p296 = scmp.eq.s32.totalorder %s90, 1
      %p297 = scmp.ne.s32.totalorder %s292, %s294
      %p298 = scmp.eq.s32.totalorder %s90, 0
      %p299 = por %p297, %p298
      %p300 = scmp.ne.s32.totalorder %s292, %s294
      %p301 = scmp.eq.s32.totalorder %s95, 1
      %p302 = por %p300, %p301
      %p303 = scmp.ne.s32.totalorder %s294, %s295
      %p304 = scmp.eq.s32.totalorder %s95, 0
      %p305 = por %p303, %p304
      %p306 = scmp.ne.s32.totalorder %s294, %s295
      %p307 = scmp.eq.s32.totalorder %s96, 1
      %p308 = por %p306, %p307
      %p310 = scmp.ne.s32.totalorder %s295, %s309
      %p311 = scmp.eq.s32.totalorder %s96, 0
      %p312 = por %p310, %p311
      %s314 = sadd.s32 %s313, 1
      %p317 = scmp.eq.s32.totalorder %s90, 1
      %p318 = scmp.ne.s32.totalorder %s313, %s315
      %p319 = scmp.eq.s32.totalorder %s90, 0
      %p320 = por %p318, %p319
      %p321 = scmp.ne.s32.totalorder %s313, %s315
      %p322 = scmp.eq.s32.totalorder %s95, 1
      %p323 = por %p321, %p322
      %p324 = scmp.ne.s32.totalorder %s315, %s316
      %p325 = scmp.eq.s32.totalorder %s95, 0
      %p326 = por %p324, %p325
      %p327 = scmp.ne.s32.totalorder %s315, %s316
      %p328 = scmp.eq.s32.totalorder %s96, 1
      %p329 = por %p327, %p328
      %p331 = scmp.ne.s32.totalorder %s316, %s330
      %p332 = scmp.eq.s32.totalorder %s96, 0
      %p333 = por %p331, %p332
      %s335 = sadd.s32 %s334, 1
      %p338 = scmp.eq.s32.totalorder %s90, 1
      %p339 = scmp.ne.s32.totalorder %s334, %s336
      %p340 = scmp.eq.s32.totalorder %s90, 0
      %p341 = por %p339, %p340
      %p342 = scmp.ne.s32.totalorder %s334, %s336
      %p343 = scmp.eq.s32.totalorder %s95, 1
      %p344 = por %p342, %p343
      %p345 = scmp.ne.s32.totalorder %s336, %s337
      %p346 = scmp.eq.s32.totalorder %s95, 0
      %p347 = por %p345, %p346
      %p348 = scmp.ne.s32.totalorder %s336, %s337
      %p349 = scmp.eq.s32.totalorder %s96, 1
      %p350 = por %p348, %p349
      %p352 = scmp.ne.s32.totalorder %s337, %s351
      %p353 = scmp.eq.s32.totalorder %s96, 0
      %p354 = por %p352, %p353
      %s356 = sadd.s32 %s355, 1
      %p359 = scmp.eq.s32.totalorder %s90, 1
      %p360 = scmp.ne.s32.totalorder %s355, %s357
      %p361 = scmp.eq.s32.totalorder %s90, 0
      %p362 = por %p360, %p361
      %p363 = scmp.ne.s32.totalorder %s355, %s357
      %p364 = scmp.eq.s32.totalorder %s95, 1
      %p365 = por %p363, %p364
      %p366 = scmp.ne.s32.totalorder %s357, %s358
      %p367 = scmp.eq.s32.totalorder %s95, 0
      %p368 = por %p366, %p367
      %p369 = scmp.ne.s32.totalorder %s357, %s358
      %p370 = scmp.eq.s32.totalorder %s96, 1
      %p371 = por %p369, %p370
      %p373 = scmp.ne.s32.totalorder %s358, %s372
      %p374 = scmp.eq.s32.totalorder %s96, 0
      %p375 = por %p373, %p374
      %s377 = sadd.s32 %s376, 1
      %p380 = scmp.eq.s32.totalorder %s90, 1
      %p381 = scmp.ne.s32.totalorder %s376, %s378
      %p382 = scmp.eq.s32.totalorder %s90, 0
      %p383 = por %p381, %p382
      %p384 = scmp.ne.s32.totalorder %s376, %s378
      %p385 = scmp.eq.s32.totalorder %s95, 1
      %p386 = por %p384, %p385
      %p387 = scmp.ne.s32.totalorder %s378, %s379
      %p388 = scmp.eq.s32.totalorder %s95, 0
      %p389 = por %p387, %p388
      %p390 = scmp.ne.s32.totalorder %s378, %s379
      %p391 = scmp.eq.s32.totalorder %s96, 1
      %p392 = por %p390, %p391
      %p394 = scmp.ne.s32.totalorder %s379, %s393
      %p395 = scmp.eq.s32.totalorder %s96, 0
      %p396 = por %p394, %p395
      %s398 = sadd.s32 %s397, 1
      %p401 = scmp.eq.s32.totalorder %s90, 1
      %p402 = scmp.ne.s32.totalorder %s397, %s399
      %p403 = scmp.eq.s32.totalorder %s90, 0
      %p404 = por %p402, %p403
      %p405 = scmp.ne.s32.totalorder %s397, %s399
      %p406 = scmp.eq.s32.totalorder %s95, 1
      %p407 = por %p405, %p406
      %p408 = scmp.ne.s32.totalorder %s399, %s400
      %p409 = scmp.eq.s32.totalorder %s95, 0
      %p410 = por %p408, %p409
      %p411 = scmp.ne.s32.totalorder %s399, %s400
      %p412 = scmp.eq.s32.totalorder %s96, 1
      %p413 = por %p411, %p412
      %p415 = scmp.ne.s32.totalorder %s400, %s414
      %p416 = scmp.eq.s32.totalorder %s96, 0
      %p417 = por %p415, %p416
      %s419 = sadd.s32 %s418, 1
      %p422 = scmp.eq.s32.totalorder %s90, 1
      %p423 = scmp.ne.s32.totalorder %s418, %s420
      %p424 = scmp.eq.s32.totalorder %s90, 0
      %p425 = por %p423, %p424
      %p426 = scmp.ne.s32.totalorder %s418, %s420
      %p427 = scmp.eq.s32.totalorder %s95, 1
      %p428 = por %p426, %p427
      %p429 = scmp.ne.s32.totalorder %s420, %s421
      %p430 = scmp.eq.s32.totalorder %s95, 0
      %p431 = por %p429, %p430
      %p432 = scmp.ne.s32.totalorder %s420, %s421
      %p433 = scmp.eq.s32.totalorder %s96, 1
      %p434 = por %p432, %p433
      %p436 = scmp.ne.s32.totalorder %s421, %s435
      %p437 = scmp.eq.s32.totalorder %s96, 0
      %p438 = por %p436, %p437
      %s440 = sadd.s32 %s439, 1
      %p443 = scmp.eq.s32.totalorder %s90, 1
      %p444 = scmp.ne.s32.totalorder %s439, %s441
      %p445 = scmp.eq.s32.totalorder %s90, 0
      %p446 = por %p444, %p445
      %p447 = scmp.ne.s32.totalorder %s439, %s441
      %p448 = scmp.eq.s32.totalorder %s95, 1
      %p449 = por %p447, %p448
      %p450 = scmp.ne.s32.totalorder %s441, %s442
      %p451 = scmp.eq.s32.totalorder %s95, 0
      %p452 = por %p450, %p451
      %p453 = scmp.ne.s32.totalorder %s441, %s442
      %p454 = scmp.eq.s32.totalorder %s96, 1
      %p455 = por %p453, %p454
      %p457 = scmp.ne.s32.totalorder %s442, %s456
      %p458 = scmp.eq.s32.totalorder %s96, 0
      %p459 = por %p457, %p458
      %s461 = sadd.s32 %s460, 1
      %p464 = scmp.eq.s32.totalorder %s90, 1
      %p465 = scmp.ne.s32.totalorder %s460, %s462
      %p466 = scmp.eq.s32.totalorder %s90, 0
      %p467 = por %p465, %p466
      %p468 = scmp.ne.s32.totalorder %s460, %s462
      %p469 = scmp.eq.s32.totalorder %s95, 1
      %p470 = por %p468, %p469
      %p471 = scmp.ne.s32.totalorder %s462, %s463
      %p472 = scmp.eq.s32.totalorder %s95, 0
      %p473 = por %p471, %p472
      %p474 = scmp.ne.s32.totalorder %s462, %s463
      %p475 = scmp.eq.s32.totalorder %s96, 1
      %p476 = por %p474, %p475
      %p478 = scmp.ne.s32.totalorder %s463, %s477
      %p479 = scmp.eq.s32.totalorder %s96, 0
      %p480 = por %p478, %p479
      %s482 = sadd.s32 %s481, 1
      %p485 = scmp.eq.s32.totalorder %s90, 1
      %p486 = scmp.ne.s32.totalorder %s481, %s483
      %p487 = scmp.eq.s32.totalorder %s90, 0
      %p488 = por %p486, %p487
      %p489 = scmp.ne.s32.totalorder %s481, %s483
      %p490 = scmp.eq.s32.totalorder %s95, 1
      %p491 = por %p489, %p490
      %p492 = scmp.ne.s32.totalorder %s483, %s484
      %p493 = scmp.eq.s32.totalorder %s95, 0
      %p494 = por %p492, %p493
      %p495 = scmp.ne.s32.totalorder %s483, %s484
      %p496 = scmp.eq.s32.totalorder %s96, 1
      %p497 = por %p495, %p496
      %p499 = scmp.ne.s32.totalorder %s484, %s498
      %p500 = scmp.eq.s32.totalorder %s96, 0
      %p501 = por %p499, %p500
      %s503 = sadd.s32 %s502, 1
      %p506 = scmp.eq.s32.totalorder %s90, 1
      %p507 = scmp.ne.s32.totalorder %s502, %s504
      %p508 = scmp.eq.s32.totalorder %s90, 0
      %p509 = por %p507, %p508
      %p510 = scmp.ne.s32.totalorder %s502, %s504
      %p511 = scmp.eq.s32.totalorder %s95, 1
      %p512 = por %p510, %p511
      %p513 = scmp.ne.s32.totalorder %s504, %s505
      %p514 = scmp.eq.s32.totalorder %s95, 0
      %p515 = por %p513, %p514
      %p516 = scmp.ne.s32.totalorder %s504, %s505
      %p517 = scmp.eq.s32.totalorder %s96, 1
      %p518 = por %p516, %p517
      %p520 = scmp.ne.s32.totalorder %s505, %s519
      %p521 = scmp.eq.s32.totalorder %s96, 0
      %p522 = por %p520, %p521
      %s524 = sadd.s32 %s523, 1
      %p527 = scmp.eq.s32.totalorder %s90, 1
      %p528 = scmp.ne.s32.totalorder %s523, %s525
      %p529 = scmp.eq.s32.totalorder %s90, 0
      %p530 = por %p528, %p529
      %p531 = scmp.ne.s32.totalorder %s523, %s525
      %p532 = scmp.eq.s32.totalorder %s95, 1
      %p533 = por %p531, %p532
      %p534 = scmp.ne.s32.totalorder %s525, %s526
      %p535 = scmp.eq.s32.totalorder %s95, 0
      %p536 = por %p534, %p535
      %p537 = scmp.ne.s32.totalorder %s525, %s526
      %p538 = scmp.eq.s32.totalorder %s96, 1
      %p539 = por %p537, %p538
      %p541 = scmp.ne.s32.totalorder %s526, %s540
      %p542 = scmp.eq.s32.totalorder %s96, 0
      %p543 = por %p541, %p542
      %s545 = sadd.s32 %s544, 1
      %p548 = scmp.eq.s32.totalorder %s90, 1
      %p549 = scmp.ne.s32.totalorder %s544, %s546
      %p550 = scmp.eq.s32.totalorder %s90, 0
      %p551 = por %p549, %p550
      %p552 = scmp.ne.s32.totalorder %s544, %s546
      %p553 = scmp.eq.s32.totalorder %s95, 1
      %p554 = por %p552, %p553
      %p555 = scmp.ne.s32.totalorder %s546, %s547
      %p556 = scmp.eq.s32.totalorder %s95, 0
      %p557 = por %p555, %p556
      %p558 = scmp.ne.s32.totalorder %s546, %s547
      %p559 = scmp.eq.s32.totalorder %s96, 1
      %p560 = por %p558, %p559
      %p562 = scmp.ne.s32.totalorder %s547, %s561
      %p563 = scmp.eq.s32.totalorder %s96, 0
      %p564 = por %p562, %p563
      %s566 = sadd.s32 %s565, 1
      %p569 = scmp.eq.s32.totalorder %s90, 1
      %p570 = scmp.ne.s32.totalorder %s565, %s567
      %p571 = scmp.eq.s32.totalorder %s90, 0
      %p572 = por %p570, %p571
      %p573 = scmp.ne.s32.totalorder %s565, %s567
      %p574 = scmp.eq.s32.totalorder %s95, 1
      %p575 = por %p573, %p574
      %p576 = scmp.ne.s32.totalorder %s567, %s568
      %p577 = scmp.eq.s32.totalorder %s95, 0
      %p578 = por %p576, %p577
      %p579 = scmp.ne.s32.totalorder %s567, %s568
      %p580 = scmp.eq.s32.totalorder %s96, 1
      %p581 = por %p579, %p580
      %p583 = scmp.ne.s32.totalorder %s568, %s582
      %p584 = scmp.eq.s32.totalorder %s96, 0
      %p585 = por %p583, %p584
      %s587 = sadd.s32 %s586, 1
      %p590 = scmp.eq.s32.totalorder %s90, 1
      %p591 = scmp.ne.s32.totalorder %s586, %s588
      %p592 = scmp.eq.s32.totalorder %s90, 0
      %p593 = por %p591, %p592
      %p594 = scmp.ne.s32.totalorder %s586, %s588
      %p595 = scmp.eq.s32.totalorder %s95, 1
      %p596 = por %p594, %p595
      %p597 = scmp.ne.s32.totalorder %s588, %s589
      %p598 = scmp.eq.s32.totalorder %s95, 0
      %p599 = por %p597, %p598
      %p600 = scmp.ne.s32.totalorder %s588, %s589
      %p601 = scmp.eq.s32.totalorder %s96, 1
      %p602 = por %p600, %p601
      %p604 = scmp.ne.s32.totalorder %s589, %s603
      %p605 = scmp.eq.s32.totalorder %s96, 0
      %p606 = por %p604, %p605
      %s608 = sadd.s32 %s607, 1
      %p611 = scmp.eq.s32.totalorder %s90, 1
      %p612 = scmp.ne.s32.totalorder %s607, %s609
      %p613 = scmp.eq.s32.totalorder %s90, 0
      %p614 = por %p612, %p613
      %p615 = scmp.ne.s32.totalorder %s607, %s609
      %p616 = scmp.eq.s32.totalorder %s95, 1
      %p617 = por %p615, %p616
      %p618 = scmp.ne.s32.totalorder %s609, %s610
      %p619 = scmp.eq.s32.totalorder %s95, 0
      %p620 = por %p618, %p619
      %p621 = scmp.ne.s32.totalorder %s609, %s610
      %p622 = scmp.eq.s32.totalorder %s96, 1
      %p623 = por %p621, %p622
      %p625 = scmp.ne.s32.totalorder %s610, %s624
      %p626 = scmp.eq.s32.totalorder %s96, 0
      %p627 = por %p625, %p626
      %s629 = sadd.s32 %s628, 1
      %p632 = scmp.eq.s32.totalorder %s90, 1
      %p633 = scmp.ne.s32.totalorder %s628, %s630
      %p634 = scmp.eq.s32.totalorder %s90, 0
      %p635 = por %p633, %p634
      %p636 = scmp.ne.s32.totalorder %s628, %s630
      %p637 = scmp.eq.s32.totalorder %s95, 1
      %p638 = por %p636, %p637
      %p639 = scmp.ne.s32.totalorder %s630, %s631
      %p640 = scmp.eq.s32.totalorder %s95, 0
      %p641 = por %p639, %p640
      %p642 = scmp.ne.s32.totalorder %s630, %s631
      %p643 = scmp.eq.s32.totalorder %s96, 1
      %p644 = por %p642, %p643
      %p646 = scmp.ne.s32.totalorder %s631, %s645
      %p647 = scmp.eq.s32.totalorder %s96, 0
      %p648 = por %p646, %p647
      %s650 = sadd.s32 %s649, 1
      %p653 = scmp.eq.s32.totalorder %s90, 1
      %p654 = scmp.ne.s32.totalorder %s649, %s651
      %p655 = scmp.eq.s32.totalorder %s90, 0
      %p656 = por %p654, %p655
      %p657 = scmp.ne.s32.totalorder %s649, %s651
      %p658 = scmp.eq.s32.totalorder %s95, 1
      %p659 = por %p657, %p658
      %p660 = scmp.ne.s32.totalorder %s651, %s652
      %p661 = scmp.eq.s32.totalorder %s95, 0
      %p662 = por %p660, %p661
      %p663 = scmp.ne.s32.totalorder %s651, %s652
      %p664 = scmp.eq.s32.totalorder %s96, 1
      %p665 = por %p663, %p664
      %p667 = scmp.ne.s32.totalorder %s652, %s666
      %p668 = scmp.eq.s32.totalorder %s96, 0
      %p669 = por %p667, %p668
      %s671 = sadd.s32 %s670, 1
      %p674 = scmp.eq.s32.totalorder %s90, 1
      %p675 = scmp.ne.s32.totalorder %s670, %s672
      %p676 = scmp.eq.s32.totalorder %s90, 0
      %p677 = por %p675, %p676
      %p678 = scmp.ne.s32.totalorder %s670, %s672
      %p679 = scmp.eq.s32.totalorder %s95, 1
      %p680 = por %p678, %p679
      %p681 = scmp.ne.s32.totalorder %s672, %s673
      %p682 = scmp.eq.s32.totalorder %s95, 0
      %p683 = por %p681, %p682
      %p684 = scmp.ne.s32.totalorder %s672, %s673
      %p685 = scmp.eq.s32.totalorder %s96, 1
      %p686 = por %p684, %p685
      %p688 = scmp.ne.s32.totalorder %s673, %s687
      %p689 = scmp.eq.s32.totalorder %s96, 0
      %p690 = por %p688, %p689
      %s692 = sadd.s32 %s691, 1
      %p695 = scmp.eq.s32.totalorder %s90, 1
      %p696 = scmp.ne.s32.totalorder %s691, %s693
      %p697 = scmp.eq.s32.totalorder %s90, 0
      %p698 = por %p696, %p697
      %p699 = scmp.ne.s32.totalorder %s691, %s693
      %p700 = scmp.eq.s32.totalorder %s95, 1
      %p701 = por %p699, %p700
      %p702 = scmp.ne.s32.totalorder %s693, %s694
      %p703 = scmp.eq.s32.totalorder %s95, 0
      %p704 = por %p702, %p703
      %p705 = scmp.ne.s32.totalorder %s693, %s694
      %p706 = scmp.eq.s32.totalorder %s96, 1
      %p707 = por %p705, %p706
      %p709 = scmp.ne.s32.totalorder %s694, %s708
      %p710 = scmp.eq.s32.totalorder %s96, 0
      %p711 = por %p709, %p710
      %s713 = sadd.s32 %s712, 1
      %p716 = scmp.eq.s32.totalorder %s90, 1
      %p717 = scmp.ne.s32.totalorder %s712, %s714
      %p718 = scmp.eq.s32.totalorder %s90, 0
      %p719 = por %p717, %p718
      %p720 = scmp.ne.s32.totalorder %s712, %s714
      %p721 = scmp.eq.s32.totalorder %s95, 1
      %p722 = por %p720, %p721
      %p723 = scmp.ne.s32.totalorder %s714, %s715
      %p724 = scmp.eq.s32.totalorder %s95, 0
      %p725 = por %p723, %p724
      %p726 = scmp.ne.s32.totalorder %s714, %s715
      %p727 = scmp.eq.s32.totalorder %s96, 1
      %p728 = por %p726, %p727
      %p730 = scmp.ne.s32.totalorder %s715, %s729
      %p731 = scmp.eq.s32.totalorder %s96, 0
      %p732 = por %p730, %p731
      %s734 = sadd.s32 %s733, 1
      %p737 = scmp.eq.s32.totalorder %s90, 1
      %p738 = scmp.ne.s32.totalorder %s733, %s735
      %p739 = scmp.eq.s32.totalorder %s90, 0
      %p740 = por %p738, %p739
      %p741 = scmp.ne.s32.totalorder %s733, %s735
      %p742 = scmp.eq.s32.totalorder %s95, 1
      %p743 = por %p741, %p742
      %p744 = scmp.ne.s32.totalorder %s735, %s736
      %p745 = scmp.eq.s32.totalorder %s95, 0
      %p746 = por %p744, %p745
      %p747 = scmp.ne.s32.totalorder %s735, %s736
      %p748 = scmp.eq.s32.totalorder %s96, 1
      %p749 = por %p747, %p748
      %p751 = scmp.ne.s32.totalorder %s736, %s750
      %p752 = scmp.eq.s32.totalorder %s96, 0
      %p753 = por %p751, %p752
      %s755 = sadd.s32 %s754, 1
      %p758 = scmp.eq.s32.totalorder %s90, 1
      %p759 = scmp.ne.s32.totalorder %s754, %s756
      %p760 = scmp.eq.s32.totalorder %s90, 0
      %p761 = por %p759, %p760
      %p762 = scmp.ne.s32.totalorder %s754, %s756
      %p763 = scmp.eq.s32.totalorder %s95, 1
      %p764 = por %p762, %p763
      %p765 = scmp.ne.s32.totalorder %s756, %s757
      %p766 = scmp.eq.s32.totalorder %s95, 0
      %p767 = por %p765, %p766
      %p768 = scmp.ne.s32.totalorder %s756, %s757
      %p769 = scmp.eq.s32.totalorder %s96, 1
      %p770 = por %p768, %p769
      %p772 = scmp.ne.s32.totalorder %s757, %s771
      %p773 = scmp.eq.s32.totalorder %s96, 0
      %p774 = por %p772, %p773
      %s776 = sadd.s32 %s775, 1
      %p779 = scmp.eq.s32.totalorder %s90, 1
      %p780 = scmp.ne.s32.totalorder %s775, %s777
      %p781 = scmp.eq.s32.totalorder %s90, 0
      %p782 = por %p780, %p781
      %p783 = scmp.ne.s32.totalorder %s775, %s777
      %p784 = scmp.eq.s32.totalorder %s95, 1
      %p785 = por %p783, %p784
      %p786 = scmp.ne.s32.totalorder %s777, %s778
      %p787 = scmp.eq.s32.totalorder %s95, 0
      %p788 = por %p786, %p787
      %p789 = scmp.ne.s32.totalorder %s777, %s778
      %p790 = scmp.eq.s32.totalorder %s96, 1
      %p791 = por %p789, %p790
      %p793 = scmp.ne.s32.totalorder %s778, %s792
      %p794 = scmp.eq.s32.totalorder %s96, 0
      %p795 = por %p793, %p794
      %s797 = sadd.s32 %s796, 1
      %p800 = scmp.eq.s32.totalorder %s90, 1
      %p801 = scmp.ne.s32.totalorder %s796, %s798
      %p802 = scmp.eq.s32.totalorder %s90, 0
      %p803 = por %p801, %p802
      %p804 = scmp.ne.s32.totalorder %s796, %s798
      %p805 = scmp.eq.s32.totalorder %s95, 1
      %p806 = por %p804, %p805
      %p807 = scmp.ne.s32.totalorder %s798, %s799
      %p808 = scmp.eq.s32.totalorder %s95, 0
      %p809 = por %p807, %p808
      %p810 = scmp.ne.s32.totalorder %s798, %s799
      %p811 = scmp.eq.s32.totalorder %s96, 1
      %p812 = por %p810, %p811
      %p814 = scmp.ne.s32.totalorder %s799, %s813
      %p815 = scmp.eq.s32.totalorder %s96, 0
      %p816 = por %p814, %p815
      %s818 = sadd.s32 %s817, 1
      %p821 = scmp.eq.s32.totalorder %s90, 1
      %p822 = scmp.ne.s32.totalorder %s817, %s819
      %p823 = scmp.eq.s32.totalorder %s90, 0
      %p824 = por %p822, %p823
      %p825 = scmp.ne.s32.totalorder %s817, %s819
      %p826 = scmp.eq.s32.totalorder %s95, 1
      %p827 = por %p825, %p826
      %p828 = scmp.ne.s32.totalorder %s819, %s820
      %p829 = scmp.eq.s32.totalorder %s95, 0
      %p830 = por %p828, %p829
      %p831 = scmp.ne.s32.totalorder %s819, %s820
      %p832 = scmp.eq.s32.totalorder %s96, 1
      %p833 = por %p831, %p832
      %p835 = scmp.ne.s32.totalorder %s820, %s834
      %p836 = scmp.eq.s32.totalorder %s96, 0
      %p837 = por %p835, %p836
      %s839 = sadd.s32 %s838, 1
      %p842 = scmp.eq.s32.totalorder %s90, 1
      %p843 = scmp.ne.s32.totalorder %s838, %s840
      %p844 = scmp.eq.s32.totalorder %s90, 0
      %p845 = por %p843, %p844
      %p846 = scmp.ne.s32.totalorder %s838, %s840
      %p847 = scmp.eq.s32.totalorder %s95, 1
      %p848 = por %p846, %p847
      %p849 = scmp.ne.s32.totalorder %s840, %s841
      %p850 = scmp.eq.s32.totalorder %s95, 0
      %p851 = por %p849, %p850
      %p852 = scmp.ne.s32.totalorder %s840, %s841
      %p853 = scmp.eq.s32.totalorder %s96, 1
      %p854 = por %p852, %p853
      %p856 = scmp.ne.s32.totalorder %s841, %s855
      %p857 = scmp.eq.s32.totalorder %s96, 0
      %p858 = por %p856, %p857
      %s860 = sadd.s32 %s859, 1
      %p863 = scmp.eq.s32.totalorder %s90, 1
      %p864 = scmp.ne.s32.totalorder %s859, %s861
      %p865 = scmp.eq.s32.totalorder %s90, 0
      %p866 = por %p864, %p865
      %p867 = scmp.ne.s32.totalorder %s859, %s861
      %p868 = scmp.eq.s32.totalorder %s95, 1
      %p869 = por %p867, %p868
      %p870 = scmp.ne.s32.totalorder %s861, %s862
      %p871 = scmp.eq.s32.totalorder %s95, 0
      %p872 = por %p870, %p871
      %p873 = scmp.ne.s32.totalorder %s861, %s862
      %p874 = scmp.eq.s32.totalorder %s96, 1
      %p875 = por %p873, %p874
      %p877 = scmp.ne.s32.totalorder %s862, %s876
      %p878 = scmp.eq.s32.totalorder %s96, 0
      %p879 = por %p877, %p878
      %s881 = sadd.s32 %s880, 1
      %p884 = scmp.eq.s32.totalorder %s90, 1
      %p885 = scmp.ne.s32.totalorder %s880, %s882
      %p886 = scmp.eq.s32.totalorder %s90, 0
      %p887 = por %p885, %p886
      %p888 = scmp.ne.s32.totalorder %s880, %s882
      %p889 = scmp.eq.s32.totalorder %s95, 1
      %p890 = por %p888, %p889
      %p891 = scmp.ne.s32.totalorder %s882, %s883
      %p892 = scmp.eq.s32.totalorder %s95, 0
      %p893 = por %p891, %p892
      %p894 = scmp.ne.s32.totalorder %s882, %s883
      %p895 = scmp.eq.s32.totalorder %s96, 1
      %p896 = por %p894, %p895
      %p898 = scmp.ne.s32.totalorder %s883, %s897
      %p899 = scmp.eq.s32.totalorder %s96, 0
      %p900 = por %p898, %p899
      %s902 = sadd.s32 %s901, 1
      %p905 = scmp.eq.s32.totalorder %s90, 1
      %p906 = scmp.ne.s32.totalorder %s901, %s903
      %p907 = scmp.eq.s32.totalorder %s90, 0
      %p908 = por %p906, %p907
      %p909 = scmp.ne.s32.totalorder %s901, %s903
      %p910 = scmp.eq.s32.totalorder %s95, 1
      %p911 = por %p909, %p910
      %p912 = scmp.ne.s32.totalorder %s903, %s904
      %p913 = scmp.eq.s32.totalorder %s95, 0
      %p914 = por %p912, %p913
      %p915 = scmp.ne.s32.totalorder %s903, %s904
      %p916 = scmp.eq.s32.totalorder %s96, 1
      %p917 = por %p915, %p916
      %p919 = scmp.ne.s32.totalorder %s904, %s918
      %p920 = scmp.eq.s32.totalorder %s96, 0
      %p921 = por %p919, %p920
      %s923 = sadd.s32 %s922, 1
      %p926 = scmp.eq.s32.totalorder %s90, 1
      %p927 = scmp.ne.s32.totalorder %s922, %s924
      %p928 = scmp.eq.s32.totalorder %s90, 0
      %p929 = por %p927, %p928
      %p930 = scmp.ne.s32.totalorder %s922, %s924
      %p931 = scmp.eq.s32.totalorder %s95, 1
      %p932 = por %p930, %p931
      %p933 = scmp.ne.s32.totalorder %s924, %s925
      %p934 = scmp.eq.s32.totalorder %s95, 0
      %p935 = por %p933, %p934
      %p936 = scmp.ne.s32.totalorder %s924, %s925
      %p937 = scmp.eq.s32.totalorder %s96, 1
      %p938 = por %p936, %p937
      %p940 = scmp.ne.s32.totalorder %s925, %s939
      %p941 = scmp.eq.s32.totalorder %s96, 0
      %p942 = por %p940, %p941
      %s943 = ssub.s32 %s90, %s97
      %p944 = scmp.eq.s32.totalorder %s943, 0
      %s946 = sadd.s32 %s945, 1
      %s947 = scalar_select %p944, %s945, %s946
      %p950 = pneg %p944
      %p951 = scmp.eq.s32.totalorder %s90, 1
      %p952 = por %p950, %p951
      %p953 = scmp.ne.s32.totalorder %s945, %s948
      %p954 = scmp.eq.s32.totalorder %s90, 0
      %p955 = por %p953, %p954
      %p956 = scmp.ne.s32.totalorder %s945, %s948
      %p957 = scmp.eq.s32.totalorder %s95, 1
      %p958 = por %p956, %p957
      %p959 = scmp.ne.s32.totalorder %s948, %s949
      %p960 = scmp.eq.s32.totalorder %s95, 0
      %p961 = por %p959, %p960
      %p962 = scmp.ne.s32.totalorder %s948, %s949
      %p963 = scmp.eq.s32.totalorder %s96, 1
      %p964 = por %p962, %p963
      %p966 = scmp.ne.s32.totalorder %s949, %s965
      %p967 = scmp.eq.s32.totalorder %s96, 0
      %p968 = por %p966, %p967
      %p969 = scmp.le.s32.totalorder 1, %s90
      %p970 = scmp.lt.s32.totalorder %s90, 3
      %p971 = pnand %p969, %p970
      %p972 = pneg %p971
      // Predicated region
      $region9: #{swin_vit_forward.1} parent=5 // pred_check
        _
      $region10: #{swin_vit_forward.1} parent=5 // pred_check_branch
        %974 = sbr.rel (%p971) target = $region12
      $region11: #{swin_vit_forward.1} parent=5 // pred_region
        %s975 = ssub.s32 %s90, 1
        // Predicated region
        $region13: #{swin_vit_forward.1} parent=11 // pred_check
          %p976 = pneg %p137
        $region14: #{swin_vit_forward.1} parent=11 // pred_check_branch
          %978 = sbr.rel (%p976) target = $region16
        $region15: #{swin_vit_forward.1} parent=11 // pred_region
          _
        $region16: #{swin_vit_forward.1} parent=11 // pred_fallthru
          _
        // Predicated region
        $region17: #{swin_vit_forward.1} parent=11 // pred_check
          %p979 = pneg %p158
        $region18: #{swin_vit_forward.1} parent=11 // pred_check_branch
          %981 = sbr.rel (%p979) target = $region20
        $region19: #{swin_vit_forward.1} parent=11 // pred_region
          _
        $region20: #{swin_vit_forward.1} parent=11 // pred_fallthru
          _
        // Predicated region
        $region21: #{swin_vit_forward.1} parent=11 // pred_check
          %p982 = pneg %p179
        $region22: #{swin_vit_forward.1} parent=11 // pred_check_branch
          %984 = sbr.rel (%p982) target = $region24
        $region23: #{swin_vit_forward.1} parent=11 // pred_region
          _
        $region24: #{swin_vit_forward.1} parent=11 // pred_fallthru
          _
        // Predicated region
        $region25: #{swin_vit_forward.1} parent=11 // pred_check
          %p985 = pneg %p200
        $region26: #{swin_vit_forward.1} parent=11 // pred_check_branch
          %987 = sbr.rel (%p985) target = $region28
        $region27: #{swin_vit_forward.1} parent=11 // pred_region
          _
        $region28: #{swin_vit_forward.1} parent=11 // pred_fallthru
          _
        // Predicated region
        $region29: #{swin_vit_forward.1} parent=11 // pred_check
          %p988 = pneg %p221
        $region30: #{swin_vit_forward.1} parent=11 // pred_check_branch
          %990 = sbr.rel (%p988) target = $region32
        $region31: #{swin_vit_forward.1} parent=11 // pred_region
          _
        $region32: #{swin_vit_forward.1} parent=11 // pred_fallthru
          _
        // Predicated region
        $region33: #{swin_vit_forward.1} parent=11 // pred_check
          %p991 = pneg %p242
        $region34: #{swin_vit_forward.1} parent=11 // pred_check_branch
          %993 = sbr.rel (%p991) target = $region36
        $region35: #{swin_vit_forward.1} parent=11 // pred_region
          _
        $region36: #{swin_vit_forward.1} parent=11 // pred_fallthru
          _
        // Predicated region
        $region37: #{swin_vit_forward.1} parent=11 // pred_check
          %p994 = pneg %p263
        $region38: #{swin_vit_forward.1} parent=11 // pred_check_branch
          %996 = sbr.rel (%p994) target = $region40
        $region39: #{swin_vit_forward.1} parent=11 // pred_region
          _
        $region40: #{swin_vit_forward.1} parent=11 // pred_fallthru
          _
        // Predicated region
        $region41: #{swin_vit_forward.1} parent=11 // pred_check
          %p997 = pneg %p284
        $region42: #{swin_vit_forward.1} parent=11 // pred_check_branch
          %999 = sbr.rel (%p997) target = $region44
        $region43: #{swin_vit_forward.1} parent=11 // pred_region
          _
        $region44: #{swin_vit_forward.1} parent=11 // pred_fallthru
          _
        // Predicated region
        $region45: #{swin_vit_forward.1} parent=11 // pred_check
          %p1000 = pneg %p305
        $region46: #{swin_vit_forward.1} parent=11 // pred_check_branch
          %1002 = sbr.rel (%p1000) target = $region48
        $region47: #{swin_vit_forward.1} parent=11 // pred_region
          _
        $region48: #{swin_vit_forward.1} parent=11 // pred_fallthru
          _
        // Predicated region
        $region49: #{swin_vit_forward.1} parent=11 // pred_check
          %p1003 = pneg %p326
        $region50: #{swin_vit_forward.1} parent=11 // pred_check_branch
          %1005 = sbr.rel (%p1003) target = $region52
        $region51: #{swin_vit_forward.1} parent=11 // pred_region
          _
        $region52: #{swin_vit_forward.1} parent=11 // pred_fallthru
          _
        // Predicated region
        $region53: #{swin_vit_forward.1} parent=11 // pred_check
          %p1006 = pneg %p347
        $region54: #{swin_vit_forward.1} parent=11 // pred_check_branch
          %1008 = sbr.rel (%p1006) target = $region56
        $region55: #{swin_vit_forward.1} parent=11 // pred_region
          _
        $region56: #{swin_vit_forward.1} parent=11 // pred_fallthru
          _
        // Predicated region
        $region57: #{swin_vit_forward.1} parent=11 // pred_check
          %p1009 = pneg %p368
        $region58: #{swin_vit_forward.1} parent=11 // pred_check_branch
          %1011 = sbr.rel (%p1009) target = $region60
        $region59: #{swin_vit_forward.1} parent=11 // pred_region
          _
        $region60: #{swin_vit_forward.1} parent=11 // pred_fallthru
          _
        // Predicated region
        $region61: #{swin_vit_forward.1} parent=11 // pred_check
          %p1012 = pneg %p389
        $region62: #{swin_vit_forward.1} parent=11 // pred_check_branch
          %1014 = sbr.rel (%p1012) target = $region64
        $region63: #{swin_vit_forward.1} parent=11 // pred_region
          _
        $region64: #{swin_vit_forward.1} parent=11 // pred_fallthru
          _
        // Predicated region
        $region65: #{swin_vit_forward.1} parent=11 // pred_check
          %p1015 = pneg %p410
        $region66: #{swin_vit_forward.1} parent=11 // pred_check_branch
          %1017 = sbr.rel (%p1015) target = $region68
        $region67: #{swin_vit_forward.1} parent=11 // pred_region
          _
        $region68: #{swin_vit_forward.1} parent=11 // pred_fallthru
          _
        // Predicated region
        $region69: #{swin_vit_forward.1} parent=11 // pred_check
          %p1018 = pneg %p431
        $region70: #{swin_vit_forward.1} parent=11 // pred_check_branch
          %1020 = sbr.rel (%p1018) target = $region72
        $region71: #{swin_vit_forward.1} parent=11 // pred_region
          _
        $region72: #{swin_vit_forward.1} parent=11 // pred_fallthru
          _
        // Predicated region
        $region73: #{swin_vit_forward.1} parent=11 // pred_check
          %p1021 = pneg %p452
        $region74: #{swin_vit_forward.1} parent=11 // pred_check_branch
          %1023 = sbr.rel (%p1021) target = $region76
        $region75: #{swin_vit_forward.1} parent=11 // pred_region
          _
        $region76: #{swin_vit_forward.1} parent=11 // pred_fallthru
          _
        // Predicated region
        $region77: #{swin_vit_forward.1} parent=11 // pred_check
          %p1024 = pneg %p473
        $region78: #{swin_vit_forward.1} parent=11 // pred_check_branch
          %1026 = sbr.rel (%p1024) target = $region80
        $region79: #{swin_vit_forward.1} parent=11 // pred_region
          _
        $region80: #{swin_vit_forward.1} parent=11 // pred_fallthru
          _
        // Predicated region
        $region81: #{swin_vit_forward.1} parent=11 // pred_check
          %p1027 = pneg %p494
        $region82: #{swin_vit_forward.1} parent=11 // pred_check_branch
          %1029 = sbr.rel (%p1027) target = $region84
        $region83: #{swin_vit_forward.1} parent=11 // pred_region
          _
        $region84: #{swin_vit_forward.1} parent=11 // pred_fallthru
          _
        // Predicated region
        $region85: #{swin_vit_forward.1} parent=11 // pred_check
          %p1030 = pneg %p515
        $region86: #{swin_vit_forward.1} parent=11 // pred_check_branch
          %1032 = sbr.rel (%p1030) target = $region88
        $region87: #{swin_vit_forward.1} parent=11 // pred_region
          _
        $region88: #{swin_vit_forward.1} parent=11 // pred_fallthru
          _
        // Predicated region
        $region89: #{swin_vit_forward.1} parent=11 // pred_check
          %p1033 = pneg %p536
        $region90: #{swin_vit_forward.1} parent=11 // pred_check_branch
          %1035 = sbr.rel (%p1033) target = $region92
        $region91: #{swin_vit_forward.1} parent=11 // pred_region
          _
        $region92: #{swin_vit_forward.1} parent=11 // pred_fallthru
          _
        // Predicated region
        $region93: #{swin_vit_forward.1} parent=11 // pred_check
          %p1036 = pneg %p557
        $region94: #{swin_vit_forward.1} parent=11 // pred_check_branch
          %1038 = sbr.rel (%p1036) target = $region96
        $region95: #{swin_vit_forward.1} parent=11 // pred_region
          _
        $region96: #{swin_vit_forward.1} parent=11 // pred_fallthru
          _
        // Predicated region
        $region97: #{swin_vit_forward.1} parent=11 // pred_check
          %p1039 = pneg %p578
        $region98: #{swin_vit_forward.1} parent=11 // pred_check_branch
          %1041 = sbr.rel (%p1039) target = $region100
        $region99: #{swin_vit_forward.1} parent=11 // pred_region
          _
        $region100: #{swin_vit_forward.1} parent=11 // pred_fallthru
          _
        // Predicated region
        $region101: #{swin_vit_forward.1} parent=11 // pred_check
          %p1042 = pneg %p599
        $region102: #{swin_vit_forward.1} parent=11 // pred_check_branch
          %1044 = sbr.rel (%p1042) target = $region104
        $region103: #{swin_vit_forward.1} parent=11 // pred_region
          _
        $region104: #{swin_vit_forward.1} parent=11 // pred_fallthru
          _
        // Predicated region
        $region105: #{swin_vit_forward.1} parent=11 // pred_check
          %p1045 = pneg %p620
        $region106: #{swin_vit_forward.1} parent=11 // pred_check_branch
          %1047 = sbr.rel (%p1045) target = $region108
        $region107: #{swin_vit_forward.1} parent=11 // pred_region
          _
        $region108: #{swin_vit_forward.1} parent=11 // pred_fallthru
          _
        // Predicated region
        $region109: #{swin_vit_forward.1} parent=11 // pred_check
          %p1048 = pneg %p641
        $region110: #{swin_vit_forward.1} parent=11 // pred_check_branch
          %1050 = sbr.rel (%p1048) target = $region112
        $region111: #{swin_vit_forward.1} parent=11 // pred_region
          _
        $region112: #{swin_vit_forward.1} parent=11 // pred_fallthru
          _
        // Predicated region
        $region113: #{swin_vit_forward.1} parent=11 // pred_check
          %p1051 = pneg %p662
        $region114: #{swin_vit_forward.1} parent=11 // pred_check_branch
          %1053 = sbr.rel (%p1051) target = $region116
        $region115: #{swin_vit_forward.1} parent=11 // pred_region
          _
        $region116: #{swin_vit_forward.1} parent=11 // pred_fallthru
          _
        // Predicated region
        $region117: #{swin_vit_forward.1} parent=11 // pred_check
          %p1054 = pneg %p683
        $region118: #{swin_vit_forward.1} parent=11 // pred_check_branch
          %1056 = sbr.rel (%p1054) target = $region120
        $region119: #{swin_vit_forward.1} parent=11 // pred_region
          _
        $region120: #{swin_vit_forward.1} parent=11 // pred_fallthru
          _
        // Predicated region
        $region121: #{swin_vit_forward.1} parent=11 // pred_check
          %p1057 = pneg %p704
        $region122: #{swin_vit_forward.1} parent=11 // pred_check_branch
          %1059 = sbr.rel (%p1057) target = $region124
        $region123: #{swin_vit_forward.1} parent=11 // pred_region
          _
        $region124: #{swin_vit_forward.1} parent=11 // pred_fallthru
          _
        // Predicated region
        $region125: #{swin_vit_forward.1} parent=11 // pred_check
          %p1060 = pneg %p725
        $region126: #{swin_vit_forward.1} parent=11 // pred_check_branch
          %1062 = sbr.rel (%p1060) target = $region128
        $region127: #{swin_vit_forward.1} parent=11 // pred_region
          _
        $region128: #{swin_vit_forward.1} parent=11 // pred_fallthru
          _
        // Predicated region
        $region129: #{swin_vit_forward.1} parent=11 // pred_check
          %p1063 = pneg %p746
        $region130: #{swin_vit_forward.1} parent=11 // pred_check_branch
          %1065 = sbr.rel (%p1063) target = $region132
        $region131: #{swin_vit_forward.1} parent=11 // pred_region
          _
        $region132: #{swin_vit_forward.1} parent=11 // pred_fallthru
          _
        // Predicated region
        $region133: #{swin_vit_forward.1} parent=11 // pred_check
          %p1066 = pneg %p767
        $region134: #{swin_vit_forward.1} parent=11 // pred_check_branch
          %1068 = sbr.rel (%p1066) target = $region136
        $region135: #{swin_vit_forward.1} parent=11 // pred_region
          _
        $region136: #{swin_vit_forward.1} parent=11 // pred_fallthru
          _
        // Predicated region
        $region137: #{swin_vit_forward.1} parent=11 // pred_check
          %p1069 = pneg %p788
        $region138: #{swin_vit_forward.1} parent=11 // pred_check_branch
          %1071 = sbr.rel (%p1069) target = $region140
        $region139: #{swin_vit_forward.1} parent=11 // pred_region
          _
        $region140: #{swin_vit_forward.1} parent=11 // pred_fallthru
          _
        // Predicated region
        $region141: #{swin_vit_forward.1} parent=11 // pred_check
          %p1072 = pneg %p809
        $region142: #{swin_vit_forward.1} parent=11 // pred_check_branch
          %1074 = sbr.rel (%p1072) target = $region144
        $region143: #{swin_vit_forward.1} parent=11 // pred_region
          _
        $region144: #{swin_vit_forward.1} parent=11 // pred_fallthru
          _
        // Predicated region
        $region145: #{swin_vit_forward.1} parent=11 // pred_check
          %p1075 = pneg %p830
        $region146: #{swin_vit_forward.1} parent=11 // pred_check_branch
          %1077 = sbr.rel (%p1075) target = $region148
        $region147: #{swin_vit_forward.1} parent=11 // pred_region
          _
        $region148: #{swin_vit_forward.1} parent=11 // pred_fallthru
          _
        // Predicated region
        $region149: #{swin_vit_forward.1} parent=11 // pred_check
          %p1078 = pneg %p851
        $region150: #{swin_vit_forward.1} parent=11 // pred_check_branch
          %1080 = sbr.rel (%p1078) target = $region152
        $region151: #{swin_vit_forward.1} parent=11 // pred_region
          _
        $region152: #{swin_vit_forward.1} parent=11 // pred_fallthru
          _
        // Predicated region
        $region153: #{swin_vit_forward.1} parent=11 // pred_check
          %p1081 = pneg %p872
        $region154: #{swin_vit_forward.1} parent=11 // pred_check_branch
          %1083 = sbr.rel (%p1081) target = $region156
        $region155: #{swin_vit_forward.1} parent=11 // pred_region
          _
        $region156: #{swin_vit_forward.1} parent=11 // pred_fallthru
          _
        // Predicated region
        $region157: #{swin_vit_forward.1} parent=11 // pred_check
          %p1084 = pneg %p893
        $region158: #{swin_vit_forward.1} parent=11 // pred_check_branch
          %1086 = sbr.rel (%p1084) target = $region160
        $region159: #{swin_vit_forward.1} parent=11 // pred_region
          _
        $region160: #{swin_vit_forward.1} parent=11 // pred_fallthru
          _
        // Predicated region
        $region161: #{swin_vit_forward.1} parent=11 // pred_check
          %p1087 = pneg %p914
        $region162: #{swin_vit_forward.1} parent=11 // pred_check_branch
          %1089 = sbr.rel (%p1087) target = $region164
        $region163: #{swin_vit_forward.1} parent=11 // pred_region
          _
        $region164: #{swin_vit_forward.1} parent=11 // pred_fallthru
          _
        // Predicated region
        $region165: #{swin_vit_forward.1} parent=11 // pred_check
          %p1090 = pneg %p935
        $region166: #{swin_vit_forward.1} parent=11 // pred_check_branch
          %1092 = sbr.rel (%p1090) target = $region168
        $region167: #{swin_vit_forward.1} parent=11 // pred_region
          _
        $region168: #{swin_vit_forward.1} parent=11 // pred_fallthru
          _
      $region12: #{swin_vit_forward.1} parent=5 // pred_fallthru
        _
      %p1093 = scmp.lt.s32.totalorder %s90, 2
      // Predicated region
      $region169: #{swin_vit_forward.1} parent=5 // pred_check
        %p1094 = pneg %p1093
      $region170: #{swin_vit_forward.1} parent=5 // pred_check_branch
        %1096 = sbr.rel (%p1094) target = $region172
      $region171: #{swin_vit_forward.1} parent=5 // pred_region
        // Predicated region
        $region173: #{swin_vit_forward.1} parent=171 // pred_check
          %p1097 = pneg %p110
        $region174: #{swin_vit_forward.1} parent=171 // pred_check_branch
          %1099 = sbr.rel (%p1097) target = $region176
        $region175: #{swin_vit_forward.1} parent=171 // pred_region
          %p1100 = scmp.lt.s32.totalorder %s90, 1
          %s1101 = scalar_select %p1100, %s90, 1
          %s1102 = smul.addr %s1101, 2
          %s1103 = smul.addr %s1102, 8
          %s1104 = scalar_lea.vmem %s1, %s1103
        $region176: #{swin_vit_forward.1} parent=171 // pred_fallthru
          _
      $region172: #{swin_vit_forward.1} parent=5 // pred_fallthru
        _
      %p1105 = scmp.le.s32.totalorder 1, %s90
      %p1106 = scmp.lt.s32.totalorder %s90, 3
      %p1107 = pnand %p1105, %p1106
      %p1108 = pneg %p1107
      // Predicated region
      $region177: #{swin_vit_forward.1} parent=5 // pred_check
        _
      $region178: #{swin_vit_forward.1} parent=5 // pred_check_branch
        %1110 = sbr.rel (%p1107) target = $region180
      $region179: #{swin_vit_forward.1} parent=5 // pred_region
        %s1111 = ssub.s32 %s90, 1
        %p1112 = scmp.lt.s32.totalorder %s95, 1
        %s1113 = scalar_select %p1112, %s95, 1
        %s1114 = smul.addr %s1113, 2
        %s1115 = smul.addr %s1114, 8
        %s1116 = scalar_lea.vmem %s1, %s1115
        %p1117 = pneg %p116
        %p1118 = pneg %p113
        %p1119 = pneg %p137
        %p1120 = pneg %p134
        %p1121 = pneg %p158
        %p1122 = pneg %p155
        %p1123 = pneg %p179
        %p1124 = pneg %p176
        %p1125 = pneg %p200
        %p1126 = pneg %p197
        %p1127 = pneg %p221
        %p1128 = pneg %p218
        %p1129 = pneg %p242
        %p1130 = pneg %p239
        %p1131 = pneg %p263
        %p1132 = pneg %p260
        %p1133 = pneg %p284
        %p1134 = pneg %p281
        %p1135 = pneg %p305
        %p1136 = pneg %p302
        %p1137 = pneg %p326
        %p1138 = pneg %p323
        %p1139 = pneg %p347
        %p1140 = pneg %p344
        %p1141 = pneg %p368
        %p1142 = pneg %p365
        %p1143 = pneg %p389
        %p1144 = pneg %p386
        %p1145 = pneg %p410
        %p1146 = pneg %p407
        %p1147 = pneg %p431
        %p1148 = pneg %p428
        %p1149 = pneg %p452
        %p1150 = pneg %p449
        %p1151 = pneg %p473
        %p1152 = pneg %p470
        %p1153 = pneg %p494
        %p1154 = pneg %p491
        %p1155 = pneg %p515
        %p1156 = pneg %p512
        %p1157 = pneg %p536
        %p1158 = pneg %p533
        %p1159 = pneg %p557
        %p1160 = pneg %p554
        %p1161 = pneg %p578
        %p1162 = pneg %p575
        %p1163 = pneg %p599
        %p1164 = pneg %p596
        %p1165 = pneg %p620
        %p1166 = pneg %p617
        %p1167 = pneg %p641
        %p1168 = pneg %p638
        %p1169 = pneg %p662
        %p1170 = pneg %p659
        %p1171 = pneg %p683
        %p1172 = pneg %p680
        %p1173 = pneg %p704
        %p1174 = pneg %p701
        %p1175 = pneg %p725
        %p1176 = pneg %p722
        %p1177 = pneg %p746
        %p1178 = pneg %p743
        %p1179 = pneg %p767
        %p1180 = pneg %p764
        %p1181 = pneg %p788
        %p1182 = pneg %p785
        %p1183 = pneg %p809
        %p1184 = pneg %p806
        %p1185 = pneg %p830
        %p1186 = pneg %p827
        %p1187 = pneg %p851
        %p1188 = pneg %p848
        %p1189 = pneg %p872
        %p1190 = pneg %p869
        %p1191 = pneg %p893
        %p1192 = pneg %p890
        %p1193 = pneg %p914
        %p1194 = pneg %p911
        %p1195 = pneg %p935
        %p1196 = pneg %p932
        %p1197 = pneg %p961
        %p1198 = pneg %p958
        %s1199 = sand.u32 %s948, 1
        %s1200 = scalar_lea.sflag [#allocation3], %s1199
        %s1201 = sand.u32 %s948, 1
        %s1202 = scalar_lea.vmem [#allocation2], %s1201
        %p1203 = scmp.lt.s32.totalorder %s95, 1
        %s1204 = scalar_select %p1203, %s95, 1
        %s1205 = smul.addr %s1204, 2
        %s1206 = smul.addr %s1205, 8
        %s1207 = scalar_lea.vmem %s1, %s1206
        %v1208 = vld [vmem:[%s3] sm:$0xff]
        %v1209 = vld [vmem:[%s3 + $0x8] sm:$0xff]
        %v1210 = vld [vmem:[%s3 + $0x10] sm:$0xff]
        %v1211 = vld [vmem:[%s3 + $0x18] sm:$0xff]
        %v1212 = vld [vmem:[%s3 + $0x20] sm:$0xff]
        %v1213 = vld [vmem:[%s3 + $0x28] sm:$0xff]
        %v1214 = vld [vmem:[%s5] sm:$0x1]
        %v1215 = vld [vmem:[%s7] sm:$0x1]
        %v1216 = vld [vmem:[%s9] sm:$0x1]
        %v1217 = vld [vmem:[%s11] sm:$0x1]
        %v1218 = vld [vmem:[%s13] sm:$0x1]
        %v1219 = vld [vmem:[%s15] sm:$0xff]
        %v1220 = vld [vmem:[%s15 + $0x8] sm:$0xff]
        %v1221 = vld [vmem:[%s15 + $0x10] sm:$0xff]
        %v1222 = vld [vmem:[%s15 + $0x18] sm:$0xff]
        %v1223 = vld [vmem:[%s17] sm:$0x1]
        %v1224 = vld [vmem:[%s21] sm:$0xff]
        %v1225 = vld [vmem:[%s21 + $0x8] sm:$0xff]
        %v1226 = vld [vmem:[%s21 + $0x10] sm:$0xff]
        %v1227 = vld [vmem:[%s21 + $0x18] sm:$0xff]
        %v1228 = vld [vmem:[%s23] sm:$0x1]
        %v1229 = vld [vmem:[%s25] sm:$0x1]
        %v1230 = vld [vmem:[%s27] sm:$0x1]
        %v1231 = vld [vmem:[%s29] sm:$0xff]
        %v1232 = vld [vmem:[%s29 + $0x8] sm:$0xff]
        %v1233 = vld [vmem:[%s29 + $0x10] sm:$0xff]
        %v1234 = vld [vmem:[%s29 + $0x18] sm:$0xff]
        %v1235 = vld [vmem:[%s31] sm:$0x1]
        %v1236 = vld [vmem:[%s33] sm:$0xff]
        %v1237 = vld [vmem:[%s33 + $0x8] sm:$0xff]
        %v1238 = vld [vmem:[%s33 + $0x10] sm:$0xff]
        %v1239 = vld [vmem:[%s33 + $0x18] sm:$0xff]
        %v1240 = vld [vmem:[%s33 + $0x20] sm:$0xff]
        %v1241 = vld [vmem:[%s33 + $0x28] sm:$0xff]
        %v1242 = vld [vmem:[%s33 + $0x30] sm:$0xff]
        %v1243 = vld [vmem:[%s33 + $0x38] sm:$0xff]
        %v1244 = vld [vmem:[%s35] sm:$0x1]
        %v1245 = vld [vmem:[%s39] sm:$0x1]
        %v1246 = vld [vmem:[%s41] sm:$0x1]
        %v1247 = vld [vmem:[%s43] sm:$0xff]
        %v1248 = vld [vmem:[%s43 + $0x8] sm:$0xff]
        %v1249 = vld [vmem:[%s43 + $0x10] sm:$0xff]
        %v1250 = vld [vmem:[%s43 + $0x18] sm:$0xff]
        %v1251 = vld [vmem:[%s43 + $0x20] sm:$0xff]
        %v1252 = vld [vmem:[%s43 + $0x28] sm:$0xff]
        %v1253 = vld [vmem:[%s43 + $0x30] sm:$0xff]
        %v1254 = vld [vmem:[%s43 + $0x38] sm:$0xff]
        %v1255 = vld [vmem:[%s43 + $0x40] sm:$0xff]
        %v1256 = vld [vmem:[%s43 + $0x48] sm:$0xff]
        %v1257 = vld [vmem:[%s43 + $0x50] sm:$0xff]
        %v1258 = vld [vmem:[%s43 + $0x58] sm:$0xff]
        %v1259 = vld [vmem:[%s43 + $0x60] sm:$0xff]
        %v1260 = vld [vmem:[%s43 + $0x68] sm:$0xff]
        %v1261 = vld [vmem:[%s43 + $0x70] sm:$0xff]
        %v1262 = vld [vmem:[%s43 + $0x78] sm:$0xff]
        %v1263 = vld [vmem:[%s45] sm:$0x1]
        %v1264 = vld [vmem:[%s47] sm:$0x1]
        %v1265 = vld [vmem:[%s49] sm:$0x1]
        %v1266 = vld [vmem:[%s51] sm:$0xff]
        %v1267 = vld [vmem:[%s51 + $0x8] sm:$0xff]
        %v1268 = vld [vmem:[%s51 + $0x10] sm:$0xff]
        %v1269 = vld [vmem:[%s51 + $0x18] sm:$0xff]
        %v1270 = vld [vmem:[%s51 + $0x20] sm:$0xff]
        %v1271 = vld [vmem:[%s51 + $0x28] sm:$0xff]
        %v1272 = vld [vmem:[%s51 + $0x30] sm:$0xff]
        %v1273 = vld [vmem:[%s51 + $0x38] sm:$0xff]
        %v1274 = vld [vmem:[%s51 + $0x40] sm:$0xff]
        %v1275 = vld [vmem:[%s51 + $0x48] sm:$0xff]
        %v1276 = vld [vmem:[%s51 + $0x50] sm:$0xff]
        %v1277 = vld [vmem:[%s51 + $0x58] sm:$0xff]
        %v1278 = vld [vmem:[%s51 + $0x60] sm:$0xff]
        %v1279 = vld [vmem:[%s51 + $0x68] sm:$0xff]
        %v1280 = vld [vmem:[%s51 + $0x70] sm:$0xff]
        %v1281 = vld [vmem:[%s51 + $0x78] sm:$0xff]
        %v1282 = vld [vmem:[%s53] sm:$0x3]
        %v1283 = vld [vmem:[%s57] sm:$0xff]
        %v1284 = vld [vmem:[%s57 + $0x8] sm:$0xff]
        %v1285 = vld [vmem:[%s57 + $0x10] sm:$0xff]
        %v1286 = vld [vmem:[%s57 + $0x18] sm:$0xff]
        %v1287 = vld [vmem:[%s57 + $0x20] sm:$0xff]
        %v1288 = vld [vmem:[%s57 + $0x28] sm:$0xff]
        %v1289 = vld [vmem:[%s57 + $0x30] sm:$0xff]
        %v1290 = vld [vmem:[%s57 + $0x38] sm:$0xff]
        %v1291 = vld [vmem:[%s59] sm:$0x1]
        %v1292 = vld [vmem:[%s61] sm:$0x1]
        %v1293 = vld [vmem:[%s63] sm:$0x1]
        %v1294 = vld [vmem:[%s65] sm:$0xff]
        %v1295 = vld [vmem:[%s65 + $0x8] sm:$0xff]
        %v1296 = vld [vmem:[%s65 + $0x10] sm:$0xff]
        %v1297 = vld [vmem:[%s65 + $0x18] sm:$0xff]
        %v1298 = vld [vmem:[%s65 + $0x20] sm:$0xff]
        %v1299 = vld [vmem:[%s65 + $0x28] sm:$0xff]
        %v1300 = vld [vmem:[%s65 + $0x30] sm:$0xff]
        %v1301 = vld [vmem:[%s65 + $0x38] sm:$0xff]
        %v1302 = vld [vmem:[%s67] sm:$0x1]
        %v1303 = vld [vmem:[%s69] sm:$0xff]
        %v1304 = vld [vmem:[%s69 + $0x8] sm:$0xff]
        %v1305 = vld [vmem:[%s69 + $0x10] sm:$0xff]
        %v1306 = vld [vmem:[%s69 + $0x18] sm:$0xff]
        %v1307 = vld [vmem:[%s69 + $0x20] sm:$0xff]
        %v1308 = vld [vmem:[%s69 + $0x28] sm:$0xff]
        %v1309 = vld [vmem:[%s69 + $0x30] sm:$0xff]
        %v1310 = vld [vmem:[%s69 + $0x38] sm:$0xff]
        %v1311 = vld [vmem:[%s69 + $0x40] sm:$0xff]
        %v1312 = vld [vmem:[%s69 + $0x48] sm:$0xff]
        %v1313 = vld [vmem:[%s69 + $0x50] sm:$0xff]
        %v1314 = vld [vmem:[%s69 + $0x58] sm:$0xff]
        %v1315 = vld [vmem:[%s69 + $0x60] sm:$0xff]
        %v1316 = vld [vmem:[%s69 + $0x68] sm:$0xff]
        %v1317 = vld [vmem:[%s69 + $0x70] sm:$0xff]
        %v1318 = vld [vmem:[%s69 + $0x78] sm:$0xff]
        %v1319 = vld [vmem:[%s71] sm:$0x1]
        %v1320 = vld [vmem:[%s73] sm:$0x1]
        %v1321 = vld [vmem:[%s75] sm:$0x1]
        %v1322 = vld [vmem:[%s77] sm:$0xff]
        %v1323 = vld [vmem:[%s77 + $0x8] sm:$0xff]
        %v1324 = vld [vmem:[%s77 + $0x10] sm:$0xff]
        %v1325 = vld [vmem:[%s77 + $0x18] sm:$0xff]
        %v1326 = vld [vmem:[%s77 + $0x20] sm:$0xff]
        %v1327 = vld [vmem:[%s77 + $0x28] sm:$0xff]
        %v1328 = vld [vmem:[%s77 + $0x30] sm:$0xff]
        %v1329 = vld [vmem:[%s77 + $0x38] sm:$0xff]
        %v1330 = vld [vmem:[%s79] sm:$0x1]
        %v1331 = vld [vmem:[%s1207] sm:$0xff]
        %v1332 = vld [vmem:[%s1207 + $0x8] sm:$0xff]
        %v1334 = vlaneseq
        %v1335 = vshrl.u32 %v1334, 7
        %v1336 = vsub.s32 0, %v1335
        %v1337 = vrot.slane %v1214, %v1336
        %vm1339 = vcmask 392192
        %v1341 = vsel %vm1339, %v1331, 0
        %v1344 = vsel %vm1339, %v1332, 0
        %1346 = vmatprep.subr.mxu0 0.0
        %1347 = vmatpush1.msra.mxu0 0.0
        %1348 = vmatprep.subr.mxu0 0.0
        %1349 = vmatpush1.msra.mxu0 0.0
        %1350 = vmatprep.subr.mxu0 0.0
        %1351 = vmatpush1.msra.mxu0 0.0
        %1352 = vmatprep.subr.mxu0 0.0
        %1353 = vmatpush1.msra.mxu0 0.0
        %1354 = vmatprep.subr.mxu0 0.0
        %1355 = vmatpush1.msra.mxu0 0.0
        %1356 = vmatprep.subr.mxu0 0.0
        %1357 = vmatpush1.msra.mxu0 0.0
        %1358 = vmatprep.subr.mxu0 0.0
        %1359 = vmatpush1.msra.mxu0 0.0
        %1360 = vmatprep.subr.mxu0 0.0
        %1361 = vmatpush1.msra.mxu0 0.0
        %1362 = vmatprep.subr.mxu0 0.0
        %1363 = vmatpush1.msra.mxu0 0.0
        %1364 = vmatprep.subr.mxu0 0.0
        %1365 = vmatpush1.msra.mxu0 0.0
        %1366 = vmatprep.subr.mxu0 0.0
        %1367 = vmatpush1.msra.mxu0 %v1213
        %1368 = vmatprep.subr.mxu0 0.0
        %1369 = vmatpush1.msra.mxu0 %v1212
        %1370 = vmatprep.subr.mxu0 0.0
        %1371 = vmatpush1.msra.mxu0 %v1211
        %1372 = vmatprep.subr.mxu0 0.0
        %1373 = vmatpush1.msra.mxu0 %v1210
        %1374 = vmatprep.subr.mxu0 0.0
        %1375 = vmatpush1.msra.mxu0 %v1209
        %1376 = vmatprep.subr.mxu0 0.0
        %1377 = vmatpush1.msra.mxu0 %v1208
        %1378 = vmatprep.subr.mxu0 0.0
        %1379 = vmatpush2.msra.mxu0 0.0
        %1380 = vmatprep.subr.mxu0 0.0
        %1381 = vmatpush2.msra.mxu0 0.0
        %1382 = vmatprep.subr.mxu0 0.0
        %1383 = vmatpush2.msra.mxu0 0.0
        %1384 = vmatprep.subr.mxu0 0.0
        %1385 = vmatpush2.msra.mxu0 0.0
        %1386 = vmatprep.subr.mxu0 0.0
        %1387 = vmatpush2.msra.mxu0 0.0
        %1388 = vmatprep.subr.mxu0 0.0
        %1389 = vmatpush2.msra.mxu0 0.0
        %1390 = vmatprep.subr.mxu0 0.0
        %1391 = vmatpush2.msra.mxu0 0.0
        %1392 = vmatprep.subr.mxu0 0.0
        %1393 = vmatpush2.msra.mxu0 0.0
        %1394 = vmatprep.subr.mxu0 0.0
        %1395 = vmatpush2.msra.mxu0 0.0
        %1396 = vmatprep.subr.mxu0 0.0
        %1397 = vmatpush2.msra.mxu0 0.0
        %1398 = vmatprep.subr.mxu0 0.0
        %1399 = vmatpush2.msra.mxu0 0.0
        %1400 = vmatprep.subr.mxu0 0.0
        %1401 = vmatpush2.msra.mxu0 0.0
        %1402 = vmatprep.subr.mxu0 0.0
        %1403 = vmatpush2.msra.mxu0 0.0
        %1404 = vmatprep.subr.mxu0 0.0
        %1405 = vmatpush2.msra.mxu0 0.0
        %1406 = vmatprep.subr.mxu0 0.0
        %1407 = vmatpush2.msra.mxu0 0.0
        %1408 = vmatprep.subr.mxu0 0.0
        %1409 = vmatpush2.msra.mxu0 0.0
        %1410 = vmatprep.mubr.f32.mxu0 0.0
        %1411 = vmatmul.mubr.f32.gmra.mxu0 %v1341
        %v1412 = vpop.f32.mrf.mxu0
        %v1413 = vadd.f32 %v1337, %v1412
        %v1414 = vpop.f32.mrf.mxu0
        %1415 = vmatprep.mubr.f32.mxu0 0.0
        %1416 = vmatmul.mubr.f32.gmra.mxu0 %v1344
        %v1417 = vpop.f32.mrf.mxu0
        %v1418 = vadd.f32 %v1337, %v1417
        %v1419 = vpop.f32.mrf.mxu0
        %1420 = vdwg.mxu0
        %vm1421 = vcmask 261120
        %v1422 = vsel %vm1421, %v1413, 0.0
        %1423 = vadd.xlane.f32.xlu0 %v1422
        %v1424 = vpop.xlane.xlu0 %1423
        %v1425 = vsel %vm1421, %v1418, 0.0
        %1426 = vadd.xlane.f32.xlu0 %v1425
        %v1427 = vpop.xlane.xlu0 %1426
        %v1428 = vrcp.pop 32.0
        %v1429 = vmul.f32 %v1424, %v1428
        %v1430 = vmul.f32 %v1427, %v1428
        %v1431 = vsub.f32 %v1413, %v1429
        %v1432 = vsub.f32 %v1418, %v1430
        %v1433 = vmul.f32 %v1431, %v1431
        %v1434 = vmul.f32 %v1432, %v1432
        %v1435 = vsel %vm1421, %v1433, 0.0
        %1436 = vadd.xlane.f32.xlu0 %v1435
        %v1437 = vpop.xlane.xlu0 %1436
        %v1438 = vsel %vm1421, %v1434, 0.0
        %1439 = vadd.xlane.f32.xlu0 %v1438
        %v1440 = vpop.xlane.xlu0 %1439
        %v1441 = vmul.f32 %v1437, %v1428
        %v1442 = vmul.f32 %v1440, %v1428
        %v1443 = vadd.f32 %v1441, 1e-05
        %v1444 = vadd.f32 %v1442, 1e-05
        %v1445 = vrsqrt.pop %v1443
        %v1446 = vrsqrt.pop %v1444
        %v1447 = vmul.f32 %v1431, %v1445
        %v1448 = vmul.f32 %v1432, %v1446
        %v1450 = vlaneseq
        %v1451 = vshrl.u32 %v1450, 7
        %v1452 = vsub.s32 0, %v1451
        %v1453 = vrot.slane %v1215, %v1452
        %v1455 = vmul.f32 %v1447, %v1453
        %v1456 = vmul.f32 %v1448, %v1453
        %v1458 = vlaneseq
        %v1459 = vshrl.u32 %v1458, 7
        %v1460 = vsub.s32 0, %v1459
        %v1461 = vrot.slane %v1216, %v1460
        %v1463 = vadd.f32 %v1455, %v1461
        %v1464 = vadd.f32 %v1456, %v1461
        %v1465 = vsel %vm1421, %v1463, 0.0
        %1466 = vadd.xlane.f32.xlu0 %v1465
        %v1467 = vpop.xlane.xlu0 %1466
        %v1468 = vsel %vm1421, %v1464, 0.0
        %1469 = vadd.xlane.f32.xlu0 %v1468
        %v1470 = vpop.xlane.xlu0 %1469
        %v1471 = vmul.f32 %v1467, %v1428
        %v1472 = vmul.f32 %v1470, %v1428
        %v1473 = vsub.f32 %v1463, %v1471
        %v1474 = vsub.f32 %v1464, %v1472
        %v1475 = vmul.f32 %v1473, %v1473
        %v1476 = vmul.f32 %v1474, %v1474
        %v1477 = vsel %vm1421, %v1475, 0.0
        %1478 = vadd.xlane.f32.xlu0 %v1477
        %v1479 = vpop.xlane.xlu0 %1478
        %v1480 = vsel %vm1421, %v1476, 0.0
        %1481 = vadd.xlane.f32.xlu0 %v1480
        %v1482 = vpop.xlane.xlu0 %1481
        %v1483 = vmul.f32 %v1479, %v1428
        %v1484 = vmul.f32 %v1482, %v1428
        %v1485 = vadd.f32 %v1483, 1e-05
        %v1486 = vadd.f32 %v1484, 1e-05
        %v1487 = vrsqrt.pop %v1485
        %v1488 = vrsqrt.pop %v1486
        %v1489 = vmul.f32 %v1473, %v1487
        %v1490 = vmul.f32 %v1474, %v1488
        %v1492 = vlaneseq
        %v1493 = vshrl.u32 %v1492, 7
        %v1494 = vsub.s32 0, %v1493
        %v1495 = vrot.slane %v1217, %v1494
        %v1497 = vmul.f32 %v1489, %v1495
        %v1498 = vmul.f32 %v1490, %v1495
        %v1500 = vlaneseq
        %v1501 = vshrl.u32 %v1500, 7
        %v1502 = vsub.s32 0, %v1501
        %v1503 = vrot.slane %v1218, %v1502
        %v1505 = vadd.f32 %v1497, %v1503
        %v1506 = vadd.f32 %v1498, %v1503
        %v1508 = vlaneseq
        %v1509 = vshrl.u32 %v1508, 7
        %v1510 = vsub.s32 0, %v1509
        %v1511 = vrot.slane %v1223, %v1510
        %v1514 = vsel %vm1421, %v1505, 0
        %v1517 = vsel %vm1421, %v1506, 0
        %1519 = vmatprep.subr.mxu0 0.0
        %1520 = vmatpush1.msra.mxu0 0.0
        %1521 = vmatprep.subr.mxu0 0.0
        %1522 = vmatpush1.msra.mxu0 0.0
        %1523 = vmatprep.subr.mxu0 0.0
        %1524 = vmatpush1.msra.mxu0 0.0
        %1525 = vmatprep.subr.mxu0 0.0
        %1526 = vmatpush1.msra.mxu0 0.0
        %1527 = vmatprep.subr.mxu0 0.0
        %1528 = vmatpush1.msra.mxu0 0.0
        %1529 = vmatprep.subr.mxu0 0.0
        %1530 = vmatpush1.msra.mxu0 0.0
        %1531 = vmatprep.subr.mxu0 0.0
        %1532 = vmatpush1.msra.mxu0 0.0
        %1533 = vmatprep.subr.mxu0 0.0
        %1534 = vmatpush1.msra.mxu0 0.0
        %1535 = vmatprep.subr.mxu0 0.0
        %1536 = vmatpush1.msra.mxu0 0.0
        %1537 = vmatprep.subr.mxu0 0.0
        %1538 = vmatpush1.msra.mxu0 0.0
        %1539 = vmatprep.subr.mxu0 0.0
        %1540 = vmatpush1.msra.mxu0 0.0
        %1541 = vmatprep.subr.mxu0 0.0
        %1542 = vmatpush1.msra.mxu0 0.0
        %1543 = vmatprep.subr.mxu0 0.0
        %1544 = vmatpush1.msra.mxu0 %v1222
        %1545 = vmatprep.subr.mxu0 0.0
        %1546 = vmatpush1.msra.mxu0 %v1221
        %1547 = vmatprep.subr.mxu0 0.0
        %1548 = vmatpush1.msra.mxu0 %v1220
        %1549 = vmatprep.subr.mxu0 0.0
        %1550 = vmatpush1.msra.mxu0 %v1219
        %1551 = vmatprep.subr.mxu0 0.0
        %1552 = vmatpush2.msra.mxu0 0.0
        %1553 = vmatprep.subr.mxu0 0.0
        %1554 = vmatpush2.msra.mxu0 0.0
        %1555 = vmatprep.subr.mxu0 0.0
        %1556 = vmatpush2.msra.mxu0 0.0
        %1557 = vmatprep.subr.mxu0 0.0
        %1558 = vmatpush2.msra.mxu0 0.0
        %1559 = vmatprep.subr.mxu0 0.0
        %1560 = vmatpush2.msra.mxu0 0.0
        %1561 = vmatprep.subr.mxu0 0.0
        %1562 = vmatpush2.msra.mxu0 0.0
        %1563 = vmatprep.subr.mxu0 0.0
        %1564 = vmatpush2.msra.mxu0 0.0
        %1565 = vmatprep.subr.mxu0 0.0
        %1566 = vmatpush2.msra.mxu0 0.0
        %1567 = vmatprep.subr.mxu0 0.0
        %1568 = vmatpush2.msra.mxu0 0.0
        %1569 = vmatprep.subr.mxu0 0.0
        %1570 = vmatpush2.msra.mxu0 0.0
        %1571 = vmatprep.subr.mxu0 0.0
        %1572 = vmatpush2.msra.mxu0 0.0
        %1573 = vmatprep.subr.mxu0 0.0
        %1574 = vmatpush2.msra.mxu0 0.0
        %1575 = vmatprep.subr.mxu0 0.0
        %1576 = vmatpush2.msra.mxu0 0.0
        %1577 = vmatprep.subr.mxu0 0.0
        %1578 = vmatpush2.msra.mxu0 0.0
        %1579 = vmatprep.subr.mxu0 0.0
        %1580 = vmatpush2.msra.mxu0 0.0
        %1581 = vmatprep.subr.mxu0 0.0
        %1582 = vmatpush2.msra.mxu0 0.0
        %1583 = vmatprep.mubr.f32.mxu0 0.0
        %1584 = vmatmul.mubr.f32.gmra.mxu0 %v1514
        %v1585 = vpop.f32.mrf.mxu0
        %v1586 = vadd.f32 %v1511, %v1585
        %v1587 = vpop.f32.mrf.mxu0
        %1588 = vmatprep.mubr.f32.mxu0 0.0
        %1589 = vmatmul.mubr.f32.gmra.mxu0 %v1517
        %v1590 = vpop.f32.mrf.mxu0
        %v1591 = vadd.f32 %v1511, %v1590
        %v1592 = vpop.f32.mrf.mxu0
        %1593 = vdwg.mxu0
        %v1594 = vmul.f32 %v1586, 0.35355338
        %v1595 = vmul.f32 %v1591, 0.35355338
        %v1596 = vld [vmem:[%s19] sm:$0xff]
        %v1597 = vld [vmem:[%s19 + $0x8] sm:$0xff]
        %1600 = vrot.lane.b32.xlu0 %v1586, 96
        %v1601 = vpop.permute.xlu0 %1600
        %1602 = vrot.lane.b32.xlu0 %v1591, 96
        %v1603 = vpop.permute.xlu0 %1602
        %vm1604 = vcmask 64512
        %v1606 = vsel %vm1604, %v1594, 0
        %v1609 = vsel %vm1604, %v1595, 0
        %v1611 = vsel %vm1604, %v1601, 0
        %v1613 = vsel %vm1604, %v1603, 0
        %1615 = vmatprep.subr.mxu0 0.0
        %1616 = vmatpush1.xpose.msra.mxu0 0.0
        %1617 = vmatprep.subr.mxu0 0.0
        %1618 = vmatpush1.xpose.msra.mxu0 0.0
        %1619 = vmatprep.subr.mxu0 0.0
        %1620 = vmatpush1.xpose.msra.mxu0 0.0
        %1621 = vmatprep.subr.mxu0 0.0
        %1622 = vmatpush1.xpose.msra.mxu0 0.0
        %1623 = vmatprep.subr.mxu0 0.0
        %1624 = vmatpush1.xpose.msra.mxu0 0.0
        %1625 = vmatprep.subr.mxu0 0.0
        %1626 = vmatpush1.xpose.msra.mxu0 0.0
        %1627 = vmatprep.subr.mxu0 0.0
        %1628 = vmatpush1.xpose.msra.mxu0 0.0
        %1629 = vmatprep.subr.mxu0 0.0
        %1630 = vmatpush1.xpose.msra.mxu0 0.0
        %1631 = vmatprep.subr.mxu0 0.0
        %1632 = vmatpush1.xpose.msra.mxu0 0.0
        %1633 = vmatprep.subr.mxu0 0.0
        %1634 = vmatpush1.xpose.msra.mxu0 0.0
        %1635 = vmatprep.subr.mxu0 0.0
        %1636 = vmatpush1.xpose.msra.mxu0 0.0
        %1637 = vmatprep.subr.mxu0 0.0
        %1638 = vmatpush1.xpose.msra.mxu0 0.0
        %1639 = vmatprep.subr.mxu0 0.0
        %1640 = vmatpush1.xpose.msra.mxu0 0.0
        %1641 = vmatprep.subr.mxu0 0.0
        %1642 = vmatpush1.xpose.msra.mxu0 0.0
        %1643 = vmatprep.subr.mxu0 0.0
        %1644 = vmatpush1.xpose.msra.mxu0 %v1613
        %1645 = vmatprep.subr.mxu0 0.0
        %1646 = vmatpush1.xpose.msra.mxu0 %v1611
        %1647 = vmatprep.subr.mxu0 0.0
        %1648 = vmatpush2.xpose.msra.mxu0 0.0
        %1649 = vmatprep.subr.mxu0 0.0
        %1650 = vmatpush2.xpose.msra.mxu0 0.0
        %1651 = vmatprep.subr.mxu0 0.0
        %1652 = vmatpush2.xpose.msra.mxu0 0.0
        %1653 = vmatprep.subr.mxu0 0.0
        %1654 = vmatpush2.xpose.msra.mxu0 0.0
        %1655 = vmatprep.subr.mxu0 0.0
        %1656 = vmatpush2.xpose.msra.mxu0 0.0
        %1657 = vmatprep.subr.mxu0 0.0
        %1658 = vmatpush2.xpose.msra.mxu0 0.0
        %1659 = vmatprep.subr.mxu0 0.0
        %1660 = vmatpush2.xpose.msra.mxu0 0.0
        %1661 = vmatprep.subr.mxu0 0.0
        %1662 = vmatpush2.xpose.msra.mxu0 0.0
        %1663 = vmatprep.subr.mxu0 0.0
        %1664 = vmatpush2.xpose.msra.mxu0 0.0
        %1665 = vmatprep.subr.mxu0 0.0
        %1666 = vmatpush2.xpose.msra.mxu0 0.0
        %1667 = vmatprep.subr.mxu0 0.0
        %1668 = vmatpush2.xpose.msra.mxu0 0.0
        %1669 = vmatprep.subr.mxu0 0.0
        %1670 = vmatpush2.xpose.msra.mxu0 0.0
        %1671 = vmatprep.subr.mxu0 0.0
        %1672 = vmatpush2.xpose.msra.mxu0 0.0
        %1673 = vmatprep.subr.mxu0 0.0
        %1674 = vmatpush2.xpose.msra.mxu0 0.0
        %1675 = vmatprep.subr.mxu0 0.0
        %1676 = vmatpush2.xpose.msra.mxu0 0.0
        %1677 = vmatprep.subr.mxu0 0.0
        %1678 = vmatpush2.xpose.msra.mxu0 0.0
        %1679 = vmatprep.mubr.f32.mxu0 0.0
        %1680 = vmatmul.mubr.f32.gmra.mxu0 %v1606
        %v1681 = vpop.f32.mrf.mxu0
        %v1682 = vadd.f32 %v1596, %v1681
        %v1683 = vpop.f32.mrf.mxu0
        %1684 = vmatprep.mubr.f32.mxu0 0.0
        %1685 = vmatmul.mubr.f32.gmra.mxu0 %v1609
        %v1686 = vpop.f32.mrf.mxu0
        %v1687 = vadd.f32 %v1597, %v1686
        %v1688 = vpop.f32.mrf.mxu0
        %1689 = vdwg.mxu0
        %vm1690 = vcmask 130048
        %v1691 = vsel %vm1690, %v1682, -inf
        %1692 = vmax.xlane.f32.xlu0 %v1691
        %v1693 = vpop.xlane.xlu0 %1692
        %v1694 = vsel %vm1690, %v1687, -inf
        %1695 = vmax.xlane.f32.xlu0 %v1694
        %v1696 = vpop.xlane.xlu0 %1695
        %v1697 = vsub.f32 %v1682, %v1693
        %v1698 = vsub.f32 %v1687, %v1696
        %v1699 = vmul.f32 %v1697, 1.442695
        %v1700 = vpow.pop %v1699
        %v1701 = vmul.f32 %v1698, 1.442695
        %v1702 = vpow.pop %v1701
        %v1703 = vsel %vm1690, %v1700, 0.0
        %1704 = vadd.xlane.f32.xlu0 %v1703
        %v1705 = vpop.xlane.xlu0 %1704
        %v1706 = vsel %vm1690, %v1702, 0.0
        %1707 = vadd.xlane.f32.xlu0 %v1706
        %v1708 = vpop.xlane.xlu0 %1707
        %v1709 = vrcp.pop %v1705
        %v1710 = vrcp.pop %v1708
        %v1711 = vmul.f32 %v1700, %v1709
        %v1712 = vmul.f32 %v1702, %v1710
        %1713 = vrot.lane.b32.xlu0 %v1586, 64
        %v1714 = vpop.permute.xlu0 %1713
        %1715 = vrot.lane.b32.xlu0 %v1591, 64
        %v1716 = vpop.permute.xlu0 %1715
        %v1720 = vsel %vm1690, %v1711, 0
        %v1723 = vsel %vm1690, %v1712, 0
        %1725 = vmatprep.subr.mxu0 0.0
        %1726 = vmatpush1.msra.mxu0 0.0
        %1727 = vmatprep.subr.mxu0 0.0
        %1728 = vmatpush1.msra.mxu0 0.0
        %1729 = vmatprep.subr.mxu0 0.0
        %1730 = vmatpush1.msra.mxu0 0.0
        %1731 = vmatprep.subr.mxu0 0.0
        %1732 = vmatpush1.msra.mxu0 0.0
        %1733 = vmatprep.subr.mxu0 0.0
        %1734 = vmatpush1.msra.mxu0 0.0
        %1735 = vmatprep.subr.mxu0 0.0
        %1736 = vmatpush1.msra.mxu0 0.0
        %1737 = vmatprep.subr.mxu0 0.0
        %1738 = vmatpush1.msra.mxu0 0.0
        %1739 = vmatprep.subr.mxu0 0.0
        %1740 = vmatpush1.msra.mxu0 0.0
        %1741 = vmatprep.subr.mxu0 0.0
        %1742 = vmatpush1.msra.mxu0 0.0
        %1743 = vmatprep.subr.mxu0 0.0
        %1744 = vmatpush1.msra.mxu0 0.0
        %1745 = vmatprep.subr.mxu0 0.0
        %1746 = vmatpush1.msra.mxu0 0.0
        %1747 = vmatprep.subr.mxu0 0.0
        %1748 = vmatpush1.msra.mxu0 0.0
        %1749 = vmatprep.subr.mxu0 0.0
        %1750 = vmatpush1.msra.mxu0 0.0
        %1751 = vmatprep.subr.mxu0 0.0
        %1752 = vmatpush1.msra.mxu0 0.0
        %1753 = vmatprep.subr.mxu0 0.0
        %1754 = vmatpush1.msra.mxu0 %v1716
        %1755 = vmatprep.subr.mxu0 0.0
        %1756 = vmatpush1.msra.mxu0 %v1714
        %1757 = vmatprep.subr.mxu0 0.0
        %1758 = vmatpush2.msra.mxu0 0.0
        %1759 = vmatprep.subr.mxu0 0.0
        %1760 = vmatpush2.msra.mxu0 0.0
        %1761 = vmatprep.subr.mxu0 0.0
        %1762 = vmatpush2.msra.mxu0 0.0
        %1763 = vmatprep.subr.mxu0 0.0
        %1764 = vmatpush2.msra.mxu0 0.0
        %1765 = vmatprep.subr.mxu0 0.0
        %1766 = vmatpush2.msra.mxu0 0.0
        %1767 = vmatprep.subr.mxu0 0.0
        %1768 = vmatpush2.msra.mxu0 0.0
        %1769 = vmatprep.subr.mxu0 0.0
        %1770 = vmatpush2.msra.mxu0 0.0
        %1771 = vmatprep.subr.mxu0 0.0
        %1772 = vmatpush2.msra.mxu0 0.0
        %1773 = vmatprep.subr.mxu0 0.0
        %1774 = vmatpush2.msra.mxu0 0.0
        %1775 = vmatprep.subr.mxu0 0.0
        %1776 = vmatpush2.msra.mxu0 0.0
        %1777 = vmatprep.subr.mxu0 0.0
        %1778 = vmatpush2.msra.mxu0 0.0
        %1779 = vmatprep.subr.mxu0 0.0
        %1780 = vmatpush2.msra.mxu0 0.0
        %1781 = vmatprep.subr.mxu0 0.0
        %1782 = vmatpush2.msra.mxu0 0.0
        %1783 = vmatprep.subr.mxu0 0.0
        %1784 = vmatpush2.msra.mxu0 0.0
        %1785 = vmatprep.subr.mxu0 0.0
        %1786 = vmatpush2.msra.mxu0 0.0
        %1787 = vmatprep.subr.mxu0 0.0
        %1788 = vmatpush2.msra.mxu0 0.0
        %1789 = vmatprep.mubr.f32.mxu0 0.0
        %1790 = vmatmul.mubr.f32.gmra.mxu0 %v1720
        %v1791 = vpop.f32.mrf.mxu0
        %v1792 = vadd.f32 0.0, %v1791
        %v1793 = vpop.f32.mrf.mxu0
        %1794 = vmatprep.mubr.f32.mxu0 0.0
        %1795 = vmatmul.mubr.f32.gmra.mxu0 %v1723
        %v1796 = vpop.f32.mrf.mxu0
        %v1797 = vadd.f32 0.0, %v1796
        %v1798 = vpop.f32.mrf.mxu0
        %1799 = vdwg.mxu0
        %s1800 = scalar_lea.vmem %s19, 16
        %v1801 = vld [vmem:[%s1800] sm:$0xff]
        %v1802 = vld [vmem:[%s1800 + $0x8] sm:$0xff]
        %1803 = vrot.lane.b32.xlu0 %v1594, 120
        %v1804 = vpop.permute.xlu0 %1803
        %1805 = vrot.lane.b32.xlu0 %v1595, 120
        %v1806 = vpop.permute.xlu0 %1805
        %1807 = vrot.lane.b32.xlu0 %v1586, 88
        %v1808 = vpop.permute.xlu0 %1807
        %1809 = vrot.lane.b32.xlu0 %v1591, 88
        %v1810 = vpop.permute.xlu0 %1809
        %v1811 = vsel %vm1604, %v1804, 0
        %v1813 = vsel %vm1604, %v1806, 0
        %v1815 = vsel %vm1604, %v1808, 0
        %v1817 = vsel %vm1604, %v1810, 0
        %1819 = vmatprep.subr.mxu0 0.0
        %1820 = vmatpush1.xpose.msra.mxu0 0.0
        %1821 = vmatprep.subr.mxu0 0.0
        %1822 = vmatpush1.xpose.msra.mxu0 0.0
        %1823 = vmatprep.subr.mxu0 0.0
        %1824 = vmatpush1.xpose.msra.mxu0 0.0
        %1825 = vmatprep.subr.mxu0 0.0
        %1826 = vmatpush1.xpose.msra.mxu0 0.0
        %1827 = vmatprep.subr.mxu0 0.0
        %1828 = vmatpush1.xpose.msra.mxu0 0.0
        %1829 = vmatprep.subr.mxu0 0.0
        %1830 = vmatpush1.xpose.msra.mxu0 0.0
        %1831 = vmatprep.subr.mxu0 0.0
        %1832 = vmatpush1.xpose.msra.mxu0 0.0
        %1833 = vmatprep.subr.mxu0 0.0
        %1834 = vmatpush1.xpose.msra.mxu0 0.0
        %1835 = vmatprep.subr.mxu0 0.0
        %1836 = vmatpush1.xpose.msra.mxu0 0.0
        %1837 = vmatprep.subr.mxu0 0.0
        %1838 = vmatpush1.xpose.msra.mxu0 0.0
        %1839 = vmatprep.subr.mxu0 0.0
        %1840 = vmatpush1.xpose.msra.mxu0 0.0
        %1841 = vmatprep.subr.mxu0 0.0
        %1842 = vmatpush1.xpose.msra.mxu0 0.0
        %1843 = vmatprep.subr.mxu0 0.0
        %1844 = vmatpush1.xpose.msra.mxu0 0.0
        %1845 = vmatprep.subr.mxu0 0.0
        %1846 = vmatpush1.xpose.msra.mxu0 0.0
        %1847 = vmatprep.subr.mxu0 0.0
        %1848 = vmatpush1.xpose.msra.mxu0 %v1817
        %1849 = vmatprep.subr.mxu0 0.0
        %1850 = vmatpush1.xpose.msra.mxu0 %v1815
        %1851 = vmatprep.subr.mxu0 0.0
        %1852 = vmatpush2.xpose.msra.mxu0 0.0
        %1853 = vmatprep.subr.mxu0 0.0
        %1854 = vmatpush2.xpose.msra.mxu0 0.0
        %1855 = vmatprep.subr.mxu0 0.0
        %1856 = vmatpush2.xpose.msra.mxu0 0.0
        %1857 = vmatprep.subr.mxu0 0.0
        %1858 = vmatpush2.xpose.msra.mxu0 0.0
        %1859 = vmatprep.subr.mxu0 0.0
        %1860 = vmatpush2.xpose.msra.mxu0 0.0
        %1861 = vmatprep.subr.mxu0 0.0
        %1862 = vmatpush2.xpose.msra.mxu0 0.0
        %1863 = vmatprep.subr.mxu0 0.0
        %1864 = vmatpush2.xpose.msra.mxu0 0.0
        %1865 = vmatprep.subr.mxu0 0.0
        %1866 = vmatpush2.xpose.msra.mxu0 0.0
        %1867 = vmatprep.subr.mxu0 0.0
        %1868 = vmatpush2.xpose.msra.mxu0 0.0
        %1869 = vmatprep.subr.mxu0 0.0
        %1870 = vmatpush2.xpose.msra.mxu0 0.0
        %1871 = vmatprep.subr.mxu0 0.0
        %1872 = vmatpush2.xpose.msra.mxu0 0.0
        %1873 = vmatprep.subr.mxu0 0.0
        %1874 = vmatpush2.xpose.msra.mxu0 0.0
        %1875 = vmatprep.subr.mxu0 0.0
        %1876 = vmatpush2.xpose.msra.mxu0 0.0
        %1877 = vmatprep.subr.mxu0 0.0
        %1878 = vmatpush2.xpose.msra.mxu0 0.0
        %1879 = vmatprep.subr.mxu0 0.0
        %1880 = vmatpush2.xpose.msra.mxu0 0.0
        %1881 = vmatprep.subr.mxu0 0.0
        %1882 = vmatpush2.xpose.msra.mxu0 0.0
        %1883 = vmatprep.mubr.f32.mxu0 0.0
        %1884 = vmatmul.mubr.f32.gmra.mxu0 %v1811
        %v1885 = vpop.f32.mrf.mxu0
        %v1886 = vadd.f32 %v1801, %v1885
        %v1887 = vpop.f32.mrf.mxu0
        %1888 = vmatprep.mubr.f32.mxu0 0.0
        %1889 = vmatmul.mubr.f32.gmra.mxu0 %v1813
        %v1890 = vpop.f32.mrf.mxu0
        %v1891 = vadd.f32 %v1802, %v1890
        %v1892 = vpop.f32.mrf.mxu0
        %1893 = vdwg.mxu0
        %v1894 = vsel %vm1690, %v1886, -inf
        %1895 = vmax.xlane.f32.xlu0 %v1894
        %v1896 = vpop.xlane.xlu0 %1895
        %v1897 = vsel %vm1690, %v1891, -inf
        %1898 = vmax.xlane.f32.xlu0 %v1897
        %v1899 = vpop.xlane.xlu0 %1898
        %v1900 = vsub.f32 %v1886, %v1896
        %v1901 = vsub.f32 %v1891, %v1899
        %v1902 = vmul.f32 %v1900, 1.442695
        %v1903 = vpow.pop %v1902
        %v1904 = vmul.f32 %v1901, 1.442695
        %v1905 = vpow.pop %v1904
        %v1906 = vsel %vm1690, %v1903, 0.0
        %1907 = vadd.xlane.f32.xlu0 %v1906
        %v1908 = vpop.xlane.xlu0 %1907
        %v1909 = vsel %vm1690, %v1905, 0.0
        %1910 = vadd.xlane.f32.xlu0 %v1909
        %v1911 = vpop.xlane.xlu0 %1910
        %v1912 = vrcp.pop %v1908
        %v1913 = vrcp.pop %v1911
        %v1914 = vmul.f32 %v1903, %v1912
        %v1915 = vmul.f32 %v1905, %v1913
        %1916 = vrot.lane.b32.xlu0 %v1586, 56
        %v1917 = vpop.permute.xlu0 %1916
        %1918 = vrot.lane.b32.xlu0 %v1591, 56
        %v1919 = vpop.permute.xlu0 %1918
        %v1923 = vsel %vm1690, %v1914, 0
        %v1926 = vsel %vm1690, %v1915, 0
        %1928 = vmatprep.subr.mxu0 0.0
        %1929 = vmatpush1.msra.mxu0 0.0
        %1930 = vmatprep.subr.mxu0 0.0
        %1931 = vmatpush1.msra.mxu0 0.0
        %1932 = vmatprep.subr.mxu0 0.0
        %1933 = vmatpush1.msra.mxu0 0.0
        %1934 = vmatprep.subr.mxu0 0.0
        %1935 = vmatpush1.msra.mxu0 0.0
        %1936 = vmatprep.subr.mxu0 0.0
        %1937 = vmatpush1.msra.mxu0 0.0
        %1938 = vmatprep.subr.mxu0 0.0
        %1939 = vmatpush1.msra.mxu0 0.0
        %1940 = vmatprep.subr.mxu0 0.0
        %1941 = vmatpush1.msra.mxu0 0.0
        %1942 = vmatprep.subr.mxu0 0.0
        %1943 = vmatpush1.msra.mxu0 0.0
        %1944 = vmatprep.subr.mxu0 0.0
        %1945 = vmatpush1.msra.mxu0 0.0
        %1946 = vmatprep.subr.mxu0 0.0
        %1947 = vmatpush1.msra.mxu0 0.0
        %1948 = vmatprep.subr.mxu0 0.0
        %1949 = vmatpush1.msra.mxu0 0.0
        %1950 = vmatprep.subr.mxu0 0.0
        %1951 = vmatpush1.msra.mxu0 0.0
        %1952 = vmatprep.subr.mxu0 0.0
        %1953 = vmatpush1.msra.mxu0 0.0
        %1954 = vmatprep.subr.mxu0 0.0
        %1955 = vmatpush1.msra.mxu0 0.0
        %1956 = vmatprep.subr.mxu0 0.0
        %1957 = vmatpush1.msra.mxu0 %v1919
        %1958 = vmatprep.subr.mxu0 0.0
        %1959 = vmatpush1.msra.mxu0 %v1917
        %1960 = vmatprep.subr.mxu0 0.0
        %1961 = vmatpush2.msra.mxu0 0.0
        %1962 = vmatprep.subr.mxu0 0.0
        %1963 = vmatpush2.msra.mxu0 0.0
        %1964 = vmatprep.subr.mxu0 0.0
        %1965 = vmatpush2.msra.mxu0 0.0
        %1966 = vmatprep.subr.mxu0 0.0
        %1967 = vmatpush2.msra.mxu0 0.0
        %1968 = vmatprep.subr.mxu0 0.0
        %1969 = vmatpush2.msra.mxu0 0.0
        %1970 = vmatprep.subr.mxu0 0.0
        %1971 = vmatpush2.msra.mxu0 0.0
        %1972 = vmatprep.subr.mxu0 0.0
        %1973 = vmatpush2.msra.mxu0 0.0
        %1974 = vmatprep.subr.mxu0 0.0
        %1975 = vmatpush2.msra.mxu0 0.0
        %1976 = vmatprep.subr.mxu0 0.0
        %1977 = vmatpush2.msra.mxu0 0.0
        %1978 = vmatprep.subr.mxu0 0.0
        %1979 = vmatpush2.msra.mxu0 0.0
        %1980 = vmatprep.subr.mxu0 0.0
        %1981 = vmatpush2.msra.mxu0 0.0
        %1982 = vmatprep.subr.mxu0 0.0
        %1983 = vmatpush2.msra.mxu0 0.0
        %1984 = vmatprep.subr.mxu0 0.0
        %1985 = vmatpush2.msra.mxu0 0.0
        %1986 = vmatprep.subr.mxu0 0.0
        %1987 = vmatpush2.msra.mxu0 0.0
        %1988 = vmatprep.subr.mxu0 0.0
        %1989 = vmatpush2.msra.mxu0 0.0
        %1990 = vmatprep.subr.mxu0 0.0
        %1991 = vmatpush2.msra.mxu0 0.0
        %1992 = vmatprep.mubr.f32.mxu0 0.0
        %1993 = vmatmul.mubr.f32.gmra.mxu0 %v1923
        %v1994 = vpop.f32.mrf.mxu0
        %v1995 = vadd.f32 0.0, %v1994
        %v1996 = vpop.f32.mrf.mxu0
        %1997 = vmatprep.mubr.f32.mxu0 0.0
        %1998 = vmatmul.mubr.f32.gmra.mxu0 %v1926
        %v1999 = vpop.f32.mrf.mxu0
        %v2000 = vadd.f32 0.0, %v1999
        %v2001 = vpop.f32.mrf.mxu0
        %2002 = vdwg.mxu0
        %v2004 = vsel %vm1604, %v1995, 0
        %v2007 = vsel %vm1604, %v2000, 0
        %2009 = vmatprep.subr.mxu0 0.0
        %2010 = vmatpush1.msra.mxu0 0.0
        %2011 = vmatprep.subr.mxu0 0.0
        %2012 = vmatpush1.msra.mxu0 0.0
        %2013 = vmatprep.subr.mxu0 0.0
        %2014 = vmatpush1.msra.mxu0 0.0
        %2015 = vmatprep.subr.mxu0 0.0
        %2016 = vmatpush1.msra.mxu0 0.0
        %2017 = vmatprep.subr.mxu0 0.0
        %2018 = vmatpush1.msra.mxu0 0.0
        %2019 = vmatprep.subr.mxu0 0.0
        %2020 = vmatpush1.msra.mxu0 0.0
        %2021 = vmatprep.subr.mxu0 0.0
        %2022 = vmatpush1.msra.mxu0 0.0
        %2023 = vmatprep.subr.mxu0 0.0
        %2024 = vmatpush1.msra.mxu0 0.0
        %2025 = vmatprep.subr.mxu0 0.0
        %2026 = vmatpush1.msra.mxu0 0.0
        %2027 = vmatprep.subr.mxu0 0.0
        %2028 = vmatpush1.msra.mxu0 0.0
        %2029 = vmatprep.subr.mxu0 0.0
        %2030 = vmatpush1.msra.mxu0 0.0
        %2031 = vmatprep.subr.mxu0 0.0
        %2032 = vmatpush1.msra.mxu0 0.0
        %2033 = vmatprep.subr.mxu0 0.0
        %2034 = vmatpush1.msra.mxu0 0.0
        %2035 = vmatprep.subr.mxu0 0.0
        %2036 = vmatpush1.msra.mxu0 0.0
        %2037 = vmatprep.subr.mxu0 0.0
        %2038 = vmatpush1.msra.mxu0 0.0
        %2039 = vmatprep.subr.mxu0 0.0
        %2040 = vmatpush1.msra.mxu0 %v1225
        %2041 = vmatprep.subr.mxu0 0.0
        %2042 = vmatpush2.msra.mxu0 0.0
        %2043 = vmatprep.subr.mxu0 0.0
        %2044 = vmatpush2.msra.mxu0 0.0
        %2045 = vmatprep.subr.mxu0 0.0
        %2046 = vmatpush2.msra.mxu0 0.0
        %2047 = vmatprep.subr.mxu0 0.0
        %2048 = vmatpush2.msra.mxu0 0.0
        %2049 = vmatprep.subr.mxu0 0.0
        %2050 = vmatpush2.msra.mxu0 0.0
        %2051 = vmatprep.subr.mxu0 0.0
        %2052 = vmatpush2.msra.mxu0 0.0
        %2053 = vmatprep.subr.mxu0 0.0
        %2054 = vmatpush2.msra.mxu0 0.0
        %2055 = vmatprep.subr.mxu0 0.0
        %2056 = vmatpush2.msra.mxu0 0.0
        %2057 = vmatprep.subr.mxu0 0.0
        %2058 = vmatpush2.msra.mxu0 0.0
        %2059 = vmatprep.subr.mxu0 0.0
        %2060 = vmatpush2.msra.mxu0 0.0
        %2061 = vmatprep.subr.mxu0 0.0
        %2062 = vmatpush2.msra.mxu0 0.0
        %2063 = vmatprep.subr.mxu0 0.0
        %2064 = vmatpush2.msra.mxu0 0.0
        %2065 = vmatprep.subr.mxu0 0.0
        %2066 = vmatpush2.msra.mxu0 0.0
        %2067 = vmatprep.subr.mxu0 0.0
        %2068 = vmatpush2.msra.mxu0 0.0
        %2069 = vmatprep.subr.mxu0 0.0
        %2070 = vmatpush2.msra.mxu0 0.0
        %2071 = vmatprep.subr.mxu0 0.0
        %2072 = vmatpush2.msra.mxu0 0.0
        %2073 = vmatprep.mubr.f32.mxu0 0.0
        %2074 = vmatmul.mubr.f32.gmra.mxu0 %v2004
        %v2075 = vpop.f32.mrf.mxu0
        %v2076 = vadd.f32 0.0, %v2075
        %v2077 = vpop.f32.mrf.mxu0
        %2078 = vmatprep.mubr.f32.mxu0 0.0
        %2079 = vmatmul.mubr.f32.gmra.mxu0 %v2007
        %v2080 = vpop.f32.mrf.mxu0
        %v2081 = vadd.f32 0.0, %v2080
        %v2082 = vpop.f32.mrf.mxu0
        %2083 = vdwg.mxu0
        %v2085 = vsel %vm1604, %v1792, 0
        %v2088 = vsel %vm1604, %v1797, 0
        %2090 = vmatprep.subr.mxu0 0.0
        %2091 = vmatpush1.msra.mxu0 0.0
        %2092 = vmatprep.subr.mxu0 0.0
        %2093 = vmatpush1.msra.mxu0 0.0
        %2094 = vmatprep.subr.mxu0 0.0
        %2095 = vmatpush1.msra.mxu0 0.0
        %2096 = vmatprep.subr.mxu0 0.0
        %2097 = vmatpush1.msra.mxu0 0.0
        %2098 = vmatprep.subr.mxu0 0.0
        %2099 = vmatpush1.msra.mxu0 0.0
        %2100 = vmatprep.subr.mxu0 0.0
        %2101 = vmatpush1.msra.mxu0 0.0
        %2102 = vmatprep.subr.mxu0 0.0
        %2103 = vmatpush1.msra.mxu0 0.0
        %2104 = vmatprep.subr.mxu0 0.0
        %2105 = vmatpush1.msra.mxu0 0.0
        %2106 = vmatprep.subr.mxu0 0.0
        %2107 = vmatpush1.msra.mxu0 0.0
        %2108 = vmatprep.subr.mxu0 0.0
        %2109 = vmatpush1.msra.mxu0 0.0
        %2110 = vmatprep.subr.mxu0 0.0
        %2111 = vmatpush1.msra.mxu0 0.0
        %2112 = vmatprep.subr.mxu0 0.0
        %2113 = vmatpush1.msra.mxu0 0.0
        %2114 = vmatprep.subr.mxu0 0.0
        %2115 = vmatpush1.msra.mxu0 0.0
        %2116 = vmatprep.subr.mxu0 0.0
        %2117 = vmatpush1.msra.mxu0 0.0
        %2118 = vmatprep.subr.mxu0 0.0
        %2119 = vmatpush1.msra.mxu0 0.0
        %2120 = vmatprep.subr.mxu0 0.0
        %2121 = vmatpush1.msra.mxu0 %v1224
        %2122 = vmatprep.subr.mxu0 0.0
        %2123 = vmatpush2.msra.mxu0 0.0
        %2124 = vmatprep.subr.mxu0 0.0
        %2125 = vmatpush2.msra.mxu0 0.0
        %2126 = vmatprep.subr.mxu0 0.0
        %2127 = vmatpush2.msra.mxu0 0.0
        %2128 = vmatprep.subr.mxu0 0.0
        %2129 = vmatpush2.msra.mxu0 0.0
        %2130 = vmatprep.subr.mxu0 0.0
        %2131 = vmatpush2.msra.mxu0 0.0
        %2132 = vmatprep.subr.mxu0 0.0
        %2133 = vmatpush2.msra.mxu0 0.0
        %2134 = vmatprep.subr.mxu0 0.0
        %2135 = vmatpush2.msra.mxu0 0.0
        %2136 = vmatprep.subr.mxu0 0.0
        %2137 = vmatpush2.msra.mxu0 0.0
        %2138 = vmatprep.subr.mxu0 0.0
        %2139 = vmatpush2.msra.mxu0 0.0
        %2140 = vmatprep.subr.mxu0 0.0
        %2141 = vmatpush2.msra.mxu0 0.0
        %2142 = vmatprep.subr.mxu0 0.0
        %2143 = vmatpush2.msra.mxu0 0.0
        %2144 = vmatprep.subr.mxu0 0.0
        %2145 = vmatpush2.msra.mxu0 0.0
        %2146 = vmatprep.subr.mxu0 0.0
        %2147 = vmatpush2.msra.mxu0 0.0
        %2148 = vmatprep.subr.mxu0 0.0
        %2149 = vmatpush2.msra.mxu0 0.0
        %2150 = vmatprep.subr.mxu0 0.0
        %2151 = vmatpush2.msra.mxu0 0.0
        %2152 = vmatprep.subr.mxu0 0.0
        %2153 = vmatpush2.msra.mxu0 0.0
        %2154 = vmatprep.mubr.f32.mxu0 0.0
        %2155 = vmatmul.mubr.f32.gmra.mxu0 %v2085
        %v2156 = vpop.f32.mrf.mxu0
        %v2157 = vadd.f32 %v2076, %v2156
        %v2158 = vpop.f32.mrf.mxu0
        %2159 = vmatprep.mubr.f32.mxu0 0.0
        %2160 = vmatmul.mubr.f32.gmra.mxu0 %v2088
        %v2161 = vpop.f32.mrf.mxu0
        %v2162 = vadd.f32 %v2081, %v2161
        %v2163 = vpop.f32.mrf.mxu0
        %2164 = vdwg.mxu0
        %s2165 = scalar_lea.vmem %s19, 32
        %v2166 = vld [vmem:[%s2165] sm:$0xff]
        %v2167 = vld [vmem:[%s2165 + $0x8] sm:$0xff]
        %2168 = vrot.lane.b32.xlu0 %v1594, 112
        %v2169 = vpop.permute.xlu0 %2168
        %2170 = vrot.lane.b32.xlu0 %v1595, 112
        %v2171 = vpop.permute.xlu0 %2170
        %2172 = vrot.lane.b32.xlu0 %v1586, 80
        %v2173 = vpop.permute.xlu0 %2172
        %2174 = vrot.lane.b32.xlu0 %v1591, 80
        %v2175 = vpop.permute.xlu0 %2174
        %v2176 = vsel %vm1604, %v2169, 0
        %v2178 = vsel %vm1604, %v2171, 0
        %v2180 = vsel %vm1604, %v2173, 0
        %v2182 = vsel %vm1604, %v2175, 0
        %2184 = vmatprep.subr.mxu0 0.0
        %2185 = vmatpush1.xpose.msra.mxu0 0.0
        %2186 = vmatprep.subr.mxu0 0.0
        %2187 = vmatpush1.xpose.msra.mxu0 0.0
        %2188 = vmatprep.subr.mxu0 0.0
        %2189 = vmatpush1.xpose.msra.mxu0 0.0
        %2190 = vmatprep.subr.mxu0 0.0
        %2191 = vmatpush1.xpose.msra.mxu0 0.0
        %2192 = vmatprep.subr.mxu0 0.0
        %2193 = vmatpush1.xpose.msra.mxu0 0.0
        %2194 = vmatprep.subr.mxu0 0.0
        %2195 = vmatpush1.xpose.msra.mxu0 0.0
        %2196 = vmatprep.subr.mxu0 0.0
        %2197 = vmatpush1.xpose.msra.mxu0 0.0
        %2198 = vmatprep.subr.mxu0 0.0
        %2199 = vmatpush1.xpose.msra.mxu0 0.0
        %2200 = vmatprep.subr.mxu0 0.0
        %2201 = vmatpush1.xpose.msra.mxu0 0.0
        %2202 = vmatprep.subr.mxu0 0.0
        %2203 = vmatpush1.xpose.msra.mxu0 0.0
        %2204 = vmatprep.subr.mxu0 0.0
        %2205 = vmatpush1.xpose.msra.mxu0 0.0
        %2206 = vmatprep.subr.mxu0 0.0
        %2207 = vmatpush1.xpose.msra.mxu0 0.0
        %2208 = vmatprep.subr.mxu0 0.0
        %2209 = vmatpush1.xpose.msra.mxu0 0.0
        %2210 = vmatprep.subr.mxu0 0.0
        %2211 = vmatpush1.xpose.msra.mxu0 0.0
        %2212 = vmatprep.subr.mxu0 0.0
        %2213 = vmatpush1.xpose.msra.mxu0 %v2182
        %2214 = vmatprep.subr.mxu0 0.0
        %2215 = vmatpush1.xpose.msra.mxu0 %v2180
        %2216 = vmatprep.subr.mxu0 0.0
        %2217 = vmatpush2.xpose.msra.mxu0 0.0
        %2218 = vmatprep.subr.mxu0 0.0
        %2219 = vmatpush2.xpose.msra.mxu0 0.0
        %2220 = vmatprep.subr.mxu0 0.0
        %2221 = vmatpush2.xpose.msra.mxu0 0.0
        %2222 = vmatprep.subr.mxu0 0.0
        %2223 = vmatpush2.xpose.msra.mxu0 0.0
        %2224 = vmatprep.subr.mxu0 0.0
        %2225 = vmatpush2.xpose.msra.mxu0 0.0
        %2226 = vmatprep.subr.mxu0 0.0
        %2227 = vmatpush2.xpose.msra.mxu0 0.0
        %2228 = vmatprep.subr.mxu0 0.0
        %2229 = vmatpush2.xpose.msra.mxu0 0.0
        %2230 = vmatprep.subr.mxu0 0.0
        %2231 = vmatpush2.xpose.msra.mxu0 0.0
        %2232 = vmatprep.subr.mxu0 0.0
        %2233 = vmatpush2.xpose.msra.mxu0 0.0
        %2234 = vmatprep.subr.mxu0 0.0
        %2235 = vmatpush2.xpose.msra.mxu0 0.0
        %2236 = vmatprep.subr.mxu0 0.0
        %2237 = vmatpush2.xpose.msra.mxu0 0.0
        %2238 = vmatprep.subr.mxu0 0.0
        %2239 = vmatpush2.xpose.msra.mxu0 0.0
        %2240 = vmatprep.subr.mxu0 0.0
        %2241 = vmatpush2.xpose.msra.mxu0 0.0
        %2242 = vmatprep.subr.mxu0 0.0
        %2243 = vmatpush2.xpose.msra.mxu0 0.0
        %2244 = vmatprep.subr.mxu0 0.0
        %2245 = vmatpush2.xpose.msra.mxu0 0.0
        %2246 = vmatprep.subr.mxu0 0.0
        %2247 = vmatpush2.xpose.msra.mxu0 0.0
        %2248 = vmatprep.mubr.f32.mxu0 0.0
        %2249 = vmatmul.mubr.f32.gmra.mxu0 %v2176
        %v2250 = vpop.f32.mrf.mxu0
        %v2251 = vadd.f32 %v2166, %v2250
        %v2252 = vpop.f32.mrf.mxu0
        %2253 = vmatprep.mubr.f32.mxu0 0.0
        %2254 = vmatmul.mubr.f32.gmra.mxu0 %v2178
        %v2255 = vpop.f32.mrf.mxu0
        %v2256 = vadd.f32 %v2167, %v2255
        %v2257 = vpop.f32.mrf.mxu0
        %2258 = vdwg.mxu0
        %v2259 = vsel %vm1690, %v2251, -inf
        %2260 = vmax.xlane.f32.xlu0 %v2259
        %v2261 = vpop.xlane.xlu0 %2260
        %v2262 = vsel %vm1690, %v2256, -inf
        %2263 = vmax.xlane.f32.xlu0 %v2262
        %v2264 = vpop.xlane.xlu0 %2263
        %v2265 = vsub.f32 %v2251, %v2261
        %v2266 = vsub.f32 %v2256, %v2264
        %v2267 = vmul.f32 %v2265, 1.442695
        %v2268 = vpow.pop %v2267
        %v2269 = vmul.f32 %v2266, 1.442695
        %v2270 = vpow.pop %v2269
        %v2271 = vsel %vm1690, %v2268, 0.0
        %2272 = vadd.xlane.f32.xlu0 %v2271
        %v2273 = vpop.xlane.xlu0 %2272
        %v2274 = vsel %vm1690, %v2270, 0.0
        %2275 = vadd.xlane.f32.xlu0 %v2274
        %v2276 = vpop.xlane.xlu0 %2275
        %v2277 = vrcp.pop %v2273
        %v2278 = vrcp.pop %v2276
        %v2279 = vmul.f32 %v2268, %v2277
        %v2280 = vmul.f32 %v2270, %v2278
        %2281 = vrot.lane.b32.xlu0 %v1586, 48
        %v2282 = vpop.permute.xlu0 %2281
        %2283 = vrot.lane.b32.xlu0 %v1591, 48
        %v2284 = vpop.permute.xlu0 %2283
        %v2288 = vsel %vm1690, %v2279, 0
        %v2291 = vsel %vm1690, %v2280, 0
        %2293 = vmatprep.subr.mxu0 0.0
        %2294 = vmatpush1.msra.mxu0 0.0
        %2295 = vmatprep.subr.mxu0 0.0
        %2296 = vmatpush1.msra.mxu0 0.0
        %2297 = vmatprep.subr.mxu0 0.0
        %2298 = vmatpush1.msra.mxu0 0.0
        %2299 = vmatprep.subr.mxu0 0.0
        %2300 = vmatpush1.msra.mxu0 0.0
        %2301 = vmatprep.subr.mxu0 0.0
        %2302 = vmatpush1.msra.mxu0 0.0
        %2303 = vmatprep.subr.mxu0 0.0
        %2304 = vmatpush1.msra.mxu0 0.0
        %2305 = vmatprep.subr.mxu0 0.0
        %2306 = vmatpush1.msra.mxu0 0.0
        %2307 = vmatprep.subr.mxu0 0.0
        %2308 = vmatpush1.msra.mxu0 0.0
        %2309 = vmatprep.subr.mxu0 0.0
        %2310 = vmatpush1.msra.mxu0 0.0
        %2311 = vmatprep.subr.mxu0 0.0
        %2312 = vmatpush1.msra.mxu0 0.0
        %2313 = vmatprep.subr.mxu0 0.0
        %2314 = vmatpush1.msra.mxu0 0.0
        %2315 = vmatprep.subr.mxu0 0.0
        %2316 = vmatpush1.msra.mxu0 0.0
        %2317 = vmatprep.subr.mxu0 0.0
        %2318 = vmatpush1.msra.mxu0 0.0
        %2319 = vmatprep.subr.mxu0 0.0
        %2320 = vmatpush1.msra.mxu0 0.0
        %2321 = vmatprep.subr.mxu0 0.0
        %2322 = vmatpush1.msra.mxu0 %v2284
        %2323 = vmatprep.subr.mxu0 0.0
        %2324 = vmatpush1.msra.mxu0 %v2282
        %2325 = vmatprep.subr.mxu0 0.0
        %2326 = vmatpush2.msra.mxu0 0.0
        %2327 = vmatprep.subr.mxu0 0.0
        %2328 = vmatpush2.msra.mxu0 0.0
        %2329 = vmatprep.subr.mxu0 0.0
        %2330 = vmatpush2.msra.mxu0 0.0
        %2331 = vmatprep.subr.mxu0 0.0
        %2332 = vmatpush2.msra.mxu0 0.0
        %2333 = vmatprep.subr.mxu0 0.0
        %2334 = vmatpush2.msra.mxu0 0.0
        %2335 = vmatprep.subr.mxu0 0.0
        %2336 = vmatpush2.msra.mxu0 0.0
        %2337 = vmatprep.subr.mxu0 0.0
        %2338 = vmatpush2.msra.mxu0 0.0
        %2339 = vmatprep.subr.mxu0 0.0
        %2340 = vmatpush2.msra.mxu0 0.0
        %2341 = vmatprep.subr.mxu0 0.0
        %2342 = vmatpush2.msra.mxu0 0.0
        %2343 = vmatprep.subr.mxu0 0.0
        %2344 = vmatpush2.msra.mxu0 0.0
        %2345 = vmatprep.subr.mxu0 0.0
        %2346 = vmatpush2.msra.mxu0 0.0
        %2347 = vmatprep.subr.mxu0 0.0
        %2348 = vmatpush2.msra.mxu0 0.0
        %2349 = vmatprep.subr.mxu0 0.0
        %2350 = vmatpush2.msra.mxu0 0.0
        %2351 = vmatprep.subr.mxu0 0.0
        %2352 = vmatpush2.msra.mxu0 0.0
        %2353 = vmatprep.subr.mxu0 0.0
        %2354 = vmatpush2.msra.mxu0 0.0
        %2355 = vmatprep.subr.mxu0 0.0
        %2356 = vmatpush2.msra.mxu0 0.0
        %2357 = vmatprep.mubr.f32.mxu0 0.0
        %2358 = vmatmul.mubr.f32.gmra.mxu0 %v2288
        %v2359 = vpop.f32.mrf.mxu0
        %v2360 = vadd.f32 0.0, %v2359
        %v2361 = vpop.f32.mrf.mxu0
        %2362 = vmatprep.mubr.f32.mxu0 0.0
        %2363 = vmatmul.mubr.f32.gmra.mxu0 %v2291
        %v2364 = vpop.f32.mrf.mxu0
        %v2365 = vadd.f32 0.0, %v2364
        %v2366 = vpop.f32.mrf.mxu0
        %2367 = vdwg.mxu0
        %v2369 = vsel %vm1604, %v2360, 0
        %v2372 = vsel %vm1604, %v2365, 0
        %2374 = vmatprep.subr.mxu0 0.0
        %2375 = vmatpush1.msra.mxu0 0.0
        %2376 = vmatprep.subr.mxu0 0.0
        %2377 = vmatpush1.msra.mxu0 0.0
        %2378 = vmatprep.subr.mxu0 0.0
        %2379 = vmatpush1.msra.mxu0 0.0
        %2380 = vmatprep.subr.mxu0 0.0
        %2381 = vmatpush1.msra.mxu0 0.0
        %2382 = vmatprep.subr.mxu0 0.0
        %2383 = vmatpush1.msra.mxu0 0.0
        %2384 = vmatprep.subr.mxu0 0.0
        %2385 = vmatpush1.msra.mxu0 0.0
        %2386 = vmatprep.subr.mxu0 0.0
        %2387 = vmatpush1.msra.mxu0 0.0
        %2388 = vmatprep.subr.mxu0 0.0
        %2389 = vmatpush1.msra.mxu0 0.0
        %2390 = vmatprep.subr.mxu0 0.0
        %2391 = vmatpush1.msra.mxu0 0.0
        %2392 = vmatprep.subr.mxu0 0.0
        %2393 = vmatpush1.msra.mxu0 0.0
        %2394 = vmatprep.subr.mxu0 0.0
        %2395 = vmatpush1.msra.mxu0 0.0
        %2396 = vmatprep.subr.mxu0 0.0
        %2397 = vmatpush1.msra.mxu0 0.0
        %2398 = vmatprep.subr.mxu0 0.0
        %2399 = vmatpush1.msra.mxu0 0.0
        %2400 = vmatprep.subr.mxu0 0.0
        %2401 = vmatpush1.msra.mxu0 0.0
        %2402 = vmatprep.subr.mxu0 0.0
        %2403 = vmatpush1.msra.mxu0 0.0
        %2404 = vmatprep.subr.mxu0 0.0
        %2405 = vmatpush1.msra.mxu0 %v1226
        %2406 = vmatprep.subr.mxu0 0.0
        %2407 = vmatpush2.msra.mxu0 0.0
        %2408 = vmatprep.subr.mxu0 0.0
        %2409 = vmatpush2.msra.mxu0 0.0
        %2410 = vmatprep.subr.mxu0 0.0
        %2411 = vmatpush2.msra.mxu0 0.0
        %2412 = vmatprep.subr.mxu0 0.0
        %2413 = vmatpush2.msra.mxu0 0.0
        %2414 = vmatprep.subr.mxu0 0.0
        %2415 = vmatpush2.msra.mxu0 0.0
        %2416 = vmatprep.subr.mxu0 0.0
        %2417 = vmatpush2.msra.mxu0 0.0
        %2418 = vmatprep.subr.mxu0 0.0
        %2419 = vmatpush2.msra.mxu0 0.0
        %2420 = vmatprep.subr.mxu0 0.0
        %2421 = vmatpush2.msra.mxu0 0.0
        %2422 = vmatprep.subr.mxu0 0.0
        %2423 = vmatpush2.msra.mxu0 0.0
        %2424 = vmatprep.subr.mxu0 0.0
        %2425 = vmatpush2.msra.mxu0 0.0
        %2426 = vmatprep.subr.mxu0 0.0
        %2427 = vmatpush2.msra.mxu0 0.0
        %2428 = vmatprep.subr.mxu0 0.0
        %2429 = vmatpush2.msra.mxu0 0.0
        %2430 = vmatprep.subr.mxu0 0.0
        %2431 = vmatpush2.msra.mxu0 0.0
        %2432 = vmatprep.subr.mxu0 0.0
        %2433 = vmatpush2.msra.mxu0 0.0
        %2434 = vmatprep.subr.mxu0 0.0
        %2435 = vmatpush2.msra.mxu0 0.0
        %2436 = vmatprep.subr.mxu0 0.0
        %2437 = vmatpush2.msra.mxu0 0.0
        %2438 = vmatprep.mubr.f32.mxu0 0.0
        %2439 = vmatmul.mubr.f32.gmra.mxu0 %v2369
        %v2440 = vpop.f32.mrf.mxu0
        %v2441 = vadd.f32 0.0, %v2440
        %v2442 = vpop.f32.mrf.mxu0
        %2443 = vmatprep.mubr.f32.mxu0 0.0
        %2444 = vmatmul.mubr.f32.gmra.mxu0 %v2372
        %v2445 = vpop.f32.mrf.mxu0
        %v2446 = vadd.f32 0.0, %v2445
        %v2447 = vpop.f32.mrf.mxu0
        %2448 = vdwg.mxu0
        %v2449 = vadd.f32 %v2157, %v2441
        %v2450 = vadd.f32 %v2162, %v2446
        %s2451 = scalar_lea.vmem %s19, 48
        %v2452 = vld [vmem:[%s2451] sm:$0xff]
        %v2453 = vld [vmem:[%s2451 + $0x8] sm:$0xff]
        %2454 = vrot.lane.b32.xlu0 %v1594, 104
        %v2455 = vpop.permute.xlu0 %2454
        %2456 = vrot.lane.b32.xlu0 %v1595, 104
        %v2457 = vpop.permute.xlu0 %2456
        %2458 = vrot.lane.b32.xlu0 %v1586, 72
        %v2459 = vpop.permute.xlu0 %2458
        %2460 = vrot.lane.b32.xlu0 %v1591, 72
        %v2461 = vpop.permute.xlu0 %2460
        %v2462 = vsel %vm1604, %v2455, 0
        %v2464 = vsel %vm1604, %v2457, 0
        %v2466 = vsel %vm1604, %v2459, 0
        %v2468 = vsel %vm1604, %v2461, 0
        %2470 = vmatprep.subr.mxu0 0.0
        %2471 = vmatpush1.xpose.msra.mxu0 0.0
        %2472 = vmatprep.subr.mxu0 0.0
        %2473 = vmatpush1.xpose.msra.mxu0 0.0
        %2474 = vmatprep.subr.mxu0 0.0
        %2475 = vmatpush1.xpose.msra.mxu0 0.0
        %2476 = vmatprep.subr.mxu0 0.0
        %2477 = vmatpush1.xpose.msra.mxu0 0.0
        %2478 = vmatprep.subr.mxu0 0.0
        %2479 = vmatpush1.xpose.msra.mxu0 0.0
        %2480 = vmatprep.subr.mxu0 0.0
        %2481 = vmatpush1.xpose.msra.mxu0 0.0
        %2482 = vmatprep.subr.mxu0 0.0
        %2483 = vmatpush1.xpose.msra.mxu0 0.0
        %2484 = vmatprep.subr.mxu0 0.0
        %2485 = vmatpush1.xpose.msra.mxu0 0.0
        %2486 = vmatprep.subr.mxu0 0.0
        %2487 = vmatpush1.xpose.msra.mxu0 0.0
        %2488 = vmatprep.subr.mxu0 0.0
        %2489 = vmatpush1.xpose.msra.mxu0 0.0
        %2490 = vmatprep.subr.mxu0 0.0
        %2491 = vmatpush1.xpose.msra.mxu0 0.0
        %2492 = vmatprep.subr.mxu0 0.0
        %2493 = vmatpush1.xpose.msra.mxu0 0.0
        %2494 = vmatprep.subr.mxu0 0.0
        %2495 = vmatpush1.xpose.msra.mxu0 0.0
        %2496 = vmatprep.subr.mxu0 0.0
        %2497 = vmatpush1.xpose.msra.mxu0 0.0
        %2498 = vmatprep.subr.mxu0 0.0
        %2499 = vmatpush1.xpose.msra.mxu0 %v2468
        %2500 = vmatprep.subr.mxu0 0.0
        %2501 = vmatpush1.xpose.msra.mxu0 %v2466
        %2502 = vmatprep.subr.mxu0 0.0
        %2503 = vmatpush2.xpose.msra.mxu0 0.0
        %2504 = vmatprep.subr.mxu0 0.0
        %2505 = vmatpush2.xpose.msra.mxu0 0.0
        %2506 = vmatprep.subr.mxu0 0.0
        %2507 = vmatpush2.xpose.msra.mxu0 0.0
        %2508 = vmatprep.subr.mxu0 0.0
        %2509 = vmatpush2.xpose.msra.mxu0 0.0
        %2510 = vmatprep.subr.mxu0 0.0
        %2511 = vmatpush2.xpose.msra.mxu0 0.0
        %2512 = vmatprep.subr.mxu0 0.0
        %2513 = vmatpush2.xpose.msra.mxu0 0.0
        %2514 = vmatprep.subr.mxu0 0.0
        %2515 = vmatpush2.xpose.msra.mxu0 0.0
        %2516 = vmatprep.subr.mxu0 0.0
        %2517 = vmatpush2.xpose.msra.mxu0 0.0
        %2518 = vmatprep.subr.mxu0 0.0
        %2519 = vmatpush2.xpose.msra.mxu0 0.0
        %2520 = vmatprep.subr.mxu0 0.0
        %2521 = vmatpush2.xpose.msra.mxu0 0.0
        %2522 = vmatprep.subr.mxu0 0.0
        %2523 = vmatpush2.xpose.msra.mxu0 0.0
        %2524 = vmatprep.subr.mxu0 0.0
        %2525 = vmatpush2.xpose.msra.mxu0 0.0
        %2526 = vmatprep.subr.mxu0 0.0
        %2527 = vmatpush2.xpose.msra.mxu0 0.0
        %2528 = vmatprep.subr.mxu0 0.0
        %2529 = vmatpush2.xpose.msra.mxu0 0.0
        %2530 = vmatprep.subr.mxu0 0.0
        %2531 = vmatpush2.xpose.msra.mxu0 0.0
        %2532 = vmatprep.subr.mxu0 0.0
        %2533 = vmatpush2.xpose.msra.mxu0 0.0
        %2534 = vmatprep.mubr.f32.mxu0 0.0
        %2535 = vmatmul.mubr.f32.gmra.mxu0 %v2462
        %v2536 = vpop.f32.mrf.mxu0
        %v2537 = vadd.f32 %v2452, %v2536
        %v2538 = vpop.f32.mrf.mxu0
        %2539 = vmatprep.mubr.f32.mxu0 0.0
        %2540 = vmatmul.mubr.f32.gmra.mxu0 %v2464
        %v2541 = vpop.f32.mrf.mxu0
        %v2542 = vadd.f32 %v2453, %v2541
        %v2543 = vpop.f32.mrf.mxu0
        %2544 = vdwg.mxu0
        %v2545 = vsel %vm1690, %v2537, -inf
        %2546 = vmax.xlane.f32.xlu0 %v2545
        %v2547 = vpop.xlane.xlu0 %2546
        %v2548 = vsel %vm1690, %v2542, -inf
        %2549 = vmax.xlane.f32.xlu0 %v2548
        %v2550 = vpop.xlane.xlu0 %2549
        %v2551 = vsub.f32 %v2537, %v2547
        %v2552 = vsub.f32 %v2542, %v2550
        %v2553 = vmul.f32 %v2551, 1.442695
        %v2554 = vpow.pop %v2553
        %v2555 = vmul.f32 %v2552, 1.442695
        %v2556 = vpow.pop %v2555
        %v2557 = vsel %vm1690, %v2554, 0.0
        %2558 = vadd.xlane.f32.xlu0 %v2557
        %v2559 = vpop.xlane.xlu0 %2558
        %v2560 = vsel %vm1690, %v2556, 0.0
        %2561 = vadd.xlane.f32.xlu0 %v2560
        %v2562 = vpop.xlane.xlu0 %2561
        %v2563 = vrcp.pop %v2559
        %v2564 = vrcp.pop %v2562
        %v2565 = vmul.f32 %v2554, %v2563
        %v2566 = vmul.f32 %v2556, %v2564
        %2567 = vrot.lane.b32.xlu0 %v1586, 40
        %v2568 = vpop.permute.xlu0 %2567
        %2569 = vrot.lane.b32.xlu0 %v1591, 40
        %v2570 = vpop.permute.xlu0 %2569
        %v2574 = vsel %vm1690, %v2565, 0
        %v2577 = vsel %vm1690, %v2566, 0
        %2579 = vmatprep.subr.mxu0 0.0
        %2580 = vmatpush1.msra.mxu0 0.0
        %2581 = vmatprep.subr.mxu0 0.0
        %2582 = vmatpush1.msra.mxu0 0.0
        %2583 = vmatprep.subr.mxu0 0.0
        %2584 = vmatpush1.msra.mxu0 0.0
        %2585 = vmatprep.subr.mxu0 0.0
        %2586 = vmatpush1.msra.mxu0 0.0
        %2587 = vmatprep.subr.mxu0 0.0
        %2588 = vmatpush1.msra.mxu0 0.0
        %2589 = vmatprep.subr.mxu0 0.0
        %2590 = vmatpush1.msra.mxu0 0.0
        %2591 = vmatprep.subr.mxu0 0.0
        %2592 = vmatpush1.msra.mxu0 0.0
        %2593 = vmatprep.subr.mxu0 0.0
        %2594 = vmatpush1.msra.mxu0 0.0
        %2595 = vmatprep.subr.mxu0 0.0
        %2596 = vmatpush1.msra.mxu0 0.0
        %2597 = vmatprep.subr.mxu0 0.0
        %2598 = vmatpush1.msra.mxu0 0.0
        %2599 = vmatprep.subr.mxu0 0.0
        %2600 = vmatpush1.msra.mxu0 0.0
        %2601 = vmatprep.subr.mxu0 0.0
        %2602 = vmatpush1.msra.mxu0 0.0
        %2603 = vmatprep.subr.mxu0 0.0
        %2604 = vmatpush1.msra.mxu0 0.0
        %2605 = vmatprep.subr.mxu0 0.0
        %2606 = vmatpush1.msra.mxu0 0.0
        %2607 = vmatprep.subr.mxu0 0.0
        %2608 = vmatpush1.msra.mxu0 %v2570
        %2609 = vmatprep.subr.mxu0 0.0
        %2610 = vmatpush1.msra.mxu0 %v2568
        %2611 = vmatprep.subr.mxu0 0.0
        %2612 = vmatpush2.msra.mxu0 0.0
        %2613 = vmatprep.subr.mxu0 0.0
        %2614 = vmatpush2.msra.mxu0 0.0
        %2615 = vmatprep.subr.mxu0 0.0
        %2616 = vmatpush2.msra.mxu0 0.0
        %2617 = vmatprep.subr.mxu0 0.0
        %2618 = vmatpush2.msra.mxu0 0.0
        %2619 = vmatprep.subr.mxu0 0.0
        %2620 = vmatpush2.msra.mxu0 0.0
        %2621 = vmatprep.subr.mxu0 0.0
        %2622 = vmatpush2.msra.mxu0 0.0
        %2623 = vmatprep.subr.mxu0 0.0
        %2624 = vmatpush2.msra.mxu0 0.0
        %2625 = vmatprep.subr.mxu0 0.0
        %2626 = vmatpush2.msra.mxu0 0.0
        %2627 = vmatprep.subr.mxu0 0.0
        %2628 = vmatpush2.msra.mxu0 0.0
        %2629 = vmatprep.subr.mxu0 0.0
        %2630 = vmatpush2.msra.mxu0 0.0
        %2631 = vmatprep.subr.mxu0 0.0
        %2632 = vmatpush2.msra.mxu0 0.0
        %2633 = vmatprep.subr.mxu0 0.0
        %2634 = vmatpush2.msra.mxu0 0.0
        %2635 = vmatprep.subr.mxu0 0.0
        %2636 = vmatpush2.msra.mxu0 0.0
        %2637 = vmatprep.subr.mxu0 0.0
        %2638 = vmatpush2.msra.mxu0 0.0
        %2639 = vmatprep.subr.mxu0 0.0
        %2640 = vmatpush2.msra.mxu0 0.0
        %2641 = vmatprep.subr.mxu0 0.0
        %2642 = vmatpush2.msra.mxu0 0.0
        %2643 = vmatprep.mubr.f32.mxu0 0.0
        %2644 = vmatmul.mubr.f32.gmra.mxu0 %v2574
        %v2645 = vpop.f32.mrf.mxu0
        %v2646 = vadd.f32 0.0, %v2645
        %v2647 = vpop.f32.mrf.mxu0
        %2648 = vmatprep.mubr.f32.mxu0 0.0
        %2649 = vmatmul.mubr.f32.gmra.mxu0 %v2577
        %v2650 = vpop.f32.mrf.mxu0
        %v2651 = vadd.f32 0.0, %v2650
        %v2652 = vpop.f32.mrf.mxu0
        %2653 = vdwg.mxu0
        %v2655 = vsel %vm1604, %v2646, 0
        %v2658 = vsel %vm1604, %v2651, 0
        %2660 = vmatprep.subr.mxu0 0.0
        %2661 = vmatpush1.msra.mxu0 0.0
        %2662 = vmatprep.subr.mxu0 0.0
        %2663 = vmatpush1.msra.mxu0 0.0
        %2664 = vmatprep.subr.mxu0 0.0
        %2665 = vmatpush1.msra.mxu0 0.0
        %2666 = vmatprep.subr.mxu0 0.0
        %2667 = vmatpush1.msra.mxu0 0.0
        %2668 = vmatprep.subr.mxu0 0.0
        %2669 = vmatpush1.msra.mxu0 0.0
        %2670 = vmatprep.subr.mxu0 0.0
        %2671 = vmatpush1.msra.mxu0 0.0
        %2672 = vmatprep.subr.mxu0 0.0
        %2673 = vmatpush1.msra.mxu0 0.0
        %2674 = vmatprep.subr.mxu0 0.0
        %2675 = vmatpush1.msra.mxu0 0.0
        %2676 = vmatprep.subr.mxu0 0.0
        %2677 = vmatpush1.msra.mxu0 0.0
        %2678 = vmatprep.subr.mxu0 0.0
        %2679 = vmatpush1.msra.mxu0 0.0
        %2680 = vmatprep.subr.mxu0 0.0
        %2681 = vmatpush1.msra.mxu0 0.0
        %2682 = vmatprep.subr.mxu0 0.0
        %2683 = vmatpush1.msra.mxu0 0.0
        %2684 = vmatprep.subr.mxu0 0.0
        %2685 = vmatpush1.msra.mxu0 0.0
        %2686 = vmatprep.subr.mxu0 0.0
        %2687 = vmatpush1.msra.mxu0 0.0
        %2688 = vmatprep.subr.mxu0 0.0
        %2689 = vmatpush1.msra.mxu0 0.0
        %2690 = vmatprep.subr.mxu0 0.0
        %2691 = vmatpush1.msra.mxu0 %v1227
        %2692 = vmatprep.subr.mxu0 0.0
        %2693 = vmatpush2.msra.mxu0 0.0
        %2694 = vmatprep.subr.mxu0 0.0
        %2695 = vmatpush2.msra.mxu0 0.0
        %2696 = vmatprep.subr.mxu0 0.0
        %2697 = vmatpush2.msra.mxu0 0.0
        %2698 = vmatprep.subr.mxu0 0.0
        %2699 = vmatpush2.msra.mxu0 0.0
        %2700 = vmatprep.subr.mxu0 0.0
        %2701 = vmatpush2.msra.mxu0 0.0
        %2702 = vmatprep.subr.mxu0 0.0
        %2703 = vmatpush2.msra.mxu0 0.0
        %2704 = vmatprep.subr.mxu0 0.0
        %2705 = vmatpush2.msra.mxu0 0.0
        %2706 = vmatprep.subr.mxu0 0.0
        %2707 = vmatpush2.msra.mxu0 0.0
        %2708 = vmatprep.subr.mxu0 0.0
        %2709 = vmatpush2.msra.mxu0 0.0
        %2710 = vmatprep.subr.mxu0 0.0
        %2711 = vmatpush2.msra.mxu0 0.0
        %2712 = vmatprep.subr.mxu0 0.0
        %2713 = vmatpush2.msra.mxu0 0.0
        %2714 = vmatprep.subr.mxu0 0.0
        %2715 = vmatpush2.msra.mxu0 0.0
        %2716 = vmatprep.subr.mxu0 0.0
        %2717 = vmatpush2.msra.mxu0 0.0
        %2718 = vmatprep.subr.mxu0 0.0
        %2719 = vmatpush2.msra.mxu0 0.0
        %2720 = vmatprep.subr.mxu0 0.0
        %2721 = vmatpush2.msra.mxu0 0.0
        %2722 = vmatprep.subr.mxu0 0.0
        %2723 = vmatpush2.msra.mxu0 0.0
        %2724 = vmatprep.mubr.f32.mxu0 0.0
        %2725 = vmatmul.mubr.f32.gmra.mxu0 %v2655
        %v2726 = vpop.f32.mrf.mxu0
        %v2727 = vadd.f32 0.0, %v2726
        %v2728 = vpop.f32.mrf.mxu0
        %2729 = vmatprep.mubr.f32.mxu0 0.0
        %2730 = vmatmul.mubr.f32.gmra.mxu0 %v2658
        %v2731 = vpop.f32.mrf.mxu0
        %v2732 = vadd.f32 0.0, %v2731
        %v2733 = vpop.f32.mrf.mxu0
        %2734 = vdwg.mxu0
        %v2735 = vadd.f32 %v2449, %v2727
        %v2736 = vadd.f32 %v2450, %v2732
        %v2737 = vadd.f32 %v1463, %v2735
        %v2738 = vadd.f32 %v1464, %v2736
        %v2740 = vlaneseq
        %v2741 = vshrl.u32 %v2740, 7
        %v2742 = vsub.s32 0, %v2741
        %v2743 = vrot.slane %v1228, %v2742
        %v2745 = vadd.f32 %v2737, %v2743
        %v2746 = vadd.f32 %v2738, %v2743
        %v2747 = vsel %vm1421, %v2745, 0.0
        %2748 = vadd.xlane.f32.xlu0 %v2747
        %v2749 = vpop.xlane.xlu0 %2748
        %v2750 = vsel %vm1421, %v2746, 0.0
        %2751 = vadd.xlane.f32.xlu0 %v2750
        %v2752 = vpop.xlane.xlu0 %2751
        %v2753 = vmul.f32 %v2749, %v1428
        %v2754 = vmul.f32 %v2752, %v1428
        %v2755 = vsub.f32 %v2745, %v2753
        %v2756 = vsub.f32 %v2746, %v2754
        %v2757 = vmul.f32 %v2755, %v2755
        %v2758 = vmul.f32 %v2756, %v2756
        %v2759 = vsel %vm1421, %v2757, 0.0
        %2760 = vadd.xlane.f32.xlu0 %v2759
        %v2761 = vpop.xlane.xlu0 %2760
        %v2762 = vsel %vm1421, %v2758, 0.0
        %2763 = vadd.xlane.f32.xlu0 %v2762
        %v2764 = vpop.xlane.xlu0 %2763
        %v2765 = vmul.f32 %v2761, %v1428
        %v2766 = vmul.f32 %v2764, %v1428
        %v2767 = vadd.f32 %v2765, 1e-05
        %v2768 = vadd.f32 %v2766, 1e-05
        %v2769 = vrsqrt.pop %v2767
        %v2770 = vrsqrt.pop %v2768
        %v2771 = vmul.f32 %v2755, %v2769
        %v2772 = vmul.f32 %v2756, %v2770
        %v2774 = vlaneseq
        %v2775 = vshrl.u32 %v2774, 7
        %v2776 = vsub.s32 0, %v2775
        %v2777 = vrot.slane %v1229, %v2776
        %v2779 = vmul.f32 %v2771, %v2777
        %v2780 = vmul.f32 %v2772, %v2777
        %v2782 = vlaneseq
        %v2783 = vshrl.u32 %v2782, 7
        %v2784 = vsub.s32 0, %v2783
        %v2785 = vrot.slane %v1230, %v2784
        %v2787 = vadd.f32 %v2779, %v2785
        %v2788 = vadd.f32 %v2780, %v2785
        %v2790 = vlaneseq
        %v2791 = vshrl.u32 %v2790, 7
        %v2792 = vsub.s32 0, %v2791
        %v2793 = vrot.slane %v1235, %v2792
        %v2796 = vsel %vm1421, %v2787, 0
        %v2799 = vsel %vm1421, %v2788, 0
        %2801 = vmatprep.subr.mxu0 0.0
        %2802 = vmatpush1.msra.mxu0 0.0
        %2803 = vmatprep.subr.mxu0 0.0
        %2804 = vmatpush1.msra.mxu0 0.0
        %2805 = vmatprep.subr.mxu0 0.0
        %2806 = vmatpush1.msra.mxu0 0.0
        %2807 = vmatprep.subr.mxu0 0.0
        %2808 = vmatpush1.msra.mxu0 0.0
        %2809 = vmatprep.subr.mxu0 0.0
        %2810 = vmatpush1.msra.mxu0 0.0
        %2811 = vmatprep.subr.mxu0 0.0
        %2812 = vmatpush1.msra.mxu0 0.0
        %2813 = vmatprep.subr.mxu0 0.0
        %2814 = vmatpush1.msra.mxu0 0.0
        %2815 = vmatprep.subr.mxu0 0.0
        %2816 = vmatpush1.msra.mxu0 0.0
        %2817 = vmatprep.subr.mxu0 0.0
        %2818 = vmatpush1.msra.mxu0 0.0
        %2819 = vmatprep.subr.mxu0 0.0
        %2820 = vmatpush1.msra.mxu0 0.0
        %2821 = vmatprep.subr.mxu0 0.0
        %2822 = vmatpush1.msra.mxu0 0.0
        %2823 = vmatprep.subr.mxu0 0.0
        %2824 = vmatpush1.msra.mxu0 0.0
        %2825 = vmatprep.subr.mxu0 0.0
        %2826 = vmatpush1.msra.mxu0 %v1234
        %2827 = vmatprep.subr.mxu0 0.0
        %2828 = vmatpush1.msra.mxu0 %v1233
        %2829 = vmatprep.subr.mxu0 0.0
        %2830 = vmatpush1.msra.mxu0 %v1232
        %2831 = vmatprep.subr.mxu0 0.0
        %2832 = vmatpush1.msra.mxu0 %v1231
        %2833 = vmatprep.subr.mxu0 0.0
        %2834 = vmatpush2.msra.mxu0 0.0
        %2835 = vmatprep.subr.mxu0 0.0
        %2836 = vmatpush2.msra.mxu0 0.0
        %2837 = vmatprep.subr.mxu0 0.0
        %2838 = vmatpush2.msra.mxu0 0.0
        %2839 = vmatprep.subr.mxu0 0.0
        %2840 = vmatpush2.msra.mxu0 0.0
        %2841 = vmatprep.subr.mxu0 0.0
        %2842 = vmatpush2.msra.mxu0 0.0
        %2843 = vmatprep.subr.mxu0 0.0
        %2844 = vmatpush2.msra.mxu0 0.0
        %2845 = vmatprep.subr.mxu0 0.0
        %2846 = vmatpush2.msra.mxu0 0.0
        %2847 = vmatprep.subr.mxu0 0.0
        %2848 = vmatpush2.msra.mxu0 0.0
        %2849 = vmatprep.subr.mxu0 0.0
        %2850 = vmatpush2.msra.mxu0 0.0
        %2851 = vmatprep.subr.mxu0 0.0
        %2852 = vmatpush2.msra.mxu0 0.0
        %2853 = vmatprep.subr.mxu0 0.0
        %2854 = vmatpush2.msra.mxu0 0.0
        %2855 = vmatprep.subr.mxu0 0.0
        %2856 = vmatpush2.msra.mxu0 0.0
        %2857 = vmatprep.subr.mxu0 0.0
        %2858 = vmatpush2.msra.mxu0 0.0
        %2859 = vmatprep.subr.mxu0 0.0
        %2860 = vmatpush2.msra.mxu0 0.0
        %2861 = vmatprep.subr.mxu0 0.0
        %2862 = vmatpush2.msra.mxu0 0.0
        %2863 = vmatprep.subr.mxu0 0.0
        %2864 = vmatpush2.msra.mxu0 0.0
        %2865 = vmatprep.mubr.f32.mxu0 0.0
        %2866 = vmatmul.mubr.f32.gmra.mxu0 %v2796
        %v2867 = vpop.f32.mrf.mxu0
        %v2868 = vadd.f32 %v2793, %v2867
        %v2869 = vpop.f32.mrf.mxu0
        %2870 = vmatprep.mubr.f32.mxu0 0.0
        %2871 = vmatmul.mubr.f32.gmra.mxu0 %v2799
        %v2872 = vpop.f32.mrf.mxu0
        %v2873 = vadd.f32 %v2793, %v2872
        %v2874 = vpop.f32.mrf.mxu0
        %2875 = vdwg.mxu0
        %v2876 = vmul.f32 %v2868, %v2868
        %v2877 = vmul.f32 %v2873, %v2873
        %v2878 = vmul.f32 %v2868, %v2876
        %v2879 = vmul.f32 %v2873, %v2877
        %v2880 = vmul.f32 %v2878, 0.044715
        %v2881 = vmul.f32 %v2879, 0.044715
        %v2882 = vadd.f32 %v2868, %v2880
        %v2883 = vadd.f32 %v2873, %v2881
        %v2884 = vmul.f32 %v2882, 0.7978846
        %v2885 = vmul.f32 %v2883, 0.7978846
        %v2886 = vtanh.pop %v2884
        %v2887 = vtanh.pop %v2885
        %v2888 = vadd.f32 %v2886, 1.0
        %v2889 = vadd.f32 %v2887, 1.0
        %v2890 = vmul.f32 %v2888, 0.5
        %v2891 = vmul.f32 %v2889, 0.5
        %v2892 = vmul.f32 %v2868, %v2890
        %v2893 = vmul.f32 %v2873, %v2891
        %v2895 = vlaneseq
        %v2896 = vshrl.u32 %v2895, 7
        %v2897 = vsub.s32 0, %v2896
        %v2898 = vrot.slane %v1244, %v2897
        %vm2900 = vcmask 523264
        %v2902 = vsel %vm2900, %v2892, 0
        %v2905 = vsel %vm2900, %v2893, 0
        %2907 = vmatprep.subr.mxu0 0.0
        %2908 = vmatpush1.msra.mxu0 0.0
        %2909 = vmatprep.subr.mxu0 0.0
        %2910 = vmatpush1.msra.mxu0 0.0
        %2911 = vmatprep.subr.mxu0 0.0
        %2912 = vmatpush1.msra.mxu0 0.0
        %2913 = vmatprep.subr.mxu0 0.0
        %2914 = vmatpush1.msra.mxu0 0.0
        %2915 = vmatprep.subr.mxu0 0.0
        %2916 = vmatpush1.msra.mxu0 0.0
        %2917 = vmatprep.subr.mxu0 0.0
        %2918 = vmatpush1.msra.mxu0 0.0
        %2919 = vmatprep.subr.mxu0 0.0
        %2920 = vmatpush1.msra.mxu0 0.0
        %2921 = vmatprep.subr.mxu0 0.0
        %2922 = vmatpush1.msra.mxu0 0.0
        %2923 = vmatprep.subr.mxu0 0.0
        %2924 = vmatpush1.msra.mxu0 %v1243
        %2925 = vmatprep.subr.mxu0 0.0
        %2926 = vmatpush1.msra.mxu0 %v1242
        %2927 = vmatprep.subr.mxu0 0.0
        %2928 = vmatpush1.msra.mxu0 %v1241
        %2929 = vmatprep.subr.mxu0 0.0
        %2930 = vmatpush1.msra.mxu0 %v1240
        %2931 = vmatprep.subr.mxu0 0.0
        %2932 = vmatpush1.msra.mxu0 %v1239
        %2933 = vmatprep.subr.mxu0 0.0
        %2934 = vmatpush1.msra.mxu0 %v1238
        %2935 = vmatprep.subr.mxu0 0.0
        %2936 = vmatpush1.msra.mxu0 %v1237
        %2937 = vmatprep.subr.mxu0 0.0
        %2938 = vmatpush1.msra.mxu0 %v1236
        %2939 = vmatprep.subr.mxu0 0.0
        %2940 = vmatpush2.msra.mxu0 0.0
        %2941 = vmatprep.subr.mxu0 0.0
        %2942 = vmatpush2.msra.mxu0 0.0
        %2943 = vmatprep.subr.mxu0 0.0
        %2944 = vmatpush2.msra.mxu0 0.0
        %2945 = vmatprep.subr.mxu0 0.0
        %2946 = vmatpush2.msra.mxu0 0.0
        %2947 = vmatprep.subr.mxu0 0.0
        %2948 = vmatpush2.msra.mxu0 0.0
        %2949 = vmatprep.subr.mxu0 0.0
        %2950 = vmatpush2.msra.mxu0 0.0
        %2951 = vmatprep.subr.mxu0 0.0
        %2952 = vmatpush2.msra.mxu0 0.0
        %2953 = vmatprep.subr.mxu0 0.0
        %2954 = vmatpush2.msra.mxu0 0.0
        %2955 = vmatprep.subr.mxu0 0.0
        %2956 = vmatpush2.msra.mxu0 0.0
        %2957 = vmatprep.subr.mxu0 0.0
        %2958 = vmatpush2.msra.mxu0 0.0
        %2959 = vmatprep.subr.mxu0 0.0
        %2960 = vmatpush2.msra.mxu0 0.0
        %2961 = vmatprep.subr.mxu0 0.0
        %2962 = vmatpush2.msra.mxu0 0.0
        %2963 = vmatprep.subr.mxu0 0.0
        %2964 = vmatpush2.msra.mxu0 0.0
        %2965 = vmatprep.subr.mxu0 0.0
        %2966 = vmatpush2.msra.mxu0 0.0
        %2967 = vmatprep.subr.mxu0 0.0
        %2968 = vmatpush2.msra.mxu0 0.0
        %2969 = vmatprep.subr.mxu0 0.0
        %2970 = vmatpush2.msra.mxu0 0.0
        %2971 = vmatprep.mubr.f32.mxu0 0.0
        %2972 = vmatmul.mubr.f32.gmra.mxu0 %v2902
        %v2973 = vpop.f32.mrf.mxu0
        %v2974 = vadd.f32 %v2898, %v2973
        %v2975 = vpop.f32.mrf.mxu0
        %2976 = vmatprep.mubr.f32.mxu0 0.0
        %2977 = vmatmul.mubr.f32.gmra.mxu0 %v2905
        %v2978 = vpop.f32.mrf.mxu0
        %v2979 = vadd.f32 %v2898, %v2978
        %v2980 = vpop.f32.mrf.mxu0
        %2981 = vdwg.mxu0
        %v2982 = vadd.f32 %v2745, %v2974
        %v2983 = vadd.f32 %v2746, %v2979
        %v2984 = vld [vmem:[%s37] sm:$0xf]
        %v2986 = vsel %vm1690, %v2984, 0
        %2988 = vmatprep.subr.mxu0 0.0
        %2989 = vmatpush1.msra.mxu0 0.0
        %2990 = vmatprep.subr.mxu0 0.0
        %2991 = vmatpush1.msra.mxu0 0.0
        %2992 = vmatprep.subr.mxu0 0.0
        %2993 = vmatpush1.msra.mxu0 0.0
        %2994 = vmatprep.subr.mxu0 0.0
        %2995 = vmatpush1.msra.mxu0 0.0
        %2996 = vmatprep.subr.mxu0 0.0
        %2997 = vmatpush1.msra.mxu0 0.0
        %2998 = vmatprep.subr.mxu0 0.0
        %2999 = vmatpush1.msra.mxu0 0.0
        %3000 = vmatprep.subr.mxu0 0.0
        %3001 = vmatpush1.msra.mxu0 0.0
        %3002 = vmatprep.subr.mxu0 0.0
        %3003 = vmatpush1.msra.mxu0 0.0
        %3004 = vmatprep.subr.mxu0 0.0
        %3005 = vmatpush1.msra.mxu0 0.0
        %3006 = vmatprep.subr.mxu0 0.0
        %3007 = vmatpush1.msra.mxu0 0.0
        %3008 = vmatprep.subr.mxu0 0.0
        %3009 = vmatpush1.msra.mxu0 0.0
        %3010 = vmatprep.subr.mxu0 0.0
        %3011 = vmatpush1.msra.mxu0 0.0
        %3012 = vmatprep.subr.mxu0 0.0
        %3013 = vmatpush1.msra.mxu0 0.0
        %3014 = vmatprep.subr.mxu0 0.0
        %3015 = vmatpush1.msra.mxu0 0.0
        %3016 = vmatprep.subr.mxu0 0.0
        %3017 = vmatpush1.msra.mxu0 %v2983
        %3018 = vmatprep.subr.mxu0 0.0
        %3019 = vmatpush1.msra.mxu0 %v2982
        %3020 = vmatprep.subr.mxu0 0.0
        %3021 = vmatpush2.msra.mxu0 0.0
        %3022 = vmatprep.subr.mxu0 0.0
        %3023 = vmatpush2.msra.mxu0 0.0
        %3024 = vmatprep.subr.mxu0 0.0
        %3025 = vmatpush2.msra.mxu0 0.0
        %3026 = vmatprep.subr.mxu0 0.0
        %3027 = vmatpush2.msra.mxu0 0.0
        %3028 = vmatprep.subr.mxu0 0.0
        %3029 = vmatpush2.msra.mxu0 0.0
        %3030 = vmatprep.subr.mxu0 0.0
        %3031 = vmatpush2.msra.mxu0 0.0
        %3032 = vmatprep.subr.mxu0 0.0
        %3033 = vmatpush2.msra.mxu0 0.0
        %3034 = vmatprep.subr.mxu0 0.0
        %3035 = vmatpush2.msra.mxu0 0.0
        %3036 = vmatprep.subr.mxu0 0.0
        %3037 = vmatpush2.msra.mxu0 0.0
        %3038 = vmatprep.subr.mxu0 0.0
        %3039 = vmatpush2.msra.mxu0 0.0
        %3040 = vmatprep.subr.mxu0 0.0
        %3041 = vmatpush2.msra.mxu0 0.0
        %3042 = vmatprep.subr.mxu0 0.0
        %3043 = vmatpush2.msra.mxu0 0.0
        %3044 = vmatprep.subr.mxu0 0.0
        %3045 = vmatpush2.msra.mxu0 0.0
        %3046 = vmatprep.subr.mxu0 0.0
        %3047 = vmatpush2.msra.mxu0 0.0
        %3048 = vmatprep.subr.mxu0 0.0
        %3049 = vmatpush2.msra.mxu0 0.0
        %3050 = vmatprep.subr.mxu0 0.0
        %3051 = vmatpush2.msra.mxu0 0.0
        %3052 = vmatprep.mubr.f32.mxu0 0.0
        %3053 = vmatmul.mubr.f32.gmra.mxu0 %v2986
        %v3054 = vpop.f32.mrf.mxu0
        %v3055 = vadd.f32 0.0, %v3054
        %v3056 = vpop.f32.mrf.mxu0
        %3057 = vdwg.mxu0
        %s3058 = scalar_lea.vmem %s37, 4
        %v3059 = vld [vmem:[%s3058] sm:$0xf]
        %v3061 = vsel %vm1690, %v3059, 0
        %3063 = vmatprep.subr.mxu0 0.0
        %3064 = vmatpush1.msra.mxu0 0.0
        %3065 = vmatprep.subr.mxu0 0.0
        %3066 = vmatpush1.msra.mxu0 0.0
        %3067 = vmatprep.subr.mxu0 0.0
        %3068 = vmatpush1.msra.mxu0 0.0
        %3069 = vmatprep.subr.mxu0 0.0
        %3070 = vmatpush1.msra.mxu0 0.0
        %3071 = vmatprep.subr.mxu0 0.0
        %3072 = vmatpush1.msra.mxu0 0.0
        %3073 = vmatprep.subr.mxu0 0.0
        %3074 = vmatpush1.msra.mxu0 0.0
        %3075 = vmatprep.subr.mxu0 0.0
        %3076 = vmatpush1.msra.mxu0 0.0
        %3077 = vmatprep.subr.mxu0 0.0
        %3078 = vmatpush1.msra.mxu0 0.0
        %3079 = vmatprep.subr.mxu0 0.0
        %3080 = vmatpush1.msra.mxu0 0.0
        %3081 = vmatprep.subr.mxu0 0.0
        %3082 = vmatpush1.msra.mxu0 0.0
        %3083 = vmatprep.subr.mxu0 0.0
        %3084 = vmatpush1.msra.mxu0 0.0
        %3085 = vmatprep.subr.mxu0 0.0
        %3086 = vmatpush1.msra.mxu0 0.0
        %3087 = vmatprep.subr.mxu0 0.0
        %3088 = vmatpush1.msra.mxu0 0.0
        %3089 = vmatprep.subr.mxu0 0.0
        %3090 = vmatpush1.msra.mxu0 0.0
        %3091 = vmatprep.subr.mxu0 0.0
        %3092 = vmatpush1.msra.mxu0 %v2983
        %3093 = vmatprep.subr.mxu0 0.0
        %3094 = vmatpush1.msra.mxu0 %v2982
        %3095 = vmatprep.subr.mxu0 0.0
        %3096 = vmatpush2.msra.mxu0 0.0
        %3097 = vmatprep.subr.mxu0 0.0
        %3098 = vmatpush2.msra.mxu0 0.0
        %3099 = vmatprep.subr.mxu0 0.0
        %3100 = vmatpush2.msra.mxu0 0.0
        %3101 = vmatprep.subr.mxu0 0.0
        %3102 = vmatpush2.msra.mxu0 0.0
        %3103 = vmatprep.subr.mxu0 0.0
        %3104 = vmatpush2.msra.mxu0 0.0
        %3105 = vmatprep.subr.mxu0 0.0
        %3106 = vmatpush2.msra.mxu0 0.0
        %3107 = vmatprep.subr.mxu0 0.0
        %3108 = vmatpush2.msra.mxu0 0.0
        %3109 = vmatprep.subr.mxu0 0.0
        %3110 = vmatpush2.msra.mxu0 0.0
        %3111 = vmatprep.subr.mxu0 0.0
        %3112 = vmatpush2.msra.mxu0 0.0
        %3113 = vmatprep.subr.mxu0 0.0
        %3114 = vmatpush2.msra.mxu0 0.0
        %3115 = vmatprep.subr.mxu0 0.0
        %3116 = vmatpush2.msra.mxu0 0.0
        %3117 = vmatprep.subr.mxu0 0.0
        %3118 = vmatpush2.msra.mxu0 0.0
        %3119 = vmatprep.subr.mxu0 0.0
        %3120 = vmatpush2.msra.mxu0 0.0
        %3121 = vmatprep.subr.mxu0 0.0
        %3122 = vmatpush2.msra.mxu0 0.0
        %3123 = vmatprep.subr.mxu0 0.0
        %3124 = vmatpush2.msra.mxu0 0.0
        %3125 = vmatprep.subr.mxu0 0.0
        %3126 = vmatpush2.msra.mxu0 0.0
        %3127 = vmatprep.mubr.f32.mxu0 0.0
        %3128 = vmatmul.mubr.f32.gmra.mxu0 %v3061
        %v3129 = vpop.f32.mrf.mxu0
        %v3130 = vadd.f32 0.0, %v3129
        %v3131 = vpop.f32.mrf.mxu0
        %3132 = vdwg.mxu0
        %s3133 = scalar_lea.vmem %s37, 8
        %v3134 = vld [vmem:[%s3133] sm:$0xf]
        %v3136 = vsel %vm1690, %v3134, 0
        %3138 = vmatprep.subr.mxu0 0.0
        %3139 = vmatpush1.msra.mxu0 0.0
        %3140 = vmatprep.subr.mxu0 0.0
        %3141 = vmatpush1.msra.mxu0 0.0
        %3142 = vmatprep.subr.mxu0 0.0
        %3143 = vmatpush1.msra.mxu0 0.0
        %3144 = vmatprep.subr.mxu0 0.0
        %3145 = vmatpush1.msra.mxu0 0.0
        %3146 = vmatprep.subr.mxu0 0.0
        %3147 = vmatpush1.msra.mxu0 0.0
        %3148 = vmatprep.subr.mxu0 0.0
        %3149 = vmatpush1.msra.mxu0 0.0
        %3150 = vmatprep.subr.mxu0 0.0
        %3151 = vmatpush1.msra.mxu0 0.0
        %3152 = vmatprep.subr.mxu0 0.0
        %3153 = vmatpush1.msra.mxu0 0.0
        %3154 = vmatprep.subr.mxu0 0.0
        %3155 = vmatpush1.msra.mxu0 0.0
        %3156 = vmatprep.subr.mxu0 0.0
        %3157 = vmatpush1.msra.mxu0 0.0
        %3158 = vmatprep.subr.mxu0 0.0
        %3159 = vmatpush1.msra.mxu0 0.0
        %3160 = vmatprep.subr.mxu0 0.0
        %3161 = vmatpush1.msra.mxu0 0.0
        %3162 = vmatprep.subr.mxu0 0.0
        %3163 = vmatpush1.msra.mxu0 0.0
        %3164 = vmatprep.subr.mxu0 0.0
        %3165 = vmatpush1.msra.mxu0 0.0
        %3166 = vmatprep.subr.mxu0 0.0
        %3167 = vmatpush1.msra.mxu0 %v2983
        %3168 = vmatprep.subr.mxu0 0.0
        %3169 = vmatpush1.msra.mxu0 %v2982
        %3170 = vmatprep.subr.mxu0 0.0
        %3171 = vmatpush2.msra.mxu0 0.0
        %3172 = vmatprep.subr.mxu0 0.0
        %3173 = vmatpush2.msra.mxu0 0.0
        %3174 = vmatprep.subr.mxu0 0.0
        %3175 = vmatpush2.msra.mxu0 0.0
        %3176 = vmatprep.subr.mxu0 0.0
        %3177 = vmatpush2.msra.mxu0 0.0
        %3178 = vmatprep.subr.mxu0 0.0
        %3179 = vmatpush2.msra.mxu0 0.0
        %3180 = vmatprep.subr.mxu0 0.0
        %3181 = vmatpush2.msra.mxu0 0.0
        %3182 = vmatprep.subr.mxu0 0.0
        %3183 = vmatpush2.msra.mxu0 0.0
        %3184 = vmatprep.subr.mxu0 0.0
        %3185 = vmatpush2.msra.mxu0 0.0
        %3186 = vmatprep.subr.mxu0 0.0
        %3187 = vmatpush2.msra.mxu0 0.0
        %3188 = vmatprep.subr.mxu0 0.0
        %3189 = vmatpush2.msra.mxu0 0.0
        %3190 = vmatprep.subr.mxu0 0.0
        %3191 = vmatpush2.msra.mxu0 0.0
        %3192 = vmatprep.subr.mxu0 0.0
        %3193 = vmatpush2.msra.mxu0 0.0
        %3194 = vmatprep.subr.mxu0 0.0
        %3195 = vmatpush2.msra.mxu0 0.0
        %3196 = vmatprep.subr.mxu0 0.0
        %3197 = vmatpush2.msra.mxu0 0.0
        %3198 = vmatprep.subr.mxu0 0.0
        %3199 = vmatpush2.msra.mxu0 0.0
        %3200 = vmatprep.subr.mxu0 0.0
        %3201 = vmatpush2.msra.mxu0 0.0
        %3202 = vmatprep.mubr.f32.mxu0 0.0
        %3203 = vmatmul.mubr.f32.gmra.mxu0 %v3136
        %v3204 = vpop.f32.mrf.mxu0
        %v3205 = vadd.f32 0.0, %v3204
        %v3206 = vpop.f32.mrf.mxu0
        %3207 = vdwg.mxu0
        %s3208 = scalar_lea.vmem %s37, 12
        %v3209 = vld [vmem:[%s3208] sm:$0xf]
        %v3211 = vsel %vm1690, %v3209, 0
        %3213 = vmatprep.subr.mxu0 0.0
        %3214 = vmatpush1.msra.mxu0 0.0
        %3215 = vmatprep.subr.mxu0 0.0
        %3216 = vmatpush1.msra.mxu0 0.0
        %3217 = vmatprep.subr.mxu0 0.0
        %3218 = vmatpush1.msra.mxu0 0.0
        %3219 = vmatprep.subr.mxu0 0.0
        %3220 = vmatpush1.msra.mxu0 0.0
        %3221 = vmatprep.subr.mxu0 0.0
        %3222 = vmatpush1.msra.mxu0 0.0
        %3223 = vmatprep.subr.mxu0 0.0
        %3224 = vmatpush1.msra.mxu0 0.0
        %3225 = vmatprep.subr.mxu0 0.0
        %3226 = vmatpush1.msra.mxu0 0.0
        %3227 = vmatprep.subr.mxu0 0.0
        %3228 = vmatpush1.msra.mxu0 0.0
        %3229 = vmatprep.subr.mxu0 0.0
        %3230 = vmatpush1.msra.mxu0 0.0
        %3231 = vmatprep.subr.mxu0 0.0
        %3232 = vmatpush1.msra.mxu0 0.0
        %3233 = vmatprep.subr.mxu0 0.0
        %3234 = vmatpush1.msra.mxu0 0.0
        %3235 = vmatprep.subr.mxu0 0.0
        %3236 = vmatpush1.msra.mxu0 0.0
        %3237 = vmatprep.subr.mxu0 0.0
        %3238 = vmatpush1.msra.mxu0 0.0
        %3239 = vmatprep.subr.mxu0 0.0
        %3240 = vmatpush1.msra.mxu0 0.0
        %3241 = vmatprep.subr.mxu0 0.0
        %3242 = vmatpush1.msra.mxu0 %v2983
        %3243 = vmatprep.subr.mxu0 0.0
        %3244 = vmatpush1.msra.mxu0 %v2982
        %3245 = vmatprep.subr.mxu0 0.0
        %3246 = vmatpush2.msra.mxu0 0.0
        %3247 = vmatprep.subr.mxu0 0.0
        %3248 = vmatpush2.msra.mxu0 0.0
        %3249 = vmatprep.subr.mxu0 0.0
        %3250 = vmatpush2.msra.mxu0 0.0
        %3251 = vmatprep.subr.mxu0 0.0
        %3252 = vmatpush2.msra.mxu0 0.0
        %3253 = vmatprep.subr.mxu0 0.0
        %3254 = vmatpush2.msra.mxu0 0.0
        %3255 = vmatprep.subr.mxu0 0.0
        %3256 = vmatpush2.msra.mxu0 0.0
        %3257 = vmatprep.subr.mxu0 0.0
        %3258 = vmatpush2.msra.mxu0 0.0
        %3259 = vmatprep.subr.mxu0 0.0
        %3260 = vmatpush2.msra.mxu0 0.0
        %3261 = vmatprep.subr.mxu0 0.0
        %3262 = vmatpush2.msra.mxu0 0.0
        %3263 = vmatprep.subr.mxu0 0.0
        %3264 = vmatpush2.msra.mxu0 0.0
        %3265 = vmatprep.subr.mxu0 0.0
        %3266 = vmatpush2.msra.mxu0 0.0
        %3267 = vmatprep.subr.mxu0 0.0
        %3268 = vmatpush2.msra.mxu0 0.0
        %3269 = vmatprep.subr.mxu0 0.0
        %3270 = vmatpush2.msra.mxu0 0.0
        %3271 = vmatprep.subr.mxu0 0.0
        %3272 = vmatpush2.msra.mxu0 0.0
        %3273 = vmatprep.subr.mxu0 0.0
        %3274 = vmatpush2.msra.mxu0 0.0
        %3275 = vmatprep.subr.mxu0 0.0
        %3276 = vmatpush2.msra.mxu0 0.0
        %3277 = vmatprep.mubr.f32.mxu0 0.0
        %3278 = vmatmul.mubr.f32.gmra.mxu0 %v3211
        %v3279 = vpop.f32.mrf.mxu0
        %v3280 = vadd.f32 0.0, %v3279
        %v3281 = vpop.f32.mrf.mxu0
        %3282 = vdwg.mxu0
        %3284 = vrot.lane.b32.xlu0 %v3130, 32
        %v3285 = vpop.permute.xlu0 %3284
        %3288 = vrot.lane.b32.xlu0 %v3205, 64
        %v3289 = vpop.permute.xlu0 %3288
        %3292 = vrot.lane.b32.xlu0 %v3280, 96
        %v3293 = vpop.permute.xlu0 %3292
        %v3295 = vsel %vm1421, %v3055, %v3285
        %v3296 = vsel %vm2900, %v3295, %v3289
        %vm3297 = vcmask 785408
        %v3298 = vsel %vm3297, %v3296, %v3293
        %vm3299 = vcmask 1043456
        %v3300 = vsel %vm3299, %v3298, 0.0
        %3301 = vadd.xlane.f32.xlu0 %v3300
        %v3302 = vpop.xlane.xlu0 %3301
        %v3303 = vrcp.pop 128.0
        %v3304 = vmul.f32 %v3302, %v3303
        %v3305 = vsub.f32 %v3298, %v3304
        %v3306 = vmul.f32 %v3305, %v3305
        %v3307 = vsel %vm3299, %v3306, 0.0
        %3308 = vadd.xlane.f32.xlu0 %v3307
        %v3309 = vpop.xlane.xlu0 %3308
        %v3310 = vmul.f32 %v3309, %v3303
        %v3311 = vadd.f32 %v3310, 1e-05
        %v3312 = vrsqrt.pop %v3311
        %v3313 = vmul.f32 %v3305, %v3312
        %v3315 = vlaneseq
        %v3316 = vshrl.u32 %v3315, 7
        %v3317 = vsub.s32 0, %v3316
        %v3318 = vrot.slane %v1245, %v3317
        %v3320 = vmul.f32 %v3313, %v3318
        %v3322 = vlaneseq
        %v3323 = vshrl.u32 %v3322, 7
        %v3324 = vsub.s32 0, %v3323
        %v3325 = vrot.slane %v1246, %v3324
        %v3327 = vadd.f32 %v3320, %v3325
        %v3329 = vlaneseq
        %v3330 = vshrl.u32 %v3329, 7
        %v3331 = vsub.s32 0, %v3330
        %v3332 = vrot.slane %v1263, %v3331
        %3334 = vmatprep.subr.mxu0 0.0
        %3335 = vmatpush1.msra.mxu0 %v1262
        %3336 = vmatprep.subr.mxu0 0.0
        %3337 = vmatpush1.msra.mxu0 %v1261
        %3338 = vmatprep.subr.mxu0 0.0
        %3339 = vmatpush1.msra.mxu0 %v1260
        %3340 = vmatprep.subr.mxu0 0.0
        %3341 = vmatpush1.msra.mxu0 %v1259
        %3342 = vmatprep.subr.mxu0 0.0
        %3343 = vmatpush1.msra.mxu0 %v1258
        %3344 = vmatprep.subr.mxu0 0.0
        %3345 = vmatpush1.msra.mxu0 %v1257
        %3346 = vmatprep.subr.mxu0 0.0
        %3347 = vmatpush1.msra.mxu0 %v1256
        %3348 = vmatprep.subr.mxu0 0.0
        %3349 = vmatpush1.msra.mxu0 %v1255
        %3350 = vmatprep.subr.mxu0 0.0
        %3351 = vmatpush1.msra.mxu0 %v1254
        %3352 = vmatprep.subr.mxu0 0.0
        %3353 = vmatpush1.msra.mxu0 %v1253
        %3354 = vmatprep.subr.mxu0 0.0
        %3355 = vmatpush1.msra.mxu0 %v1252
        %3356 = vmatprep.subr.mxu0 0.0
        %3357 = vmatpush1.msra.mxu0 %v1251
        %3358 = vmatprep.subr.mxu0 0.0
        %3359 = vmatpush1.msra.mxu0 %v1250
        %3360 = vmatprep.subr.mxu0 0.0
        %3361 = vmatpush1.msra.mxu0 %v1249
        %3362 = vmatprep.subr.mxu0 0.0
        %3363 = vmatpush1.msra.mxu0 %v1248
        %3364 = vmatprep.subr.mxu0 0.0
        %3365 = vmatpush1.msra.mxu0 %v1247
        %3366 = vmatprep.subr.mxu0 0.0
        %3367 = vmatpush2.msra.mxu0 0.0
        %3368 = vmatprep.subr.mxu0 0.0
        %3369 = vmatpush2.msra.mxu0 0.0
        %3370 = vmatprep.subr.mxu0 0.0
        %3371 = vmatpush2.msra.mxu0 0.0
        %3372 = vmatprep.subr.mxu0 0.0
        %3373 = vmatpush2.msra.mxu0 0.0
        %3374 = vmatprep.subr.mxu0 0.0
        %3375 = vmatpush2.msra.mxu0 0.0
        %3376 = vmatprep.subr.mxu0 0.0
        %3377 = vmatpush2.msra.mxu0 0.0
        %3378 = vmatprep.subr.mxu0 0.0
        %3379 = vmatpush2.msra.mxu0 0.0
        %3380 = vmatprep.subr.mxu0 0.0
        %3381 = vmatpush2.msra.mxu0 0.0
        %3382 = vmatprep.subr.mxu0 0.0
        %3383 = vmatpush2.msra.mxu0 0.0
        %3384 = vmatprep.subr.mxu0 0.0
        %3385 = vmatpush2.msra.mxu0 0.0
        %3386 = vmatprep.subr.mxu0 0.0
        %3387 = vmatpush2.msra.mxu0 0.0
        %3388 = vmatprep.subr.mxu0 0.0
        %3389 = vmatpush2.msra.mxu0 0.0
        %3390 = vmatprep.subr.mxu0 0.0
        %3391 = vmatpush2.msra.mxu0 0.0
        %3392 = vmatprep.subr.mxu0 0.0
        %3393 = vmatpush2.msra.mxu0 0.0
        %3394 = vmatprep.subr.mxu0 0.0
        %3395 = vmatpush2.msra.mxu0 0.0
        %3396 = vmatprep.subr.mxu0 0.0
        %3397 = vmatpush2.msra.mxu0 0.0
        %3398 = vmatprep.mubr.f32.mxu0 0.0
        %3399 = vmatmul.mubr.f32.gmra.mxu0 %v3327
        %v3400 = vpop.f32.mrf.mxu0
        %v3401 = vadd.f32 %v3332, %v3400
        %v3402 = vpop.f32.mrf.mxu0
        %3403 = vdwg.mxu0
        %vm3404 = vcmask 519168
        %v3405 = vsel %vm3404, %v3401, 0.0
        %3406 = vadd.xlane.f32.xlu0 %v3405
        %v3407 = vpop.xlane.xlu0 %3406
        %v3408 = vrcp.pop 64.0
        %v3409 = vmul.f32 %v3407, %v3408
        %v3410 = vsub.f32 %v3401, %v3409
        %v3411 = vmul.f32 %v3410, %v3410
        %v3412 = vsel %vm3404, %v3411, 0.0
        %3413 = vadd.xlane.f32.xlu0 %v3412
        %v3414 = vpop.xlane.xlu0 %3413
        %v3415 = vmul.f32 %v3414, %v3408
        %v3416 = vadd.f32 %v3415, 1e-05
        %v3417 = vrsqrt.pop %v3416
        %v3418 = vmul.f32 %v3410, %v3417
        %v3420 = vlaneseq
        %v3421 = vshrl.u32 %v3420, 7
        %v3422 = vsub.s32 0, %v3421
        %v3423 = vrot.slane %v1264, %v3422
        %v3425 = vmul.f32 %v3418, %v3423
        %v3427 = vlaneseq
        %v3428 = vshrl.u32 %v3427, 7
        %v3429 = vsub.s32 0, %v3428
        %v3430 = vrot.slane %v1265, %v3429
        %v3432 = vadd.f32 %v3425, %v3430
        %v3434 = vlaneseq
        %v3435 = vshrl.u32 %v3434, 7
        %v3436 = vsub.s32 0, %v3435
        %v3437 = vrot.slane %v1282, %v3436
        %v3438 = vlaneseq
        %v3439 = vshrl.u32 %v3438, 7
        %v3440 = vsub.s32 1, %v3439
        %v3441 = vrot.slane %v1282, %v3440
        %v3445 = vsel %vm2900, %v3432, 0
        %3447 = vmatprep.subr.mxu0 0.0
        %3448 = vmatpush1.msra.mxu0 0.0
        %3449 = vmatprep.subr.mxu0 0.0
        %3450 = vmatpush1.msra.mxu0 0.0
        %3451 = vmatprep.subr.mxu0 0.0
        %3452 = vmatpush1.msra.mxu0 0.0
        %3453 = vmatprep.subr.mxu0 0.0
        %3454 = vmatpush1.msra.mxu0 0.0
        %3455 = vmatprep.subr.mxu0 0.0
        %3456 = vmatpush1.msra.mxu0 0.0
        %3457 = vmatprep.subr.mxu0 0.0
        %3458 = vmatpush1.msra.mxu0 0.0
        %3459 = vmatprep.subr.mxu0 0.0
        %3460 = vmatpush1.msra.mxu0 0.0
        %3461 = vmatprep.subr.mxu0 0.0
        %3462 = vmatpush1.msra.mxu0 0.0
        %3463 = vmatprep.subr.mxu0 %v1281
        %3464 = vmatpush1.msra.mxu0 %v1280
        %3465 = vmatprep.subr.mxu0 %v1279
        %3466 = vmatpush1.msra.mxu0 %v1278
        %3467 = vmatprep.subr.mxu0 %v1277
        %3468 = vmatpush1.msra.mxu0 %v1276
        %3469 = vmatprep.subr.mxu0 %v1275
        %3470 = vmatpush1.msra.mxu0 %v1274
        %3471 = vmatprep.subr.mxu0 %v1273
        %3472 = vmatpush1.msra.mxu0 %v1272
        %3473 = vmatprep.subr.mxu0 %v1271
        %3474 = vmatpush1.msra.mxu0 %v1270
        %3475 = vmatprep.subr.mxu0 %v1269
        %3476 = vmatpush1.msra.mxu0 %v1268
        %3477 = vmatprep.subr.mxu0 %v1267
        %3478 = vmatpush1.msra.mxu0 %v1266
        %3479 = vmatprep.subr.mxu0 0.0
        %3480 = vmatpush2.msra.mxu0 0.0
        %3481 = vmatprep.subr.mxu0 0.0
        %3482 = vmatpush2.msra.mxu0 0.0
        %3483 = vmatprep.subr.mxu0 0.0
        %3484 = vmatpush2.msra.mxu0 0.0
        %3485 = vmatprep.subr.mxu0 0.0
        %3486 = vmatpush2.msra.mxu0 0.0
        %3487 = vmatprep.subr.mxu0 0.0
        %3488 = vmatpush2.msra.mxu0 0.0
        %3489 = vmatprep.subr.mxu0 0.0
        %3490 = vmatpush2.msra.mxu0 0.0
        %3491 = vmatprep.subr.mxu0 0.0
        %3492 = vmatpush2.msra.mxu0 0.0
        %3493 = vmatprep.subr.mxu0 0.0
        %3494 = vmatpush2.msra.mxu0 0.0
        %3495 = vmatprep.subr.mxu0 0.0
        %3496 = vmatpush2.msra.mxu0 0.0
        %3497 = vmatprep.subr.mxu0 0.0
        %3498 = vmatpush2.msra.mxu0 0.0
        %3499 = vmatprep.subr.mxu0 0.0
        %3500 = vmatpush2.msra.mxu0 0.0
        %3501 = vmatprep.subr.mxu0 0.0
        %3502 = vmatpush2.msra.mxu0 0.0
        %3503 = vmatprep.subr.mxu0 0.0
        %3504 = vmatpush2.msra.mxu0 0.0
        %3505 = vmatprep.subr.mxu0 0.0
        %3506 = vmatpush2.msra.mxu0 0.0
        %3507 = vmatprep.subr.mxu0 0.0
        %3508 = vmatpush2.msra.mxu0 0.0
        %3509 = vmatprep.subr.mxu0 0.0
        %3510 = vmatpush2.msra.mxu0 0.0
        %3511 = vmatprep.mubr.f32.mxu0 0.0
        %3512 = vmatmul.mubr.f32.gmra.mxu0 %v3445
        %v3513 = vpop.f32.mrf.mxu0
        %v3514 = vadd.f32 %v3437, %v3513
        %v3515 = vpop.f32.mrf.mxu0
        %v3516 = vadd.f32 %v3441, %v3515
        %3517 = vdwg.mxu0
        %v3518 = vmul.f32 %v3514, 0.25
        %v3519 = vld [vmem:[%s55] sm:$0xf]
        %3521 = vrot.lane.b32.xlu0 %v3514, 64
        %v3522 = vpop.permute.xlu0 %3521
        %v3524 = vsel %vm1690, %v3518, 0
        %v3526 = vsel %vm1690, %v3522, 0
        %3528 = vmatprep.subr.mxu0 0.0
        %3529 = vmatpush1.xpose.msra.mxu0 0.0
        %3530 = vmatprep.subr.mxu0 0.0
        %3531 = vmatpush1.xpose.msra.mxu0 0.0
        %3532 = vmatprep.subr.mxu0 0.0
        %3533 = vmatpush1.xpose.msra.mxu0 0.0
        %3534 = vmatprep.subr.mxu0 0.0
        %3535 = vmatpush1.xpose.msra.mxu0 0.0
        %3536 = vmatprep.subr.mxu0 0.0
        %3537 = vmatpush1.xpose.msra.mxu0 0.0
        %3538 = vmatprep.subr.mxu0 0.0
        %3539 = vmatpush1.xpose.msra.mxu0 0.0
        %3540 = vmatprep.subr.mxu0 0.0
        %3541 = vmatpush1.xpose.msra.mxu0 0.0
        %3542 = vmatprep.subr.mxu0 0.0
        %3543 = vmatpush1.xpose.msra.mxu0 0.0
        %3544 = vmatprep.subr.mxu0 0.0
        %3545 = vmatpush1.xpose.msra.mxu0 0.0
        %3546 = vmatprep.subr.mxu0 0.0
        %3547 = vmatpush1.xpose.msra.mxu0 0.0
        %3548 = vmatprep.subr.mxu0 0.0
        %3549 = vmatpush1.xpose.msra.mxu0 0.0
        %3550 = vmatprep.subr.mxu0 0.0
        %3551 = vmatpush1.xpose.msra.mxu0 0.0
        %3552 = vmatprep.subr.mxu0 0.0
        %3553 = vmatpush1.xpose.msra.mxu0 0.0
        %3554 = vmatprep.subr.mxu0 0.0
        %3555 = vmatpush1.xpose.msra.mxu0 0.0
        %3556 = vmatprep.subr.mxu0 0.0
        %3557 = vmatpush1.xpose.msra.mxu0 0.0
        %3558 = vmatprep.subr.mxu0 0.0
        %3559 = vmatpush1.xpose.msra.mxu0 %v3526
        %3560 = vmatprep.subr.mxu0 0.0
        %3561 = vmatpush2.xpose.msra.mxu0 0.0
        %3562 = vmatprep.subr.mxu0 0.0
        %3563 = vmatpush2.xpose.msra.mxu0 0.0
        %3564 = vmatprep.subr.mxu0 0.0
        %3565 = vmatpush2.xpose.msra.mxu0 0.0
        %3566 = vmatprep.subr.mxu0 0.0
        %3567 = vmatpush2.xpose.msra.mxu0 0.0
        %3568 = vmatprep.subr.mxu0 0.0
        %3569 = vmatpush2.xpose.msra.mxu0 0.0
        %3570 = vmatprep.subr.mxu0 0.0
        %3571 = vmatpush2.xpose.msra.mxu0 0.0
        %3572 = vmatprep.subr.mxu0 0.0
        %3573 = vmatpush2.xpose.msra.mxu0 0.0
        %3574 = vmatprep.subr.mxu0 0.0
        %3575 = vmatpush2.xpose.msra.mxu0 0.0
        %3576 = vmatprep.subr.mxu0 0.0
        %3577 = vmatpush2.xpose.msra.mxu0 0.0
        %3578 = vmatprep.subr.mxu0 0.0
        %3579 = vmatpush2.xpose.msra.mxu0 0.0
        %3580 = vmatprep.subr.mxu0 0.0
        %3581 = vmatpush2.xpose.msra.mxu0 0.0
        %3582 = vmatprep.subr.mxu0 0.0
        %3583 = vmatpush2.xpose.msra.mxu0 0.0
        %3584 = vmatprep.subr.mxu0 0.0
        %3585 = vmatpush2.xpose.msra.mxu0 0.0
        %3586 = vmatprep.subr.mxu0 0.0
        %3587 = vmatpush2.xpose.msra.mxu0 0.0
        %3588 = vmatprep.subr.mxu0 0.0
        %3589 = vmatpush2.xpose.msra.mxu0 0.0
        %3590 = vmatprep.subr.mxu0 0.0
        %3591 = vmatpush2.xpose.msra.mxu0 0.0
        %3592 = vmatprep.mubr.f32.mxu0 0.0
        %3593 = vmatmul.mubr.f32.gmra.mxu0 %v3524
        %v3594 = vpop.f32.mrf.mxu0
        %v3595 = vadd.f32 %v3519, %v3594
        %v3596 = vpop.f32.mrf.mxu0
        %3597 = vdwg.mxu0
        %vm3598 = vcmask 27648
        %v3599 = vsel %vm3598, %v3595, -inf
        %3600 = vmax.xlane.f32.xlu0 %v3599
        %v3601 = vpop.xlane.xlu0 %3600
        %v3602 = vsub.f32 %v3595, %v3601
        %v3603 = vmul.f32 %v3602, 1.442695
        %v3604 = vpow.pop %v3603
        %v3605 = vsel %vm3598, %v3604, 0.0
        %3606 = vadd.xlane.f32.xlu0 %v3605
        %v3607 = vpop.xlane.xlu0 %3606
        %v3608 = vrcp.pop %v3607
        %v3609 = vmul.f32 %v3604, %v3608
        %vm3610 = vcmask 31744
        %v3612 = vsel %vm3610, %v3609, 0
        %v3615 = vsel %vm3299, %v3516, 0
        %3617 = vmatprep.subr.mxu0 0.0
        %3618 = vmatpush1.msra.mxu0 0.0
        %3619 = vmatprep.subr.mxu0 0.0
        %3620 = vmatpush1.msra.mxu0 0.0
        %3621 = vmatprep.subr.mxu0 0.0
        %3622 = vmatpush1.msra.mxu0 0.0
        %3623 = vmatprep.subr.mxu0 0.0
        %3624 = vmatpush1.msra.mxu0 0.0
        %3625 = vmatprep.subr.mxu0 0.0
        %3626 = vmatpush1.msra.mxu0 0.0
        %3627 = vmatprep.subr.mxu0 0.0
        %3628 = vmatpush1.msra.mxu0 0.0
        %3629 = vmatprep.subr.mxu0 0.0
        %3630 = vmatpush1.msra.mxu0 0.0
        %3631 = vmatprep.subr.mxu0 0.0
        %3632 = vmatpush1.msra.mxu0 0.0
        %3633 = vmatprep.subr.mxu0 0.0
        %3634 = vmatpush1.msra.mxu0 0.0
        %3635 = vmatprep.subr.mxu0 0.0
        %3636 = vmatpush1.msra.mxu0 0.0
        %3637 = vmatprep.subr.mxu0 0.0
        %3638 = vmatpush1.msra.mxu0 0.0
        %3639 = vmatprep.subr.mxu0 0.0
        %3640 = vmatpush1.msra.mxu0 0.0
        %3641 = vmatprep.subr.mxu0 0.0
        %3642 = vmatpush1.msra.mxu0 0.0
        %3643 = vmatprep.subr.mxu0 0.0
        %3644 = vmatpush1.msra.mxu0 0.0
        %3645 = vmatprep.subr.mxu0 0.0
        %3646 = vmatpush1.msra.mxu0 0.0
        %3647 = vmatprep.subr.mxu0 0.0
        %3648 = vmatpush1.msra.mxu0 %v3615
        %3649 = vmatprep.subr.mxu0 0.0
        %3650 = vmatpush2.msra.mxu0 0.0
        %3651 = vmatprep.subr.mxu0 0.0
        %3652 = vmatpush2.msra.mxu0 0.0
        %3653 = vmatprep.subr.mxu0 0.0
        %3654 = vmatpush2.msra.mxu0 0.0
        %3655 = vmatprep.subr.mxu0 0.0
        %3656 = vmatpush2.msra.mxu0 0.0
        %3657 = vmatprep.subr.mxu0 0.0
        %3658 = vmatpush2.msra.mxu0 0.0
        %3659 = vmatprep.subr.mxu0 0.0
        %3660 = vmatpush2.msra.mxu0 0.0
        %3661 = vmatprep.subr.mxu0 0.0
        %3662 = vmatpush2.msra.mxu0 0.0
        %3663 = vmatprep.subr.mxu0 0.0
        %3664 = vmatpush2.msra.mxu0 0.0
        %3665 = vmatprep.subr.mxu0 0.0
        %3666 = vmatpush2.msra.mxu0 0.0
        %3667 = vmatprep.subr.mxu0 0.0
        %3668 = vmatpush2.msra.mxu0 0.0
        %3669 = vmatprep.subr.mxu0 0.0
        %3670 = vmatpush2.msra.mxu0 0.0
        %3671 = vmatprep.subr.mxu0 0.0
        %3672 = vmatpush2.msra.mxu0 0.0
        %3673 = vmatprep.subr.mxu0 0.0
        %3674 = vmatpush2.msra.mxu0 0.0
        %3675 = vmatprep.subr.mxu0 0.0
        %3676 = vmatpush2.msra.mxu0 0.0
        %3677 = vmatprep.subr.mxu0 0.0
        %3678 = vmatpush2.msra.mxu0 0.0
        %3679 = vmatprep.subr.mxu0 0.0
        %3680 = vmatpush2.msra.mxu0 0.0
        %3681 = vmatprep.mubr.f32.mxu0 0.0
        %3682 = vmatmul.mubr.f32.gmra.mxu0 %v3612
        %v3683 = vpop.f32.mrf.mxu0
        %v3684 = vadd.f32 0.0, %v3683
        %v3685 = vpop.f32.mrf.mxu0
        %3686 = vdwg.mxu0
        %s3687 = scalar_lea.vmem %s55, 4
        %v3688 = vld [vmem:[%s3687] sm:$0xf]
        %3689 = vrot.lane.b32.xlu0 %v3518, 112
        %v3690 = vpop.permute.xlu0 %3689
        %3691 = vrot.lane.b32.xlu0 %v3514, 48
        %v3692 = vpop.permute.xlu0 %3691
        %v3693 = vsel %vm1690, %v3690, 0
        %v3695 = vsel %vm1690, %v3692, 0
        %3697 = vmatprep.subr.mxu0 0.0
        %3698 = vmatpush1.xpose.msra.mxu0 0.0
        %3699 = vmatprep.subr.mxu0 0.0
        %3700 = vmatpush1.xpose.msra.mxu0 0.0
        %3701 = vmatprep.subr.mxu0 0.0
        %3702 = vmatpush1.xpose.msra.mxu0 0.0
        %3703 = vmatprep.subr.mxu0 0.0
        %3704 = vmatpush1.xpose.msra.mxu0 0.0
        %3705 = vmatprep.subr.mxu0 0.0
        %3706 = vmatpush1.xpose.msra.mxu0 0.0
        %3707 = vmatprep.subr.mxu0 0.0
        %3708 = vmatpush1.xpose.msra.mxu0 0.0
        %3709 = vmatprep.subr.mxu0 0.0
        %3710 = vmatpush1.xpose.msra.mxu0 0.0
        %3711 = vmatprep.subr.mxu0 0.0
        %3712 = vmatpush1.xpose.msra.mxu0 0.0
        %3713 = vmatprep.subr.mxu0 0.0
        %3714 = vmatpush1.xpose.msra.mxu0 0.0
        %3715 = vmatprep.subr.mxu0 0.0
        %3716 = vmatpush1.xpose.msra.mxu0 0.0
        %3717 = vmatprep.subr.mxu0 0.0
        %3718 = vmatpush1.xpose.msra.mxu0 0.0
        %3719 = vmatprep.subr.mxu0 0.0
        %3720 = vmatpush1.xpose.msra.mxu0 0.0
        %3721 = vmatprep.subr.mxu0 0.0
        %3722 = vmatpush1.xpose.msra.mxu0 0.0
        %3723 = vmatprep.subr.mxu0 0.0
        %3724 = vmatpush1.xpose.msra.mxu0 0.0
        %3725 = vmatprep.subr.mxu0 0.0
        %3726 = vmatpush1.xpose.msra.mxu0 0.0
        %3727 = vmatprep.subr.mxu0 0.0
        %3728 = vmatpush1.xpose.msra.mxu0 %v3695
        %3729 = vmatprep.subr.mxu0 0.0
        %3730 = vmatpush2.xpose.msra.mxu0 0.0
        %3731 = vmatprep.subr.mxu0 0.0
        %3732 = vmatpush2.xpose.msra.mxu0 0.0
        %3733 = vmatprep.subr.mxu0 0.0
        %3734 = vmatpush2.xpose.msra.mxu0 0.0
        %3735 = vmatprep.subr.mxu0 0.0
        %3736 = vmatpush2.xpose.msra.mxu0 0.0
        %3737 = vmatprep.subr.mxu0 0.0
        %3738 = vmatpush2.xpose.msra.mxu0 0.0
        %3739 = vmatprep.subr.mxu0 0.0
        %3740 = vmatpush2.xpose.msra.mxu0 0.0
        %3741 = vmatprep.subr.mxu0 0.0
        %3742 = vmatpush2.xpose.msra.mxu0 0.0
        %3743 = vmatprep.subr.mxu0 0.0
        %3744 = vmatpush2.xpose.msra.mxu0 0.0
        %3745 = vmatprep.subr.mxu0 0.0
        %3746 = vmatpush2.xpose.msra.mxu0 0.0
        %3747 = vmatprep.subr.mxu0 0.0
        %3748 = vmatpush2.xpose.msra.mxu0 0.0
        %3749 = vmatprep.subr.mxu0 0.0
        %3750 = vmatpush2.xpose.msra.mxu0 0.0
        %3751 = vmatprep.subr.mxu0 0.0
        %3752 = vmatpush2.xpose.msra.mxu0 0.0
        %3753 = vmatprep.subr.mxu0 0.0
        %3754 = vmatpush2.xpose.msra.mxu0 0.0
        %3755 = vmatprep.subr.mxu0 0.0
        %3756 = vmatpush2.xpose.msra.mxu0 0.0
        %3757 = vmatprep.subr.mxu0 0.0
        %3758 = vmatpush2.xpose.msra.mxu0 0.0
        %3759 = vmatprep.subr.mxu0 0.0
        %3760 = vmatpush2.xpose.msra.mxu0 0.0
        %3761 = vmatprep.mubr.f32.mxu0 0.0
        %3762 = vmatmul.mubr.f32.gmra.mxu0 %v3693
        %v3763 = vpop.f32.mrf.mxu0
        %v3764 = vadd.f32 %v3688, %v3763
        %v3765 = vpop.f32.mrf.mxu0
        %3766 = vdwg.mxu0
        %v3767 = vsel %vm3598, %v3764, -inf
        %3768 = vmax.xlane.f32.xlu0 %v3767
        %v3769 = vpop.xlane.xlu0 %3768
        %v3770 = vsub.f32 %v3764, %v3769
        %v3771 = vmul.f32 %v3770, 1.442695
        %v3772 = vpow.pop %v3771
        %v3773 = vsel %vm3598, %v3772, 0.0
        %3774 = vadd.xlane.f32.xlu0 %v3773
        %v3775 = vpop.xlane.xlu0 %3774
        %v3776 = vrcp.pop %v3775
        %v3777 = vmul.f32 %v3772, %v3776
        %3778 = vrot.lane.b32.xlu0 %v3516, 112
        %v3779 = vpop.permute.xlu0 %3778
        %v3781 = vsel %vm3610, %v3777, 0
        %v3783 = vsel %vm3299, %v3779, 0
        %3785 = vmatprep.subr.mxu0 0.0
        %3786 = vmatpush1.msra.mxu0 0.0
        %3787 = vmatprep.subr.mxu0 0.0
        %3788 = vmatpush1.msra.mxu0 0.0
        %3789 = vmatprep.subr.mxu0 0.0
        %3790 = vmatpush1.msra.mxu0 0.0
        %3791 = vmatprep.subr.mxu0 0.0
        %3792 = vmatpush1.msra.mxu0 0.0
        %3793 = vmatprep.subr.mxu0 0.0
        %3794 = vmatpush1.msra.mxu0 0.0
        %3795 = vmatprep.subr.mxu0 0.0
        %3796 = vmatpush1.msra.mxu0 0.0
        %3797 = vmatprep.subr.mxu0 0.0
        %3798 = vmatpush1.msra.mxu0 0.0
        %3799 = vmatprep.subr.mxu0 0.0
        %3800 = vmatpush1.msra.mxu0 0.0
        %3801 = vmatprep.subr.mxu0 0.0
        %3802 = vmatpush1.msra.mxu0 0.0
        %3803 = vmatprep.subr.mxu0 0.0
        %3804 = vmatpush1.msra.mxu0 0.0
        %3805 = vmatprep.subr.mxu0 0.0
        %3806 = vmatpush1.msra.mxu0 0.0
        %3807 = vmatprep.subr.mxu0 0.0
        %3808 = vmatpush1.msra.mxu0 0.0
        %3809 = vmatprep.subr.mxu0 0.0
        %3810 = vmatpush1.msra.mxu0 0.0
        %3811 = vmatprep.subr.mxu0 0.0
        %3812 = vmatpush1.msra.mxu0 0.0
        %3813 = vmatprep.subr.mxu0 0.0
        %3814 = vmatpush1.msra.mxu0 0.0
        %3815 = vmatprep.subr.mxu0 0.0
        %3816 = vmatpush1.msra.mxu0 %v3783
        %3817 = vmatprep.subr.mxu0 0.0
        %3818 = vmatpush2.msra.mxu0 0.0
        %3819 = vmatprep.subr.mxu0 0.0
        %3820 = vmatpush2.msra.mxu0 0.0
        %3821 = vmatprep.subr.mxu0 0.0
        %3822 = vmatpush2.msra.mxu0 0.0
        %3823 = vmatprep.subr.mxu0 0.0
        %3824 = vmatpush2.msra.mxu0 0.0
        %3825 = vmatprep.subr.mxu0 0.0
        %3826 = vmatpush2.msra.mxu0 0.0
        %3827 = vmatprep.subr.mxu0 0.0
        %3828 = vmatpush2.msra.mxu0 0.0
        %3829 = vmatprep.subr.mxu0 0.0
        %3830 = vmatpush2.msra.mxu0 0.0
        %3831 = vmatprep.subr.mxu0 0.0
        %3832 = vmatpush2.msra.mxu0 0.0
        %3833 = vmatprep.subr.mxu0 0.0
        %3834 = vmatpush2.msra.mxu0 0.0
        %3835 = vmatprep.subr.mxu0 0.0
        %3836 = vmatpush2.msra.mxu0 0.0
        %3837 = vmatprep.subr.mxu0 0.0
        %3838 = vmatpush2.msra.mxu0 0.0
        %3839 = vmatprep.subr.mxu0 0.0
        %3840 = vmatpush2.msra.mxu0 0.0
        %3841 = vmatprep.subr.mxu0 0.0
        %3842 = vmatpush2.msra.mxu0 0.0
        %3843 = vmatprep.subr.mxu0 0.0
        %3844 = vmatpush2.msra.mxu0 0.0
        %3845 = vmatprep.subr.mxu0 0.0
        %3846 = vmatpush2.msra.mxu0 0.0
        %3847 = vmatprep.subr.mxu0 0.0
        %3848 = vmatpush2.msra.mxu0 0.0
        %3849 = vmatprep.mubr.f32.mxu0 0.0
        %3850 = vmatmul.mubr.f32.gmra.mxu0 %v3781
        %v3851 = vpop.f32.mrf.mxu0
        %v3852 = vadd.f32 0.0, %v3851
        %v3853 = vpop.f32.mrf.mxu0
        %3854 = vdwg.mxu0
        %v3856 = vsel %vm1690, %v3852, 0
        %3858 = vmatprep.subr.mxu0 0.0
        %3859 = vmatpush1.msra.mxu0 0.0
        %3860 = vmatprep.subr.mxu0 0.0
        %3861 = vmatpush1.msra.mxu0 0.0
        %3862 = vmatprep.subr.mxu0 0.0
        %3863 = vmatpush1.msra.mxu0 0.0
        %3864 = vmatprep.subr.mxu0 0.0
        %3865 = vmatpush1.msra.mxu0 0.0
        %3866 = vmatprep.subr.mxu0 0.0
        %3867 = vmatpush1.msra.mxu0 0.0
        %3868 = vmatprep.subr.mxu0 0.0
        %3869 = vmatpush1.msra.mxu0 0.0
        %3870 = vmatprep.subr.mxu0 0.0
        %3871 = vmatpush1.msra.mxu0 0.0
        %3872 = vmatprep.subr.mxu0 0.0
        %3873 = vmatpush1.msra.mxu0 0.0
        %3874 = vmatprep.subr.mxu0 0.0
        %3875 = vmatpush1.msra.mxu0 0.0
        %3876 = vmatprep.subr.mxu0 0.0
        %3877 = vmatpush1.msra.mxu0 0.0
        %3878 = vmatprep.subr.mxu0 0.0
        %3879 = vmatpush1.msra.mxu0 0.0
        %3880 = vmatprep.subr.mxu0 0.0
        %3881 = vmatpush1.msra.mxu0 0.0
        %3882 = vmatprep.subr.mxu0 0.0
        %3883 = vmatpush1.msra.mxu0 0.0
        %3884 = vmatprep.subr.mxu0 0.0
        %3885 = vmatpush1.msra.mxu0 0.0
        %3886 = vmatprep.subr.mxu0 0.0
        %3887 = vmatpush1.msra.mxu0 %v1286
        %3888 = vmatprep.subr.mxu0 0.0
        %3889 = vmatpush1.msra.mxu0 %v1285
        %3890 = vmatprep.subr.mxu0 0.0
        %3891 = vmatpush2.msra.mxu0 0.0
        %3892 = vmatprep.subr.mxu0 0.0
        %3893 = vmatpush2.msra.mxu0 0.0
        %3894 = vmatprep.subr.mxu0 0.0
        %3895 = vmatpush2.msra.mxu0 0.0
        %3896 = vmatprep.subr.mxu0 0.0
        %3897 = vmatpush2.msra.mxu0 0.0
        %3898 = vmatprep.subr.mxu0 0.0
        %3899 = vmatpush2.msra.mxu0 0.0
        %3900 = vmatprep.subr.mxu0 0.0
        %3901 = vmatpush2.msra.mxu0 0.0
        %3902 = vmatprep.subr.mxu0 0.0
        %3903 = vmatpush2.msra.mxu0 0.0
        %3904 = vmatprep.subr.mxu0 0.0
        %3905 = vmatpush2.msra.mxu0 0.0
        %3906 = vmatprep.subr.mxu0 0.0
        %3907 = vmatpush2.msra.mxu0 0.0
        %3908 = vmatprep.subr.mxu0 0.0
        %3909 = vmatpush2.msra.mxu0 0.0
        %3910 = vmatprep.subr.mxu0 0.0
        %3911 = vmatpush2.msra.mxu0 0.0
        %3912 = vmatprep.subr.mxu0 0.0
        %3913 = vmatpush2.msra.mxu0 0.0
        %3914 = vmatprep.subr.mxu0 0.0
        %3915 = vmatpush2.msra.mxu0 0.0
        %3916 = vmatprep.subr.mxu0 0.0
        %3917 = vmatpush2.msra.mxu0 0.0
        %3918 = vmatprep.subr.mxu0 0.0
        %3919 = vmatpush2.msra.mxu0 0.0
        %3920 = vmatprep.subr.mxu0 0.0
        %3921 = vmatpush2.msra.mxu0 0.0
        %3922 = vmatprep.mubr.f32.mxu0 0.0
        %3923 = vmatmul.mubr.f32.gmra.mxu0 %v3856
        %v3924 = vpop.f32.mrf.mxu0
        %v3925 = vadd.f32 0.0, %v3924
        %v3926 = vpop.f32.mrf.mxu0
        %3927 = vdwg.mxu0
        %v3929 = vsel %vm1690, %v3684, 0
        %3931 = vmatprep.subr.mxu0 0.0
        %3932 = vmatpush1.msra.mxu0 0.0
        %3933 = vmatprep.subr.mxu0 0.0
        %3934 = vmatpush1.msra.mxu0 0.0
        %3935 = vmatprep.subr.mxu0 0.0
        %3936 = vmatpush1.msra.mxu0 0.0
        %3937 = vmatprep.subr.mxu0 0.0
        %3938 = vmatpush1.msra.mxu0 0.0
        %3939 = vmatprep.subr.mxu0 0.0
        %3940 = vmatpush1.msra.mxu0 0.0
        %3941 = vmatprep.subr.mxu0 0.0
        %3942 = vmatpush1.msra.mxu0 0.0
        %3943 = vmatprep.subr.mxu0 0.0
        %3944 = vmatpush1.msra.mxu0 0.0
        %3945 = vmatprep.subr.mxu0 0.0
        %3946 = vmatpush1.msra.mxu0 0.0
        %3947 = vmatprep.subr.mxu0 0.0
        %3948 = vmatpush1.msra.mxu0 0.0
        %3949 = vmatprep.subr.mxu0 0.0
        %3950 = vmatpush1.msra.mxu0 0.0
        %3951 = vmatprep.subr.mxu0 0.0
        %3952 = vmatpush1.msra.mxu0 0.0
        %3953 = vmatprep.subr.mxu0 0.0
        %3954 = vmatpush1.msra.mxu0 0.0
        %3955 = vmatprep.subr.mxu0 0.0
        %3956 = vmatpush1.msra.mxu0 0.0
        %3957 = vmatprep.subr.mxu0 0.0
        %3958 = vmatpush1.msra.mxu0 0.0
        %3959 = vmatprep.subr.mxu0 0.0
        %3960 = vmatpush1.msra.mxu0 %v1284
        %3961 = vmatprep.subr.mxu0 0.0
        %3962 = vmatpush1.msra.mxu0 %v1283
        %3963 = vmatprep.subr.mxu0 0.0
        %3964 = vmatpush2.msra.mxu0 0.0
        %3965 = vmatprep.subr.mxu0 0.0
        %3966 = vmatpush2.msra.mxu0 0.0
        %3967 = vmatprep.subr.mxu0 0.0
        %3968 = vmatpush2.msra.mxu0 0.0
        %3969 = vmatprep.subr.mxu0 0.0
        %3970 = vmatpush2.msra.mxu0 0.0
        %3971 = vmatprep.subr.mxu0 0.0
        %3972 = vmatpush2.msra.mxu0 0.0
        %3973 = vmatprep.subr.mxu0 0.0
        %3974 = vmatpush2.msra.mxu0 0.0
        %3975 = vmatprep.subr.mxu0 0.0
        %3976 = vmatpush2.msra.mxu0 0.0
        %3977 = vmatprep.subr.mxu0 0.0
        %3978 = vmatpush2.msra.mxu0 0.0
        %3979 = vmatprep.subr.mxu0 0.0
        %3980 = vmatpush2.msra.mxu0 0.0
        %3981 = vmatprep.subr.mxu0 0.0
        %3982 = vmatpush2.msra.mxu0 0.0
        %3983 = vmatprep.subr.mxu0 0.0
        %3984 = vmatpush2.msra.mxu0 0.0
        %3985 = vmatprep.subr.mxu0 0.0
        %3986 = vmatpush2.msra.mxu0 0.0
        %3987 = vmatprep.subr.mxu0 0.0
        %3988 = vmatpush2.msra.mxu0 0.0
        %3989 = vmatprep.subr.mxu0 0.0
        %3990 = vmatpush2.msra.mxu0 0.0
        %3991 = vmatprep.subr.mxu0 0.0
        %3992 = vmatpush2.msra.mxu0 0.0
        %3993 = vmatprep.subr.mxu0 0.0
        %3994 = vmatpush2.msra.mxu0 0.0
        %3995 = vmatprep.mubr.f32.mxu0 0.0
        %3996 = vmatmul.mubr.f32.gmra.mxu0 %v3929
        %v3997 = vpop.f32.mrf.mxu0
        %v3998 = vadd.f32 %v3925, %v3997
        %v3999 = vpop.f32.mrf.mxu0
        %4000 = vdwg.mxu0
        %s4001 = scalar_lea.vmem %s55, 8
        %v4002 = vld [vmem:[%s4001] sm:$0xf]
        %4003 = vrot.lane.b32.xlu0 %v3518, 96
        %v4004 = vpop.permute.xlu0 %4003
        %4005 = vrot.lane.b32.xlu0 %v3514, 32
        %v4006 = vpop.permute.xlu0 %4005
        %v4007 = vsel %vm1690, %v4004, 0
        %v4009 = vsel %vm1690, %v4006, 0
        %4011 = vmatprep.subr.mxu0 0.0
        %4012 = vmatpush1.xpose.msra.mxu0 0.0
        %4013 = vmatprep.subr.mxu0 0.0
        %4014 = vmatpush1.xpose.msra.mxu0 0.0
        %4015 = vmatprep.subr.mxu0 0.0
        %4016 = vmatpush1.xpose.msra.mxu0 0.0
        %4017 = vmatprep.subr.mxu0 0.0
        %4018 = vmatpush1.xpose.msra.mxu0 0.0
        %4019 = vmatprep.subr.mxu0 0.0
        %4020 = vmatpush1.xpose.msra.mxu0 0.0
        %4021 = vmatprep.subr.mxu0 0.0
        %4022 = vmatpush1.xpose.msra.mxu0 0.0
        %4023 = vmatprep.subr.mxu0 0.0
        %4024 = vmatpush1.xpose.msra.mxu0 0.0
        %4025 = vmatprep.subr.mxu0 0.0
        %4026 = vmatpush1.xpose.msra.mxu0 0.0
        %4027 = vmatprep.subr.mxu0 0.0
        %4028 = vmatpush1.xpose.msra.mxu0 0.0
        %4029 = vmatprep.subr.mxu0 0.0
        %4030 = vmatpush1.xpose.msra.mxu0 0.0
        %4031 = vmatprep.subr.mxu0 0.0
        %4032 = vmatpush1.xpose.msra.mxu0 0.0
        %4033 = vmatprep.subr.mxu0 0.0
        %4034 = vmatpush1.xpose.msra.mxu0 0.0
        %4035 = vmatprep.subr.mxu0 0.0
        %4036 = vmatpush1.xpose.msra.mxu0 0.0
        %4037 = vmatprep.subr.mxu0 0.0
        %4038 = vmatpush1.xpose.msra.mxu0 0.0
        %4039 = vmatprep.subr.mxu0 0.0
        %4040 = vmatpush1.xpose.msra.mxu0 0.0
        %4041 = vmatprep.subr.mxu0 0.0
        %4042 = vmatpush1.xpose.msra.mxu0 %v4009
        %4043 = vmatprep.subr.mxu0 0.0
        %4044 = vmatpush2.xpose.msra.mxu0 0.0
        %4045 = vmatprep.subr.mxu0 0.0
        %4046 = vmatpush2.xpose.msra.mxu0 0.0
        %4047 = vmatprep.subr.mxu0 0.0
        %4048 = vmatpush2.xpose.msra.mxu0 0.0
        %4049 = vmatprep.subr.mxu0 0.0
        %4050 = vmatpush2.xpose.msra.mxu0 0.0
        %4051 = vmatprep.subr.mxu0 0.0
        %4052 = vmatpush2.xpose.msra.mxu0 0.0
        %4053 = vmatprep.subr.mxu0 0.0
        %4054 = vmatpush2.xpose.msra.mxu0 0.0
        %4055 = vmatprep.subr.mxu0 0.0
        %4056 = vmatpush2.xpose.msra.mxu0 0.0
        %4057 = vmatprep.subr.mxu0 0.0
        %4058 = vmatpush2.xpose.msra.mxu0 0.0
        %4059 = vmatprep.subr.mxu0 0.0
        %4060 = vmatpush2.xpose.msra.mxu0 0.0
        %4061 = vmatprep.subr.mxu0 0.0
        %4062 = vmatpush2.xpose.msra.mxu0 0.0
        %4063 = vmatprep.subr.mxu0 0.0
        %4064 = vmatpush2.xpose.msra.mxu0 0.0
        %4065 = vmatprep.subr.mxu0 0.0
        %4066 = vmatpush2.xpose.msra.mxu0 0.0
        %4067 = vmatprep.subr.mxu0 0.0
        %4068 = vmatpush2.xpose.msra.mxu0 0.0
        %4069 = vmatprep.subr.mxu0 0.0
        %4070 = vmatpush2.xpose.msra.mxu0 0.0
        %4071 = vmatprep.subr.mxu0 0.0
        %4072 = vmatpush2.xpose.msra.mxu0 0.0
        %4073 = vmatprep.subr.mxu0 0.0
        %4074 = vmatpush2.xpose.msra.mxu0 0.0
        %4075 = vmatprep.mubr.f32.mxu0 0.0
        %4076 = vmatmul.mubr.f32.gmra.mxu0 %v4007
        %v4077 = vpop.f32.mrf.mxu0
        %v4078 = vadd.f32 %v4002, %v4077
        %v4079 = vpop.f32.mrf.mxu0
        %4080 = vdwg.mxu0
        %v4081 = vsel %vm3598, %v4078, -inf
        %4082 = vmax.xlane.f32.xlu0 %v4081
        %v4083 = vpop.xlane.xlu0 %4082
        %v4084 = vsub.f32 %v4078, %v4083
        %v4085 = vmul.f32 %v4084, 1.442695
        %v4086 = vpow.pop %v4085
        %v4087 = vsel %vm3598, %v4086, 0.0
        %4088 = vadd.xlane.f32.xlu0 %v4087
        %v4089 = vpop.xlane.xlu0 %4088
        %v4090 = vrcp.pop %v4089
        %v4091 = vmul.f32 %v4086, %v4090
        %4092 = vrot.lane.b32.xlu0 %v3516, 96
        %v4093 = vpop.permute.xlu0 %4092
        %v4095 = vsel %vm3610, %v4091, 0
        %v4097 = vsel %vm3299, %v4093, 0
        %4099 = vmatprep.subr.mxu0 0.0
        %4100 = vmatpush1.msra.mxu0 0.0
        %4101 = vmatprep.subr.mxu0 0.0
        %4102 = vmatpush1.msra.mxu0 0.0
        %4103 = vmatprep.subr.mxu0 0.0
        %4104 = vmatpush1.msra.mxu0 0.0
        %4105 = vmatprep.subr.mxu0 0.0
        %4106 = vmatpush1.msra.mxu0 0.0
        %4107 = vmatprep.subr.mxu0 0.0
        %4108 = vmatpush1.msra.mxu0 0.0
        %4109 = vmatprep.subr.mxu0 0.0
        %4110 = vmatpush1.msra.mxu0 0.0
        %4111 = vmatprep.subr.mxu0 0.0
        %4112 = vmatpush1.msra.mxu0 0.0
        %4113 = vmatprep.subr.mxu0 0.0
        %4114 = vmatpush1.msra.mxu0 0.0
        %4115 = vmatprep.subr.mxu0 0.0
        %4116 = vmatpush1.msra.mxu0 0.0
        %4117 = vmatprep.subr.mxu0 0.0
        %4118 = vmatpush1.msra.mxu0 0.0
        %4119 = vmatprep.subr.mxu0 0.0
        %4120 = vmatpush1.msra.mxu0 0.0
        %4121 = vmatprep.subr.mxu0 0.0
        %4122 = vmatpush1.msra.mxu0 0.0
        %4123 = vmatprep.subr.mxu0 0.0
        %4124 = vmatpush1.msra.mxu0 0.0
        %4125 = vmatprep.subr.mxu0 0.0
        %4126 = vmatpush1.msra.mxu0 0.0
        %4127 = vmatprep.subr.mxu0 0.0
        %4128 = vmatpush1.msra.mxu0 0.0
        %4129 = vmatprep.subr.mxu0 0.0
        %4130 = vmatpush1.msra.mxu0 %v4097
        %4131 = vmatprep.subr.mxu0 0.0
        %4132 = vmatpush2.msra.mxu0 0.0
        %4133 = vmatprep.subr.mxu0 0.0
        %4134 = vmatpush2.msra.mxu0 0.0
        %4135 = vmatprep.subr.mxu0 0.0
        %4136 = vmatpush2.msra.mxu0 0.0
        %4137 = vmatprep.subr.mxu0 0.0
        %4138 = vmatpush2.msra.mxu0 0.0
        %4139 = vmatprep.subr.mxu0 0.0
        %4140 = vmatpush2.msra.mxu0 0.0
        %4141 = vmatprep.subr.mxu0 0.0
        %4142 = vmatpush2.msra.mxu0 0.0
        %4143 = vmatprep.subr.mxu0 0.0
        %4144 = vmatpush2.msra.mxu0 0.0
        %4145 = vmatprep.subr.mxu0 0.0
        %4146 = vmatpush2.msra.mxu0 0.0
        %4147 = vmatprep.subr.mxu0 0.0
        %4148 = vmatpush2.msra.mxu0 0.0
        %4149 = vmatprep.subr.mxu0 0.0
        %4150 = vmatpush2.msra.mxu0 0.0
        %4151 = vmatprep.subr.mxu0 0.0
        %4152 = vmatpush2.msra.mxu0 0.0
        %4153 = vmatprep.subr.mxu0 0.0
        %4154 = vmatpush2.msra.mxu0 0.0
        %4155 = vmatprep.subr.mxu0 0.0
        %4156 = vmatpush2.msra.mxu0 0.0
        %4157 = vmatprep.subr.mxu0 0.0
        %4158 = vmatpush2.msra.mxu0 0.0
        %4159 = vmatprep.subr.mxu0 0.0
        %4160 = vmatpush2.msra.mxu0 0.0
        %4161 = vmatprep.subr.mxu0 0.0
        %4162 = vmatpush2.msra.mxu0 0.0
        %4163 = vmatprep.mubr.f32.mxu0 0.0
        %4164 = vmatmul.mubr.f32.gmra.mxu0 %v4095
        %v4165 = vpop.f32.mrf.mxu0
        %v4166 = vadd.f32 0.0, %v4165
        %v4167 = vpop.f32.mrf.mxu0
        %4168 = vdwg.mxu0
        %v4170 = vsel %vm1690, %v4166, 0
        %4172 = vmatprep.subr.mxu0 0.0
        %4173 = vmatpush1.msra.mxu0 0.0
        %4174 = vmatprep.subr.mxu0 0.0
        %4175 = vmatpush1.msra.mxu0 0.0
        %4176 = vmatprep.subr.mxu0 0.0
        %4177 = vmatpush1.msra.mxu0 0.0
        %4178 = vmatprep.subr.mxu0 0.0
        %4179 = vmatpush1.msra.mxu0 0.0
        %4180 = vmatprep.subr.mxu0 0.0
        %4181 = vmatpush1.msra.mxu0 0.0
        %4182 = vmatprep.subr.mxu0 0.0
        %4183 = vmatpush1.msra.mxu0 0.0
        %4184 = vmatprep.subr.mxu0 0.0
        %4185 = vmatpush1.msra.mxu0 0.0
        %4186 = vmatprep.subr.mxu0 0.0
        %4187 = vmatpush1.msra.mxu0 0.0
        %4188 = vmatprep.subr.mxu0 0.0
        %4189 = vmatpush1.msra.mxu0 0.0
        %4190 = vmatprep.subr.mxu0 0.0
        %4191 = vmatpush1.msra.mxu0 0.0
        %4192 = vmatprep.subr.mxu0 0.0
        %4193 = vmatpush1.msra.mxu0 0.0
        %4194 = vmatprep.subr.mxu0 0.0
        %4195 = vmatpush1.msra.mxu0 0.0
        %4196 = vmatprep.subr.mxu0 0.0
        %4197 = vmatpush1.msra.mxu0 0.0
        %4198 = vmatprep.subr.mxu0 0.0
        %4199 = vmatpush1.msra.mxu0 0.0
        %4200 = vmatprep.subr.mxu0 0.0
        %4201 = vmatpush1.msra.mxu0 %v1288
        %4202 = vmatprep.subr.mxu0 0.0
        %4203 = vmatpush1.msra.mxu0 %v1287
        %4204 = vmatprep.subr.mxu0 0.0
        %4205 = vmatpush2.msra.mxu0 0.0
        %4206 = vmatprep.subr.mxu0 0.0
        %4207 = vmatpush2.msra.mxu0 0.0
        %4208 = vmatprep.subr.mxu0 0.0
        %4209 = vmatpush2.msra.mxu0 0.0
        %4210 = vmatprep.subr.mxu0 0.0
        %4211 = vmatpush2.msra.mxu0 0.0
        %4212 = vmatprep.subr.mxu0 0.0
        %4213 = vmatpush2.msra.mxu0 0.0
        %4214 = vmatprep.subr.mxu0 0.0
        %4215 = vmatpush2.msra.mxu0 0.0
        %4216 = vmatprep.subr.mxu0 0.0
        %4217 = vmatpush2.msra.mxu0 0.0
        %4218 = vmatprep.subr.mxu0 0.0
        %4219 = vmatpush2.msra.mxu0 0.0
        %4220 = vmatprep.subr.mxu0 0.0
        %4221 = vmatpush2.msra.mxu0 0.0
        %4222 = vmatprep.subr.mxu0 0.0
        %4223 = vmatpush2.msra.mxu0 0.0
        %4224 = vmatprep.subr.mxu0 0.0
        %4225 = vmatpush2.msra.mxu0 0.0
        %4226 = vmatprep.subr.mxu0 0.0
        %4227 = vmatpush2.msra.mxu0 0.0
        %4228 = vmatprep.subr.mxu0 0.0
        %4229 = vmatpush2.msra.mxu0 0.0
        %4230 = vmatprep.subr.mxu0 0.0
        %4231 = vmatpush2.msra.mxu0 0.0
        %4232 = vmatprep.subr.mxu0 0.0
        %4233 = vmatpush2.msra.mxu0 0.0
        %4234 = vmatprep.subr.mxu0 0.0
        %4235 = vmatpush2.msra.mxu0 0.0
        %4236 = vmatprep.mubr.f32.mxu0 0.0
        %4237 = vmatmul.mubr.f32.gmra.mxu0 %v4170
        %v4238 = vpop.f32.mrf.mxu0
        %v4239 = vadd.f32 0.0, %v4238
        %v4240 = vpop.f32.mrf.mxu0
        %4241 = vdwg.mxu0
        %v4242 = vadd.f32 %v3998, %v4239
        %s4243 = scalar_lea.vmem %s55, 12
        %v4244 = vld [vmem:[%s4243] sm:$0xf]
        %4245 = vrot.lane.b32.xlu0 %v3518, 80
        %v4246 = vpop.permute.xlu0 %4245
        %4247 = vrot.lane.b32.xlu0 %v3514, 16
        %v4248 = vpop.permute.xlu0 %4247
        %v4249 = vsel %vm1690, %v4246, 0
        %v4251 = vsel %vm1690, %v4248, 0
        %4253 = vmatprep.subr.mxu0 0.0
        %4254 = vmatpush1.xpose.msra.mxu0 0.0
        %4255 = vmatprep.subr.mxu0 0.0
        %4256 = vmatpush1.xpose.msra.mxu0 0.0
        %4257 = vmatprep.subr.mxu0 0.0
        %4258 = vmatpush1.xpose.msra.mxu0 0.0
        %4259 = vmatprep.subr.mxu0 0.0
        %4260 = vmatpush1.xpose.msra.mxu0 0.0
        %4261 = vmatprep.subr.mxu0 0.0
        %4262 = vmatpush1.xpose.msra.mxu0 0.0
        %4263 = vmatprep.subr.mxu0 0.0
        %4264 = vmatpush1.xpose.msra.mxu0 0.0
        %4265 = vmatprep.subr.mxu0 0.0
        %4266 = vmatpush1.xpose.msra.mxu0 0.0
        %4267 = vmatprep.subr.mxu0 0.0
        %4268 = vmatpush1.xpose.msra.mxu0 0.0
        %4269 = vmatprep.subr.mxu0 0.0
        %4270 = vmatpush1.xpose.msra.mxu0 0.0
        %4271 = vmatprep.subr.mxu0 0.0
        %4272 = vmatpush1.xpose.msra.mxu0 0.0
        %4273 = vmatprep.subr.mxu0 0.0
        %4274 = vmatpush1.xpose.msra.mxu0 0.0
        %4275 = vmatprep.subr.mxu0 0.0
        %4276 = vmatpush1.xpose.msra.mxu0 0.0
        %4277 = vmatprep.subr.mxu0 0.0
        %4278 = vmatpush1.xpose.msra.mxu0 0.0
        %4279 = vmatprep.subr.mxu0 0.0
        %4280 = vmatpush1.xpose.msra.mxu0 0.0
        %4281 = vmatprep.subr.mxu0 0.0
        %4282 = vmatpush1.xpose.msra.mxu0 0.0
        %4283 = vmatprep.subr.mxu0 0.0
        %4284 = vmatpush1.xpose.msra.mxu0 %v4251
        %4285 = vmatprep.subr.mxu0 0.0
        %4286 = vmatpush2.xpose.msra.mxu0 0.0
        %4287 = vmatprep.subr.mxu0 0.0
        %4288 = vmatpush2.xpose.msra.mxu0 0.0
        %4289 = vmatprep.subr.mxu0 0.0
        %4290 = vmatpush2.xpose.msra.mxu0 0.0
        %4291 = vmatprep.subr.mxu0 0.0
        %4292 = vmatpush2.xpose.msra.mxu0 0.0
        %4293 = vmatprep.subr.mxu0 0.0
        %4294 = vmatpush2.xpose.msra.mxu0 0.0
        %4295 = vmatprep.subr.mxu0 0.0
        %4296 = vmatpush2.xpose.msra.mxu0 0.0
        %4297 = vmatprep.subr.mxu0 0.0
        %4298 = vmatpush2.xpose.msra.mxu0 0.0
        %4299 = vmatprep.subr.mxu0 0.0
        %4300 = vmatpush2.xpose.msra.mxu0 0.0
        %4301 = vmatprep.subr.mxu0 0.0
        %4302 = vmatpush2.xpose.msra.mxu0 0.0
        %4303 = vmatprep.subr.mxu0 0.0
        %4304 = vmatpush2.xpose.msra.mxu0 0.0
        %4305 = vmatprep.subr.mxu0 0.0
        %4306 = vmatpush2.xpose.msra.mxu0 0.0
        %4307 = vmatprep.subr.mxu0 0.0
        %4308 = vmatpush2.xpose.msra.mxu0 0.0
        %4309 = vmatprep.subr.mxu0 0.0
        %4310 = vmatpush2.xpose.msra.mxu0 0.0
        %4311 = vmatprep.subr.mxu0 0.0
        %4312 = vmatpush2.xpose.msra.mxu0 0.0
        %4313 = vmatprep.subr.mxu0 0.0
        %4314 = vmatpush2.xpose.msra.mxu0 0.0
        %4315 = vmatprep.subr.mxu0 0.0
        %4316 = vmatpush2.xpose.msra.mxu0 0.0
        %4317 = vmatprep.mubr.f32.mxu0 0.0
        %4318 = vmatmul.mubr.f32.gmra.mxu0 %v4249
        %v4319 = vpop.f32.mrf.mxu0
        %v4320 = vadd.f32 %v4244, %v4319
        %v4321 = vpop.f32.mrf.mxu0
        %4322 = vdwg.mxu0
        %v4323 = vsel %vm3598, %v4320, -inf
        %4324 = vmax.xlane.f32.xlu0 %v4323
        %v4325 = vpop.xlane.xlu0 %4324
        %v4326 = vsub.f32 %v4320, %v4325
        %v4327 = vmul.f32 %v4326, 1.442695
        %v4328 = vpow.pop %v4327
        %v4329 = vsel %vm3598, %v4328, 0.0
        %4330 = vadd.xlane.f32.xlu0 %v4329
        %v4331 = vpop.xlane.xlu0 %4330
        %v4332 = vrcp.pop %v4331
        %v4333 = vmul.f32 %v4328, %v4332
        %4334 = vrot.lane.b32.xlu0 %v3516, 80
        %v4335 = vpop.permute.xlu0 %4334
        %v4337 = vsel %vm3610, %v4333, 0
        %v4339 = vsel %vm3299, %v4335, 0
        %4341 = vmatprep.subr.mxu0 0.0
        %4342 = vmatpush1.msra.mxu0 0.0
        %4343 = vmatprep.subr.mxu0 0.0
        %4344 = vmatpush1.msra.mxu0 0.0
        %4345 = vmatprep.subr.mxu0 0.0
        %4346 = vmatpush1.msra.mxu0 0.0
        %4347 = vmatprep.subr.mxu0 0.0
        %4348 = vmatpush1.msra.mxu0 0.0
        %4349 = vmatprep.subr.mxu0 0.0
        %4350 = vmatpush1.msra.mxu0 0.0
        %4351 = vmatprep.subr.mxu0 0.0
        %4352 = vmatpush1.msra.mxu0 0.0
        %4353 = vmatprep.subr.mxu0 0.0
        %4354 = vmatpush1.msra.mxu0 0.0
        %4355 = vmatprep.subr.mxu0 0.0
        %4356 = vmatpush1.msra.mxu0 0.0
        %4357 = vmatprep.subr.mxu0 0.0
        %4358 = vmatpush1.msra.mxu0 0.0
        %4359 = vmatprep.subr.mxu0 0.0
        %4360 = vmatpush1.msra.mxu0 0.0
        %4361 = vmatprep.subr.mxu0 0.0
        %4362 = vmatpush1.msra.mxu0 0.0
        %4363 = vmatprep.subr.mxu0 0.0
        %4364 = vmatpush1.msra.mxu0 0.0
        %4365 = vmatprep.subr.mxu0 0.0
        %4366 = vmatpush1.msra.mxu0 0.0
        %4367 = vmatprep.subr.mxu0 0.0
        %4368 = vmatpush1.msra.mxu0 0.0
        %4369 = vmatprep.subr.mxu0 0.0
        %4370 = vmatpush1.msra.mxu0 0.0
        %4371 = vmatprep.subr.mxu0 0.0
        %4372 = vmatpush1.msra.mxu0 %v4339
        %4373 = vmatprep.subr.mxu0 0.0
        %4374 = vmatpush2.msra.mxu0 0.0
        %4375 = vmatprep.subr.mxu0 0.0
        %4376 = vmatpush2.msra.mxu0 0.0
        %4377 = vmatprep.subr.mxu0 0.0
        %4378 = vmatpush2.msra.mxu0 0.0
        %4379 = vmatprep.subr.mxu0 0.0
        %4380 = vmatpush2.msra.mxu0 0.0
        %4381 = vmatprep.subr.mxu0 0.0
        %4382 = vmatpush2.msra.mxu0 0.0
        %4383 = vmatprep.subr.mxu0 0.0
        %4384 = vmatpush2.msra.mxu0 0.0
        %4385 = vmatprep.subr.mxu0 0.0
        %4386 = vmatpush2.msra.mxu0 0.0
        %4387 = vmatprep.subr.mxu0 0.0
        %4388 = vmatpush2.msra.mxu0 0.0
        %4389 = vmatprep.subr.mxu0 0.0
        %4390 = vmatpush2.msra.mxu0 0.0
        %4391 = vmatprep.subr.mxu0 0.0
        %4392 = vmatpush2.msra.mxu0 0.0
        %4393 = vmatprep.subr.mxu0 0.0
        %4394 = vmatpush2.msra.mxu0 0.0
        %4395 = vmatprep.subr.mxu0 0.0
        %4396 = vmatpush2.msra.mxu0 0.0
        %4397 = vmatprep.subr.mxu0 0.0
        %4398 = vmatpush2.msra.mxu0 0.0
        %4399 = vmatprep.subr.mxu0 0.0
        %4400 = vmatpush2.msra.mxu0 0.0
        %4401 = vmatprep.subr.mxu0 0.0
        %4402 = vmatpush2.msra.mxu0 0.0
        %4403 = vmatprep.subr.mxu0 0.0
        %4404 = vmatpush2.msra.mxu0 0.0
        %4405 = vmatprep.mubr.f32.mxu0 0.0
        %4406 = vmatmul.mubr.f32.gmra.mxu0 %v4337
        %v4407 = vpop.f32.mrf.mxu0
        %v4408 = vadd.f32 0.0, %v4407
        %v4409 = vpop.f32.mrf.mxu0
        %4410 = vdwg.mxu0
        %v4412 = vsel %vm1690, %v4408, 0
        %4414 = vmatprep.subr.mxu0 0.0
        %4415 = vmatpush1.msra.mxu0 0.0
        %4416 = vmatprep.subr.mxu0 0.0
        %4417 = vmatpush1.msra.mxu0 0.0
        %4418 = vmatprep.subr.mxu0 0.0
        %4419 = vmatpush1.msra.mxu0 0.0
        %4420 = vmatprep.subr.mxu0 0.0
        %4421 = vmatpush1.msra.mxu0 0.0
        %4422 = vmatprep.subr.mxu0 0.0
        %4423 = vmatpush1.msra.mxu0 0.0
        %4424 = vmatprep.subr.mxu0 0.0
        %4425 = vmatpush1.msra.mxu0 0.0
        %4426 = vmatprep.subr.mxu0 0.0
        %4427 = vmatpush1.msra.mxu0 0.0
        %4428 = vmatprep.subr.mxu0 0.0
        %4429 = vmatpush1.msra.mxu0 0.0
        %4430 = vmatprep.subr.mxu0 0.0
        %4431 = vmatpush1.msra.mxu0 0.0
        %4432 = vmatprep.subr.mxu0 0.0
        %4433 = vmatpush1.msra.mxu0 0.0
        %4434 = vmatprep.subr.mxu0 0.0
        %4435 = vmatpush1.msra.mxu0 0.0
        %4436 = vmatprep.subr.mxu0 0.0
        %4437 = vmatpush1.msra.mxu0 0.0
        %4438 = vmatprep.subr.mxu0 0.0
        %4439 = vmatpush1.msra.mxu0 0.0
        %4440 = vmatprep.subr.mxu0 0.0
        %4441 = vmatpush1.msra.mxu0 0.0
        %4442 = vmatprep.subr.mxu0 0.0
        %4443 = vmatpush1.msra.mxu0 %v1290
        %4444 = vmatprep.subr.mxu0 0.0
        %4445 = vmatpush1.msra.mxu0 %v1289
        %4446 = vmatprep.subr.mxu0 0.0
        %4447 = vmatpush2.msra.mxu0 0.0
        %4448 = vmatprep.subr.mxu0 0.0
        %4449 = vmatpush2.msra.mxu0 0.0
        %4450 = vmatprep.subr.mxu0 0.0
        %4451 = vmatpush2.msra.mxu0 0.0
        %4452 = vmatprep.subr.mxu0 0.0
        %4453 = vmatpush2.msra.mxu0 0.0
        %4454 = vmatprep.subr.mxu0 0.0
        %4455 = vmatpush2.msra.mxu0 0.0
        %4456 = vmatprep.subr.mxu0 0.0
        %4457 = vmatpush2.msra.mxu0 0.0
        %4458 = vmatprep.subr.mxu0 0.0
        %4459 = vmatpush2.msra.mxu0 0.0
        %4460 = vmatprep.subr.mxu0 0.0
        %4461 = vmatpush2.msra.mxu0 0.0
        %4462 = vmatprep.subr.mxu0 0.0
        %4463 = vmatpush2.msra.mxu0 0.0
        %4464 = vmatprep.subr.mxu0 0.0
        %4465 = vmatpush2.msra.mxu0 0.0
        %4466 = vmatprep.subr.mxu0 0.0
        %4467 = vmatpush2.msra.mxu0 0.0
        %4468 = vmatprep.subr.mxu0 0.0
        %4469 = vmatpush2.msra.mxu0 0.0
        %4470 = vmatprep.subr.mxu0 0.0
        %4471 = vmatpush2.msra.mxu0 0.0
        %4472 = vmatprep.subr.mxu0 0.0
        %4473 = vmatpush2.msra.mxu0 0.0
        %4474 = vmatprep.subr.mxu0 0.0
        %4475 = vmatpush2.msra.mxu0 0.0
        %4476 = vmatprep.subr.mxu0 0.0
        %4477 = vmatpush2.msra.mxu0 0.0
        %4478 = vmatprep.mubr.f32.mxu0 0.0
        %4479 = vmatmul.mubr.f32.gmra.mxu0 %v4412
        %v4480 = vpop.f32.mrf.mxu0
        %v4481 = vadd.f32 0.0, %v4480
        %v4482 = vpop.f32.mrf.mxu0
        %4483 = vdwg.mxu0
        %v4484 = vadd.f32 %v4242, %v4481
        %v4485 = vadd.f32 %v3401, %v4484
        %v4487 = vlaneseq
        %v4488 = vshrl.u32 %v4487, 7
        %v4489 = vsub.s32 0, %v4488
        %v4490 = vrot.slane %v1291, %v4489
        %v4492 = vadd.f32 %v4485, %v4490
        %v4493 = vsel %vm3404, %v4492, 0.0
        %4494 = vadd.xlane.f32.xlu0 %v4493
        %v4495 = vpop.xlane.xlu0 %4494
        %v4496 = vmul.f32 %v4495, %v3408
        %v4497 = vsub.f32 %v4492, %v4496
        %v4498 = vmul.f32 %v4497, %v4497
        %v4499 = vsel %vm3404, %v4498, 0.0
        %4500 = vadd.xlane.f32.xlu0 %v4499
        %v4501 = vpop.xlane.xlu0 %4500
        %v4502 = vmul.f32 %v4501, %v3408
        %v4503 = vadd.f32 %v4502, 1e-05
        %v4504 = vrsqrt.pop %v4503
        %v4505 = vmul.f32 %v4497, %v4504
        %v4507 = vlaneseq
        %v4508 = vshrl.u32 %v4507, 7
        %v4509 = vsub.s32 0, %v4508
        %v4510 = vrot.slane %v1292, %v4509
        %v4512 = vmul.f32 %v4505, %v4510
        %v4514 = vlaneseq
        %v4515 = vshrl.u32 %v4514, 7
        %v4516 = vsub.s32 0, %v4515
        %v4517 = vrot.slane %v1293, %v4516
        %v4519 = vadd.f32 %v4512, %v4517
        %v4521 = vlaneseq
        %v4522 = vshrl.u32 %v4521, 7
        %v4523 = vsub.s32 0, %v4522
        %v4524 = vrot.slane %v1302, %v4523
        %v4527 = vsel %vm2900, %v4519, 0
        %4529 = vmatprep.subr.mxu0 0.0
        %4530 = vmatpush1.msra.mxu0 0.0
        %4531 = vmatprep.subr.mxu0 0.0
        %4532 = vmatpush1.msra.mxu0 0.0
        %4533 = vmatprep.subr.mxu0 0.0
        %4534 = vmatpush1.msra.mxu0 0.0
        %4535 = vmatprep.subr.mxu0 0.0
        %4536 = vmatpush1.msra.mxu0 0.0
        %4537 = vmatprep.subr.mxu0 0.0
        %4538 = vmatpush1.msra.mxu0 0.0
        %4539 = vmatprep.subr.mxu0 0.0
        %4540 = vmatpush1.msra.mxu0 0.0
        %4541 = vmatprep.subr.mxu0 0.0
        %4542 = vmatpush1.msra.mxu0 0.0
        %4543 = vmatprep.subr.mxu0 0.0
        %4544 = vmatpush1.msra.mxu0 0.0
        %4545 = vmatprep.subr.mxu0 0.0
        %4546 = vmatpush1.msra.mxu0 %v1301
        %4547 = vmatprep.subr.mxu0 0.0
        %4548 = vmatpush1.msra.mxu0 %v1300
        %4549 = vmatprep.subr.mxu0 0.0
        %4550 = vmatpush1.msra.mxu0 %v1299
        %4551 = vmatprep.subr.mxu0 0.0
        %4552 = vmatpush1.msra.mxu0 %v1298
        %4553 = vmatprep.subr.mxu0 0.0
        %4554 = vmatpush1.msra.mxu0 %v1297
        %4555 = vmatprep.subr.mxu0 0.0
        %4556 = vmatpush1.msra.mxu0 %v1296
        %4557 = vmatprep.subr.mxu0 0.0
        %4558 = vmatpush1.msra.mxu0 %v1295
        %4559 = vmatprep.subr.mxu0 0.0
        %4560 = vmatpush1.msra.mxu0 %v1294
        %4561 = vmatprep.subr.mxu0 0.0
        %4562 = vmatpush2.msra.mxu0 0.0
        %4563 = vmatprep.subr.mxu0 0.0
        %4564 = vmatpush2.msra.mxu0 0.0
        %4565 = vmatprep.subr.mxu0 0.0
        %4566 = vmatpush2.msra.mxu0 0.0
        %4567 = vmatprep.subr.mxu0 0.0
        %4568 = vmatpush2.msra.mxu0 0.0
        %4569 = vmatprep.subr.mxu0 0.0
        %4570 = vmatpush2.msra.mxu0 0.0
        %4571 = vmatprep.subr.mxu0 0.0
        %4572 = vmatpush2.msra.mxu0 0.0
        %4573 = vmatprep.subr.mxu0 0.0
        %4574 = vmatpush2.msra.mxu0 0.0
        %4575 = vmatprep.subr.mxu0 0.0
        %4576 = vmatpush2.msra.mxu0 0.0
        %4577 = vmatprep.subr.mxu0 0.0
        %4578 = vmatpush2.msra.mxu0 0.0
        %4579 = vmatprep.subr.mxu0 0.0
        %4580 = vmatpush2.msra.mxu0 0.0
        %4581 = vmatprep.subr.mxu0 0.0
        %4582 = vmatpush2.msra.mxu0 0.0
        %4583 = vmatprep.subr.mxu0 0.0
        %4584 = vmatpush2.msra.mxu0 0.0
        %4585 = vmatprep.subr.mxu0 0.0
        %4586 = vmatpush2.msra.mxu0 0.0
        %4587 = vmatprep.subr.mxu0 0.0
        %4588 = vmatpush2.msra.mxu0 0.0
        %4589 = vmatprep.subr.mxu0 0.0
        %4590 = vmatpush2.msra.mxu0 0.0
        %4591 = vmatprep.subr.mxu0 0.0
        %4592 = vmatpush2.msra.mxu0 0.0
        %4593 = vmatprep.mubr.f32.mxu0 0.0
        %4594 = vmatmul.mubr.f32.gmra.mxu0 %v4527
        %v4595 = vpop.f32.mrf.mxu0
        %v4596 = vadd.f32 %v4524, %v4595
        %v4597 = vpop.f32.mrf.mxu0
        %4598 = vdwg.mxu0
        %v4599 = vmul.f32 %v4596, %v4596
        %v4600 = vmul.f32 %v4596, %v4599
        %v4601 = vmul.f32 %v4600, 0.044715
        %v4602 = vadd.f32 %v4596, %v4601
        %v4603 = vmul.f32 %v4602, 0.7978846
        %v4604 = vtanh.pop %v4603
        %v4605 = vadd.f32 %v4604, 1.0
        %v4606 = vmul.f32 %v4605, 0.5
        %v4607 = vmul.f32 %v4596, %v4606
        %v4609 = vlaneseq
        %v4610 = vshrl.u32 %v4609, 7
        %v4611 = vsub.s32 0, %v4610
        %v4612 = vrot.slane %v1319, %v4611
        %4614 = vmatprep.subr.mxu0 0.0
        %4615 = vmatpush1.msra.mxu0 %v1318
        %4616 = vmatprep.subr.mxu0 0.0
        %4617 = vmatpush1.msra.mxu0 %v1317
        %4618 = vmatprep.subr.mxu0 0.0
        %4619 = vmatpush1.msra.mxu0 %v1316
        %4620 = vmatprep.subr.mxu0 0.0
        %4621 = vmatpush1.msra.mxu0 %v1315
        %4622 = vmatprep.subr.mxu0 0.0
        %4623 = vmatpush1.msra.mxu0 %v1314
        %4624 = vmatprep.subr.mxu0 0.0
        %4625 = vmatpush1.msra.mxu0 %v1313
        %4626 = vmatprep.subr.mxu0 0.0
        %4627 = vmatpush1.msra.mxu0 %v1312
        %4628 = vmatprep.subr.mxu0 0.0
        %4629 = vmatpush1.msra.mxu0 %v1311
        %4630 = vmatprep.subr.mxu0 0.0
        %4631 = vmatpush1.msra.mxu0 %v1310
        %4632 = vmatprep.subr.mxu0 0.0
        %4633 = vmatpush1.msra.mxu0 %v1309
        %4634 = vmatprep.subr.mxu0 0.0
        %4635 = vmatpush1.msra.mxu0 %v1308
        %4636 = vmatprep.subr.mxu0 0.0
        %4637 = vmatpush1.msra.mxu0 %v1307
        %4638 = vmatprep.subr.mxu0 0.0
        %4639 = vmatpush1.msra.mxu0 %v1306
        %4640 = vmatprep.subr.mxu0 0.0
        %4641 = vmatpush1.msra.mxu0 %v1305
        %4642 = vmatprep.subr.mxu0 0.0
        %4643 = vmatpush1.msra.mxu0 %v1304
        %4644 = vmatprep.subr.mxu0 0.0
        %4645 = vmatpush1.msra.mxu0 %v1303
        %4646 = vmatprep.subr.mxu0 0.0
        %4647 = vmatpush2.msra.mxu0 0.0
        %4648 = vmatprep.subr.mxu0 0.0
        %4649 = vmatpush2.msra.mxu0 0.0
        %4650 = vmatprep.subr.mxu0 0.0
        %4651 = vmatpush2.msra.mxu0 0.0
        %4652 = vmatprep.subr.mxu0 0.0
        %4653 = vmatpush2.msra.mxu0 0.0
        %4654 = vmatprep.subr.mxu0 0.0
        %4655 = vmatpush2.msra.mxu0 0.0
        %4656 = vmatprep.subr.mxu0 0.0
        %4657 = vmatpush2.msra.mxu0 0.0
        %4658 = vmatprep.subr.mxu0 0.0
        %4659 = vmatpush2.msra.mxu0 0.0
        %4660 = vmatprep.subr.mxu0 0.0
        %4661 = vmatpush2.msra.mxu0 0.0
        %4662 = vmatprep.subr.mxu0 0.0
        %4663 = vmatpush2.msra.mxu0 0.0
        %4664 = vmatprep.subr.mxu0 0.0
        %4665 = vmatpush2.msra.mxu0 0.0
        %4666 = vmatprep.subr.mxu0 0.0
        %4667 = vmatpush2.msra.mxu0 0.0
        %4668 = vmatprep.subr.mxu0 0.0
        %4669 = vmatpush2.msra.mxu0 0.0
        %4670 = vmatprep.subr.mxu0 0.0
        %4671 = vmatpush2.msra.mxu0 0.0
        %4672 = vmatprep.subr.mxu0 0.0
        %4673 = vmatpush2.msra.mxu0 0.0
        %4674 = vmatprep.subr.mxu0 0.0
        %4675 = vmatpush2.msra.mxu0 0.0
        %4676 = vmatprep.subr.mxu0 0.0
        %4677 = vmatpush2.msra.mxu0 0.0
        %4678 = vmatprep.mubr.f32.mxu0 0.0
        %4679 = vmatmul.mubr.f32.gmra.mxu0 %v4607
        %v4680 = vpop.f32.mrf.mxu0
        %v4681 = vadd.f32 %v4612, %v4680
        %v4682 = vpop.f32.mrf.mxu0
        %4683 = vdwg.mxu0
        %v4684 = vadd.f32 %v4492, %v4681
        %v4685 = vsel %vm3404, %v4684, 0.0
        %4686 = vadd.xlane.f32.xlu0 %v4685
        %v4687 = vpop.xlane.xlu0 %4686
        %v4688 = vmul.f32 %v4687, %v3408
        %v4689 = vsub.f32 %v4684, %v4688
        %v4690 = vmul.f32 %v4689, %v4689
        %v4691 = vsel %vm3404, %v4690, 0.0
        %4692 = vadd.xlane.f32.xlu0 %v4691
        %v4693 = vpop.xlane.xlu0 %4692
        %v4694 = vmul.f32 %v4693, %v3408
        %v4695 = vadd.f32 %v4694, 1e-05
        %v4696 = vrsqrt.pop %v4695
        %v4697 = vmul.f32 %v4689, %v4696
        %v4699 = vlaneseq
        %v4700 = vshrl.u32 %v4699, 7
        %v4701 = vsub.s32 0, %v4700
        %v4702 = vrot.slane %v1320, %v4701
        %v4704 = vmul.f32 %v4697, %v4702
        %v4706 = vlaneseq
        %v4707 = vshrl.u32 %v4706, 7
        %v4708 = vsub.s32 0, %v4707
        %v4709 = vrot.slane %v1321, %v4708
        %v4711 = vadd.f32 %v4704, %v4709
        %v4712 = vsel %vm3404, %v4711, 0.0
        %v4713 = vrot.slane %v4712, 4
        %v4714 = vadd.f32 %v4712, %v4713
        %v4715 = vrot.slane %v4714, 2
        %v4716 = vadd.f32 %v4714, %v4715
        %v4717 = vrot.slane %v4716, 1
        %v4718 = vadd.f32 %v4716, %v4717
        %v4719 = vrcp.pop 4.0
        %v4720 = vmul.f32 %v4718, %v4719
        %v4722 = vsel %vm2900, %v4720, 0
        %4724 = vmatprep.subr.mxu0 0.0
        %4725 = vmatpush1.msra.mxu0 0.0
        %4726 = vmatprep.subr.mxu0 0.0
        %4727 = vmatpush1.msra.mxu0 0.0
        %4728 = vmatprep.subr.mxu0 0.0
        %4729 = vmatpush1.msra.mxu0 0.0
        %4730 = vmatprep.subr.mxu0 0.0
        %4731 = vmatpush1.msra.mxu0 0.0
        %4732 = vmatprep.subr.mxu0 0.0
        %4733 = vmatpush1.msra.mxu0 0.0
        %4734 = vmatprep.subr.mxu0 0.0
        %4735 = vmatpush1.msra.mxu0 0.0
        %4736 = vmatprep.subr.mxu0 0.0
        %4737 = vmatpush1.msra.mxu0 0.0
        %4738 = vmatprep.subr.mxu0 0.0
        %4739 = vmatpush1.msra.mxu0 0.0
        %4740 = vmatprep.subr.mxu0 0.0
        %4741 = vmatpush1.msra.mxu0 %v1329
        %4742 = vmatprep.subr.mxu0 0.0
        %4743 = vmatpush1.msra.mxu0 %v1328
        %4744 = vmatprep.subr.mxu0 0.0
        %4745 = vmatpush1.msra.mxu0 %v1327
        %4746 = vmatprep.subr.mxu0 0.0
        %4747 = vmatpush1.msra.mxu0 %v1326
        %4748 = vmatprep.subr.mxu0 0.0
        %4749 = vmatpush1.msra.mxu0 %v1325
        %4750 = vmatprep.subr.mxu0 0.0
        %4751 = vmatpush1.msra.mxu0 %v1324
        %4752 = vmatprep.subr.mxu0 0.0
        %4753 = vmatpush1.msra.mxu0 %v1323
        %4754 = vmatprep.subr.mxu0 0.0
        %4755 = vmatpush1.msra.mxu0 %v1322
        %4756 = vmatprep.subr.mxu0 0.0
        %4757 = vmatpush2.msra.mxu0 0.0
        %4758 = vmatprep.subr.mxu0 0.0
        %4759 = vmatpush2.msra.mxu0 0.0
        %4760 = vmatprep.subr.mxu0 0.0
        %4761 = vmatpush2.msra.mxu0 0.0
        %4762 = vmatprep.subr.mxu0 0.0
        %4763 = vmatpush2.msra.mxu0 0.0
        %4764 = vmatprep.subr.mxu0 0.0
        %4765 = vmatpush2.msra.mxu0 0.0
        %4766 = vmatprep.subr.mxu0 0.0
        %4767 = vmatpush2.msra.mxu0 0.0
        %4768 = vmatprep.subr.mxu0 0.0
        %4769 = vmatpush2.msra.mxu0 0.0
        %4770 = vmatprep.subr.mxu0 0.0
        %4771 = vmatpush2.msra.mxu0 0.0
        %4772 = vmatprep.subr.mxu0 0.0
        %4773 = vmatpush2.msra.mxu0 0.0
        %4774 = vmatprep.subr.mxu0 0.0
        %4775 = vmatpush2.msra.mxu0 0.0
        %4776 = vmatprep.subr.mxu0 0.0
        %4777 = vmatpush2.msra.mxu0 0.0
        %4778 = vmatprep.subr.mxu0 0.0
        %4779 = vmatpush2.msra.mxu0 0.0
        %4780 = vmatprep.subr.mxu0 0.0
        %4781 = vmatpush2.msra.mxu0 0.0
        %4782 = vmatprep.subr.mxu0 0.0
        %4783 = vmatpush2.msra.mxu0 0.0
        %4784 = vmatprep.subr.mxu0 0.0
        %4785 = vmatpush2.msra.mxu0 0.0
        %4786 = vmatprep.subr.mxu0 0.0
        %4787 = vmatpush2.msra.mxu0 0.0
        %4788 = vmatprep.mubr.f32.mxu0 0.0
        %4789 = vmatmul.mubr.f32.gmra.mxu0 %v4722
        %v4790 = vpop.f32.mrf.mxu0
        %v4791 = vadd.f32 %v1330, %v4790
        %v4792 = vpop.f32.mrf.mxu0
        %4793 = vdwg.mxu0
        %vm4794 = vcmask 32768
        %4795 = vst.msk [vmem:[%s1202] sm:$0x1] %vm4794, %v4791
        %s4796 = sand.u32 %s948, 1
        %s4797 = scalar_lea.sflag [#allocation3], %s4796
        %s4798 = sand.u32 %s948, 1
        %s4799 = scalar_lea.vmem [#allocation2], %s4798
        // Predicated region
        $region181: #{swin_vit_forward.1} parent=179 // pred_check
          %p4800 = pneg %p958
        $region182: #{swin_vit_forward.1} parent=179 // pred_check_branch
          %4802 = sbr.rel (%p4800) target = $region184
        $region183: #{swin_vit_forward.1} parent=179 // pred_region
          %s4804 = ssub.s32 16, 16
          %4805 = vsyncadd %s4797, %s4804
          %s4806 = smul.addr %s95, 16
          %s4807 = scalar_lea.hbm %s81, %s4806
          %s4809 = sshll.u32 %s4799, 4
          %s4810 = int_to_ptr.vmem [resolvable:$true] %s4809
          %4812 = dma.vmem_to_hbm [thread:$0]  %s4810, 16, %s4807, %s4797
        $region184: #{swin_vit_forward.1} parent=179 // pred_fallthru
          _
      $region180: #{swin_vit_forward.1} parent=5 // pred_fallthru
        _
      %p4813 = scmp.le.s32.totalorder 2, %s90
      // Predicated region
      $region185: #{swin_vit_forward.1} parent=5 // pred_check
        %p4814 = pneg %p4813
      $region186: #{swin_vit_forward.1} parent=5 // pred_check_branch
        %4816 = sbr.rel (%p4814) target = $region188
      $region187: #{swin_vit_forward.1} parent=5 // pred_region
        %s4817 = ssub.s32 %s90, 2
        // Predicated region
        $region189: #{swin_vit_forward.1} parent=187 // pred_check
          %p4818 = pneg %p964
        $region190: #{swin_vit_forward.1} parent=187 // pred_check_branch
          %4820 = sbr.rel (%p4818) target = $region192
        $region191: #{swin_vit_forward.1} parent=187 // pred_region
          %s4821 = sand.u32 %s949, 1
          %s4822 = scalar_lea.sflag [#allocation3], %s4821
          %s4823 = sand.u32 %s949, 1
          %s4824 = scalar_lea.vmem [#allocation2], %s4823
          %4825 = dma.done %s4822, 16
        $region192: #{swin_vit_forward.1} parent=187 // pred_fallthru
          _
      $region188: #{swin_vit_forward.1} parent=5 // pred_fallthru
        _
    $region6: #{swin_vit_forward.1} parent=1 // loop_footer
      %s94 = sadd.s32 1, %s90
    $region7: #{swin_vit_forward.1} parent=1 // loop_footer_branch
      %89 = sbr.rel target = $region3
    $region8: #{swin_vit_forward.1} parent=1 // loop_exit
      _
    %4826 = vsyncpa [#allocation3], 1
    %s4827 = scalar_lea.sflag [#allocation3], 1
    %4828 = vsyncpa %s4827, 1

</llo_original>
